<compile_context>
chip_gen: v7x
topology: tpu7x:2x2x1
jax: 0.10.0
libtpu: 0.0.40
codegen_flags: <defaults>
</compile_context>

<pallas_src>
import numpy as np
import jax
import jax.numpy as jnp
from jax.experimental import pallas as pl
from jax.experimental.pallas import tpu as pltpu


_VMEM_BLOCK_BUDGET = 24 * 1024 * 1024   # in+out double-buffered blocks per grid step
_VMEM_LIMIT_BYTES = 48 * 1024 * 1024    # < 64 MiB physical VMEM on v7x
_ONEHOT_BYTES_MAX = 4 * 1024 * 1024     # cap on the fused (HW, Ho*Wo) one-hot
_MAX_CB_FUSED = 64                      # bound static per-channel unroll (2 matmuls/ch)
_MAX_UNROLL_MATMULS = 128               # bound for the separable path unroll


def _nearest_indices(in_size, scale):
    # Exactly reproduces the PyTorch module's index formula:
    #   (ceil(range(1, 1 + int(in*scale)) / scale) - 1).astype(int)
    out_size = int(in_size * scale)
    return (np.ceil(np.arange(1, 1 + out_size, dtype=np.float64) / scale) - 1).astype(np.int64)


def _group_by_source(idx):
    """output index -> source index, grouped as {source: [outputs...]} (insertion ordered)."""
    groups = {}
    for out_i, src_i in enumerate(int(v) for v in idx):
        groups.setdefault(src_i, []).append(out_i)
    return groups


def _largest_divisor_at_most(n, cap):
    cap = max(1, min(n, cap))
    for d in range(cap, 0, -1):
        if n % d == 0:
            return d
    return 1


def _pick_channel_block(nc, per_ch_bytes, const_bytes, max_cb):
    """Channels per grid step: as large as the VMEM budget allows, >=2 steps, divisor of nc."""
    avail = max(_VMEM_BLOCK_BUDGET - const_bytes, per_ch_bytes)
    cb = int(max(1, min(nc, avail // per_ch_bytes)))
    if nc >= 2:
        cb = min(cb, max(1, nc // 2))   # keep >= 2 grid steps (2 TensorCores / megacore)
    cb = min(cb, max(1, max_cb))        # bound in-kernel static unroll
    return _largest_divisor_at_most(nc, cb)


def upsample_custom3d_nearest(x: jax.Array, scale_factor) -> jax.Array:
    """Nearest-neighbor 3-D upsample. x: (N, C, D, H, W) -> (N, C, Do, Ho, Wo)."""
    N, C, D, H, W = map(int, x.shape)
    sd, sh, sw = scale_factor[-3], scale_factor[-2], scale_factor[-1]

    d_idx = _nearest_indices(D, sd)
    h_idx = _nearest_indices(H, sh)
    w_idx = _nearest_indices(W, sw)
    Do, Ho, Wo = len(d_idx), len(h_idx), len(w_idx)

    NC = N * C
    HW, HoWo = H * W, Ho * Wo
    isz = jnp.dtype(x.dtype).itemsize

    # Compute dtype for the one-hot gather matmuls: bf16 stays bf16 (exact, single pass),
    # everything else is gathered through f32 with HIGHEST precision (exact for one-hots).
    # TODO(synk): integer dtypes wider than 24 bits would lose precision through the f32
    # matmul gather; such inputs would need a copy-based gather path.
    cdt = jnp.bfloat16 if x.dtype == jnp.dtype(jnp.bfloat16) else jnp.float32
    g_isz = jnp.dtype(cdt).itemsize
    prec = jax.lax.Precision.HIGHEST if cdt == jnp.float32 else None

    src_to_outs = _group_by_source(d_idx)   # unique source depths -> output depth slots
    n_src = len(src_to_outs)

    # Per-channel VMEM: double-buffered input + output blocks, plus an f32 compute plane.
    per_ch_bytes = 2 * (D * HW + Do * HoWo) * isz + HoWo * 4

    compiler_params = pltpu.CompilerParams(
        dimension_semantics=("parallel",),
        vmem_limit_bytes=_VMEM_LIMIT_BYTES,
    )

    # Fused path is memory-bound roughly while HW (true MACs / output element) stays
    # below the MXU/HBM balance point (~250 for f32 HIGHEST on v6e/v7x, higher for bf16).
    fused_hw_max = 512 if cdt == jnp.bfloat16 else 256
    fused_g_bytes = HW * HoWo * g_isz

    if HW <= fused_hw_max and fused_g_bytes <= _ONEHOT_BYTES_MAX:
        # ---------------- fused path: out[c] = G_d @ (x[c] @ G_hw), lane-dense ----------------
        hw_src = (h_idx[:, None] * W + w_idx[None, :]).reshape(-1)        # (Ho*Wo,)
        ghw_np = np.zeros((HW, HoWo), dtype=np.float32)
        ghw_np[hw_src, np.arange(HoWo)] = 1.0
        gd_np = np.zeros((Do, D), dtype=np.float32)
        gd_np[np.arange(Do), d_idx] = 1.0
        g_hw = jnp.asarray(ghw_np, dtype=cdt)
        g_d = jnp.asarray(gd_np, dtype=cdt)

        const_bytes = 2 * (HW * HoWo + Do * D) * g_isz
        cb = _pick_channel_block(NC, per_ch_bytes, const_bytes, max_cb=_MAX_CB_FUSED)

        x3 = x.reshape(NC, D, HW)            # free reshape (contiguous)

        def kernel(x_ref, gd_ref, ghw_ref, o_ref):
            gd = gd_ref[...]                 # (Do, D)    one-hot depth replication
            ghw = ghw_ref[...]               # (HW, HoWo) fused one-hot H/W gather
            for c in range(cb):              # static unroll; cb is capped
                v = x_ref[c].astype(cdt)                                      # (D, HW)
                # H/W gather once per SOURCE plane (sd x fewer FLOPs than gathering
                # after depth replication), then cheap depth replication on the MXU.
                u = jnp.dot(v, ghw, preferred_element_type=jnp.float32,
                            precision=prec)                                   # (D, HoWo)
                o_ref[c] = jnp.dot(gd, u.astype(cdt),
                                   preferred_element_type=jnp.float32,
                                   precision=prec).astype(o_ref.dtype)        # (Do, HoWo)

        out = pl.pallas_call(
            kernel,
            out_shape=jax.ShapeDtypeStruct((NC, Do, HoWo), x.dtype),
            grid=(NC // cb,),
            in_specs=[
                pl.BlockSpec((cb, D, HW), lambda i: (i, 0, 0)),
                pl.BlockSpec((Do, D), lambda i: (0, 0)),
                pl.BlockSpec((HW, HoWo), lambda i: (0, 0)),
            ],
            out_specs=pl.BlockSpec((cb, Do, HoWo), lambda i: (i, 0, 0)),
            compiler_params=compiler_params,
        )(x3, g_d, g_hw)
        return out.reshape(N, C, Do, Ho, Wo)

    # -------- separable path (large H*W): r = G_h @ plane @ G_w, computed once per --------
    # -------- unique source depth and stored to every matching output depth slot  --------
    # TODO(synk): volumes where a single channel's in+out planes exceed the VMEM budget
    # would additionally need D/H tiling via extra grid axes.
    gh_np = np.zeros((Ho, H), dtype=np.float32)
    gh_np[np.arange(Ho), h_idx] = 1.0
    gw_np = np.zeros((W, Wo), dtype=np.float32)
    gw_np[w_idx, np.arange(Wo)] = 1.0
    g_h = jnp.asarray(gh_np, dtype=cdt)
    g_w = jnp.asarray(gw_np, dtype=cdt)

    # Pick the cheaper matmul order (static choice).
    h_first = Ho * W * (H + Wo) <= H * Wo * (W + Ho)

    const_bytes = 2 * (Ho * H + W * Wo) * g_isz
    max_cb = max(1, _MAX_UNROLL_MATMULS // max(1, 2 * n_src))
    cb = _pick_channel_block(NC, per_ch_bytes, const_bytes, max_cb=max_cb)

    x4 = x.reshape(NC, D, H, W)              # free reshape (contiguous)

    def kernel_fb(x_ref, gh_ref, gw_ref, o_ref):
        gh = gh_ref[...]                     # (Ho, H)
        gw = gw_ref[...]                     # (W, Wo)
        for c in range(cb):                  # static unroll; cb is capped
            for s, outs in src_to_outs.items():
                v = x_ref[c, s].astype(cdt)                                   # (H, W)
                if h_first:
                    t = jnp.dot(gh, v, preferred_element_type=jnp.float32,
                                precision=prec)                               # (Ho, W)
                    r = jnp.dot(t.astype(cdt), gw,
                                preferred_element_type=jnp.float32,
                                precision=prec)                               # (Ho, Wo)
                else:
                    t = jnp.dot(v, gw, preferred_element_type=jnp.float32,
                                precision=prec)                               # (H, Wo)
                    r = jnp.dot(gh, t.astype(cdt),
                                preferred_element_type=jnp.float32,
                                precision=prec)                               # (Ho, Wo)
                r = r.astype(o_ref.dtype)
                for e in outs:               # depth replication = stores
                    o_ref[c, e] = r

    out = pl.pallas_call(
        kernel_fb,
        out_shape=jax.ShapeDtypeStruct((NC, Do, Ho, Wo), x.dtype),
        grid=(NC // cb,),
        in_specs=[
            pl.BlockSpec((cb, D, H, W), lambda i: (i, 0, 0, 0)),
            pl.BlockSpec((Ho, H), lambda i: (0, 0)),
            pl.BlockSpec((W, Wo), lambda i: (0, 0)),
        ],
        out_specs=pl.BlockSpec((cb, Do, Ho, Wo), lambda i: (i, 0, 0, 0)),
        compiler_params=compiler_params,
    )(x4, g_h, g_w)
    return out.reshape(N, C, Do, Ho, Wo)


if __name__ == "__main__":
    def _reference(x, scale_factor):
        d_idx = _nearest_indices(x.shape[-3], scale_factor[-3])
        h_idx = _nearest_indices(x.shape[-2], scale_factor[-2])
        w_idx = _nearest_indices(x.shape[-1], scale_factor[-1])
        return x[:, :, d_idx, :, :][:, :, :, h_idx, :][:, :, :, :, w_idx]

    key = jax.random.PRNGKey(0)
    configs = [
        ((2, 4, 4, 8, 8), (2, 2, 2), jnp.float32),          # integer scales -> fused path
        ((2, 4, 4, 8, 8), (1.5, 1.5, 1.5), jnp.float32),    # non-integer scales -> fused path
        ((2, 2, 4, 40, 40), (2, 2, 2), jnp.float32),        # large H*W -> separable path
        ((2, 4, 3, 8, 8), (2, 1.5, 2), jnp.bfloat16),       # bf16, mixed scales -> fused path
    ]
    for shape, scale, dtype in configs:
        key, sub = jax.random.split(key)
        x = jax.random.normal(sub, shape, dtype=dtype)
        out = jax.block_until_ready(upsample_custom3d_nearest(x, scale))
        ref = _reference(x, scale)
        assert out.shape == ref.shape, (out.shape, ref.shape)
        np.testing.assert_array_equal(
            np.asarray(out).astype(np.float32), np.asarray(ref).astype(np.float32))

    print("KERNEL_OK")
</pallas_src>

<mosaic_0001>
module attributes {stable_mosaic.version = 11 : i64} {
  func.func @kernel(%arg0: i32, %arg1: memref<4x4x64xf32, #tpu.memory_space<vmem>>, %arg2: memref<8x4xf32, #tpu.memory_space<vmem>>, %arg3: memref<64x256xf32, #tpu.memory_space<vmem>>, %arg4: memref<4x8x256xf32, #tpu.memory_space<vmem>>) attributes {dimension_semantics = [#tpu.dimension_semantics<parallel>], iteration_bounds = array<i64: 2>, scalar_prefetch = 0 : i64, scratch_operands = 0 : i64, tpu.core_type = #tpu.core_type<tc>, window_params = [{transform_indices = @transform_0, window_bounds = array<i64: 4, 4, 64>}, {pipeline_mode = #tpu.pipeline_mode<synchronous>, transform_indices = @transform_1, window_bounds = array<i64: 8, 4>}, {pipeline_mode = #tpu.pipeline_mode<synchronous>, transform_indices = @transform_2, window_bounds = array<i64: 64, 256>}, {transform_indices = @transform_3, window_bounds = array<i64: 4, 8, 256>}]} {
    %c0 = arith.constant 0 : index
    %c0_0 = arith.constant 0 : index
    %0 = vector.load %arg2[%c0, %c0_0] : memref<8x4xf32, #tpu.memory_space<vmem>>, vector<8x4xf32>
    %c0_1 = arith.constant 0 : index
    %c0_2 = arith.constant 0 : index
    %1 = vector.load %arg3[%c0_1, %c0_2] : memref<64x256xf32, #tpu.memory_space<vmem>>, vector<64x256xf32>
    %c0_3 = arith.constant 0 : index
    %c0_4 = arith.constant 0 : index
    %c0_5 = arith.constant 0 : index
    %2 = vector.load %arg1[%c0_3, %c0_4, %c0_5] : memref<4x4x64xf32, #tpu.memory_space<vmem>>, vector<1x4x64xf32>
    %3 = vector.shape_cast %2 : vector<1x4x64xf32> to vector<4x64xf32>
    %cst = arith.constant dense<0.000000e+00> : vector<4x256xf32>
    %4 = tpu.matmul %3, %1, %cst {dimension_numbers = #tpu.dot_dimension_numbers<[1], [0], [0], [1], [0, 0, 1, 1], [], []>, precision = #tpu.contract_precision<fp32>} : vector<4x64xf32>, vector<64x256xf32>, vector<4x256xf32> -> vector<4x256xf32>
    %cst_6 = arith.constant dense<0.000000e+00> : vector<8x256xf32>
    %5 = tpu.matmul %0, %4, %cst_6 {dimension_numbers = #tpu.dot_dimension_numbers<[1], [0], [0], [1], [0, 0, 1, 1], [], []>, precision = #tpu.contract_precision<fp32>} : vector<8x4xf32>, vector<4x256xf32>, vector<8x256xf32> -> vector<8x256xf32>
    %c0_7 = arith.constant 0 : index
    %c0_8 = arith.constant 0 : index
    %c0_9 = arith.constant 0 : index
    %6 = vector.load %arg4[%c0_7, %c0_8, %c0_9] : memref<4x8x256xf32, #tpu.memory_space<vmem>>, vector<1x8x256xf32>
    %7 = vector.shape_cast %6 : vector<1x8x256xf32> to vector<8x256xf32>
    %8 = vector.shape_cast %5 : vector<8x256xf32> to vector<1x8x256xf32>
    tpu.vector_store %arg4[%c0_7, %c0_8, %c0_9], %8 {strides = array<i32>} : memref<4x8x256xf32, #tpu.memory_space<vmem>>, vector<1x8x256xf32>,
    %c1 = arith.constant 1 : index
    %c0_10 = arith.constant 0 : index
    %c0_11 = arith.constant 0 : index
    %9 = vector.load %arg1[%c1, %c0_10, %c0_11] : memref<4x4x64xf32, #tpu.memory_space<vmem>>, vector<1x4x64xf32>
    %10 = vector.shape_cast %9 : vector<1x4x64xf32> to vector<4x64xf32>
    %cst_12 = arith.constant dense<0.000000e+00> : vector<4x256xf32>
    %11 = tpu.matmul %10, %1, %cst_12 {dimension_numbers = #tpu.dot_dimension_numbers<[1], [0], [0], [1], [0, 0, 1, 1], [], []>, precision = #tpu.contract_precision<fp32>} : vector<4x64xf32>, vector<64x256xf32>, vector<4x256xf32> -> vector<4x256xf32>
    %cst_13 = arith.constant dense<0.000000e+00> : vector<8x256xf32>
    %12 = tpu.matmul %0, %11, %cst_13 {dimension_numbers = #tpu.dot_dimension_numbers<[1], [0], [0], [1], [0, 0, 1, 1], [], []>, precision = #tpu.contract_precision<fp32>} : vector<8x4xf32>, vector<4x256xf32>, vector<8x256xf32> -> vector<8x256xf32>
    %c1_14 = arith.constant 1 : index
    %c0_15 = arith.constant 0 : index
    %c0_16 = arith.constant 0 : index
    %13 = vector.load %arg4[%c1_14, %c0_15, %c0_16] : memref<4x8x256xf32, #tpu.memory_space<vmem>>, vector<1x8x256xf32>
    %14 = vector.shape_cast %13 : vector<1x8x256xf32> to vector<8x256xf32>
    %15 = vector.shape_cast %12 : vector<8x256xf32> to vector<1x8x256xf32>
    tpu.vector_store %arg4[%c1_14, %c0_15, %c0_16], %15 {strides = array<i32>} : memref<4x8x256xf32, #tpu.memory_space<vmem>>, vector<1x8x256xf32>,
    %c2 = arith.constant 2 : index
    %c0_17 = arith.constant 0 : index
    %c0_18 = arith.constant 0 : index
    %16 = vector.load %arg1[%c2, %c0_17, %c0_18] : memref<4x4x64xf32, #tpu.memory_space<vmem>>, vector<1x4x64xf32>
    %17 = vector.shape_cast %16 : vector<1x4x64xf32> to vector<4x64xf32>
    %cst_19 = arith.constant dense<0.000000e+00> : vector<4x256xf32>
    %18 = tpu.matmul %17, %1, %cst_19 {dimension_numbers = #tpu.dot_dimension_numbers<[1], [0], [0], [1], [0, 0, 1, 1], [], []>, precision = #tpu.contract_precision<fp32>} : vector<4x64xf32>, vector<64x256xf32>, vector<4x256xf32> -> vector<4x256xf32>
    %cst_20 = arith.constant dense<0.000000e+00> : vector<8x256xf32>
    %19 = tpu.matmul %0, %18, %cst_20 {dimension_numbers = #tpu.dot_dimension_numbers<[1], [0], [0], [1], [0, 0, 1, 1], [], []>, precision = #tpu.contract_precision<fp32>} : vector<8x4xf32>, vector<4x256xf32>, vector<8x256xf32> -> vector<8x256xf32>
    %c2_21 = arith.constant 2 : index
    %c0_22 = arith.constant 0 : index
    %c0_23 = arith.constant 0 : index
    %20 = vector.load %arg4[%c2_21, %c0_22, %c0_23] : memref<4x8x256xf32, #tpu.memory_space<vmem>>, vector<1x8x256xf32>
    %21 = vector.shape_cast %20 : vector<1x8x256xf32> to vector<8x256xf32>
    %22 = vector.shape_cast %19 : vector<8x256xf32> to vector<1x8x256xf32>
    tpu.vector_store %arg4[%c2_21, %c0_22, %c0_23], %22 {strides = array<i32>} : memref<4x8x256xf32, #tpu.memory_space<vmem>>, vector<1x8x256xf32>,
    %c3 = arith.constant 3 : index
    %c0_24 = arith.constant 0 : index
    %c0_25 = arith.constant 0 : index
    %23 = vector.load %arg1[%c3, %c0_24, %c0_25] : memref<4x4x64xf32, #tpu.memory_space<vmem>>, vector<1x4x64xf32>
    %24 = vector.shape_cast %23 : vector<1x4x64xf32> to vector<4x64xf32>
    %cst_26 = arith.constant dense<0.000000e+00> : vector<4x256xf32>
    %25 = tpu.matmul %24, %1, %cst_26 {dimension_numbers = #tpu.dot_dimension_numbers<[1], [0], [0], [1], [0, 0, 1, 1], [], []>, precision = #tpu.contract_precision<fp32>} : vector<4x64xf32>, vector<64x256xf32>, vector<4x256xf32> -> vector<4x256xf32>
    %cst_27 = arith.constant dense<0.000000e+00> : vector<8x256xf32>
    %26 = tpu.matmul %0, %25, %cst_27 {dimension_numbers = #tpu.dot_dimension_numbers<[1], [0], [0], [1], [0, 0, 1, 1], [], []>, precision = #tpu.contract_precision<fp32>} : vector<8x4xf32>, vector<4x256xf32>, vector<8x256xf32> -> vector<8x256xf32>
    %c3_28 = arith.constant 3 : index
    %c0_29 = arith.constant 0 : index
    %c0_30 = arith.constant 0 : index
    %27 = vector.load %arg4[%c3_28, %c0_29, %c0_30] : memref<4x8x256xf32, #tpu.memory_space<vmem>>, vector<1x8x256xf32>
    %28 = vector.shape_cast %27 : vector<1x8x256xf32> to vector<8x256xf32>
    %29 = vector.shape_cast %26 : vector<8x256xf32> to vector<1x8x256xf32>
    tpu.vector_store %arg4[%c3_28, %c0_29, %c0_30], %29 {strides = array<i32>} : memref<4x8x256xf32, #tpu.memory_space<vmem>>, vector<1x8x256xf32>,
    return
  }
  func.func @transform_0(%arg0: i32) -> (i32, i32, i32) {
    %c0_i32 = arith.constant 0 : i32
    %c0_i32_0 = arith.constant 0 : i32
    %c0_i32_1 = arith.constant 0 : i32
    return %arg0, %c0_i32, %c0_i32_0 : i32, i32, i32
  }
  func.func @transform_1(%arg0: i32) -> (i32, i32) {
    %c0_i32 = arith.constant 0 : i32
    %c0_i32_0 = arith.constant 0 : i32
    %c0_i32_1 = arith.constant 0 : i32
    return %c0_i32, %c0_i32_0 : i32, i32
  }
  func.func @transform_2(%arg0: i32) -> (i32, i32) {
    %c0_i32 = arith.constant 0 : i32
    %c0_i32_0 = arith.constant 0 : i32
    %c0_i32_1 = arith.constant 0 : i32
    return %c0_i32, %c0_i32_0 : i32, i32
  }
  func.func @transform_3(%arg0: i32) -> (i32, i32, i32) {
    %c0_i32 = arith.constant 0 : i32
    %c0_i32_0 = arith.constant 0 : i32
    %c0_i32_1 = arith.constant 0 : i32
    return %arg0, %c0_i32, %c0_i32_0 : i32, i32, i32
  }
}

</mosaic_0001>

<llo_original>
// kernel: tpu_custom_call.1
$region0: #{tpu_custom_call.1}
  #allocation0 [shape = 'u32[]', space=smem, size = 0x4, offset = 0x4, fixed_abs, tag = 'smem constant byte address 0x4 - core index']
  #allocation1 [shape = 'u32[144,128]{1,0:T(1,128)}', space=vmem, size = 0x12000, scoped, tag = 'internal scratch']
  %s0 = inlined_call_operand.hbm [shape: f32[8,4,64], index: 0, kind: input, shape index: {}]
  %s1 = inlined_call_operand.vmem [shape: f32[8,4], index: 1, kind: input, shape index: {}]
  %s2 = inlined_call_operand.hbm [shape: f32[64,256], index: 2, kind: input, shape index: {}]
  %s3 = inlined_call_operand.hbm [shape: f32[8,8,256], index: 3, kind: output, shape index: {}]
  %s4 = sld [smem:[#allocation0]]
  $region53: #{tpu_custom_call.1} parent=0
    _
  %s6 = ssub.s32 1, %s4
  %s7 = scalar_select 0, %s6, %s4
  $region1: #{tpu_custom_call.1} parent=0
    #allocation2 [shape = 'u8[16384]{0}', space=vmem, size = 0x4000, scoped, tag = 'input window, operand 0']
    #allocation3 [shape = 's32[2]{0}', space=sflag, size = 0x8, scoped, tag = 'scoped memory for tpu_custom_call.1']
    #allocation4 [shape = 's32[2]{0}', space=sflag, size = 0x8, scoped, tag = 'scoped memory for tpu_custom_call.1']
    #allocation5 [shape = 'u8[65536]{0}', space=vmem, size = 0x10000, scoped, tag = 'input window, operand 2, single buffered']
    #allocation6 [shape = 's32[1]{0}', space=sflag, size = 0x4, scoped, tag = 'scoped memory for tpu_custom_call.1']
    #allocation7 [shape = 'u8[65536]{0}', space=vmem, size = 0x10000, scoped, tag = 'output window, operand 0']
    %8 = vsyncpa [#allocation3], 0
    %s9 = scalar_lea.sflag [#allocation3], 1
    %10 = vsyncpa %s9, 0
    %11 = vsyncpa [#allocation6], 0
    %12 = vsyncpa [#allocation4], 0
    %s13 = scalar_lea.sflag [#allocation4], 1
    %14 = vsyncpa %s13, 0
    loop: start=0, step=1, limit=4
    $region2: #{tpu_custom_call.1} parent=1 // loop_pre_header
      _
    $region3: #{tpu_custom_call.1} parent=1 // loop_header
      %s16 = sphi 0, %s20
      %p17 = scmp.ge.s32.totalorder %s16, 4
      %s26 = sphi 0, %s28
      %s29 = sphi 0, %s26
      %s30 = sphi 0, %s29
      %s46 = sphi 0, %s30
      %s50 = sphi 0, %s50
      %s52 = sphi 0, %s50
      %s53 = sphi 0, %s52
      %s67 = sphi 0, %s53
      %s71 = sphi 0, %s71
      %s73 = sphi 0, %s71
      %s74 = sphi 0, %s73
      %s88 = sphi 0, %s74
      %s94 = sphi 0, %s96
      %s97 = sphi 0, %s94
      %s98 = sphi 0, %s97
      %s114 = sphi 0, %s98
    $region4: #{tpu_custom_call.1} parent=1 // loop_header_branch
      %19 = sbr.rel (%p17) target = $region8
    $region5: #{tpu_custom_call.1} parent=1 // loop_body
      %s21 = ssub.s32 %s16, 1
      %s22 = ssub.s32 %s16, 2
      %s23 = sadd.s32 %s16, 1
      %s24 = ssub.s32 %s16, %s23
      %p25 = scmp.eq.s32.totalorder %s24, 0
      %s27 = sadd.s32 %s26, 1
      %s28 = scalar_select %p25, %s26, %s27
      %p31 = pneg %p25
      %p32 = scmp.eq.s32.totalorder %s16, 1
      %p33 = por %p31, %p32
      %p34 = scmp.ne.s32.totalorder %s26, %s29
      %p35 = scmp.eq.s32.totalorder %s16, 0
      %p36 = por %p34, %p35
      %p37 = scmp.ne.s32.totalorder %s26, %s29
      %p38 = scmp.eq.s32.totalorder %s21, 1
      %p39 = por %p37, %p38
      %p40 = scmp.ne.s32.totalorder %s29, %s30
      %p41 = scmp.eq.s32.totalorder %s21, 0
      %p42 = por %p40, %p41
      %p43 = scmp.ne.s32.totalorder %s29, %s30
      %p44 = scmp.eq.s32.totalorder %s22, 1
      %p45 = por %p43, %p44
      %p47 = scmp.ne.s32.totalorder %s30, %s46
      %p48 = scmp.eq.s32.totalorder %s22, 0
      %p49 = por %p47, %p48
      %s51 = sadd.s32 %s50, 1
      %p54 = scmp.eq.s32.totalorder %s16, 1
      %p55 = scmp.ne.s32.totalorder %s50, %s52
      %p56 = scmp.eq.s32.totalorder %s16, 0
      %p57 = por %p55, %p56
      %p58 = scmp.ne.s32.totalorder %s50, %s52
      %p59 = scmp.eq.s32.totalorder %s21, 1
      %p60 = por %p58, %p59
      %p61 = scmp.ne.s32.totalorder %s52, %s53
      %p62 = scmp.eq.s32.totalorder %s21, 0
      %p63 = por %p61, %p62
      %p64 = scmp.ne.s32.totalorder %s52, %s53
      %p65 = scmp.eq.s32.totalorder %s22, 1
      %p66 = por %p64, %p65
      %p68 = scmp.ne.s32.totalorder %s53, %s67
      %p69 = scmp.eq.s32.totalorder %s22, 0
      %p70 = por %p68, %p69
      %s72 = sadd.s32 %s71, 1
      %p75 = scmp.eq.s32.totalorder %s16, 1
      %p76 = scmp.ne.s32.totalorder %s71, %s73
      %p77 = scmp.eq.s32.totalorder %s16, 0
      %p78 = por %p76, %p77
      %p79 = scmp.ne.s32.totalorder %s71, %s73
      %p80 = scmp.eq.s32.totalorder %s21, 1
      %p81 = por %p79, %p80
      %p82 = scmp.ne.s32.totalorder %s73, %s74
      %p83 = scmp.eq.s32.totalorder %s21, 0
      %p84 = por %p82, %p83
      %p85 = scmp.ne.s32.totalorder %s73, %s74
      %p86 = scmp.eq.s32.totalorder %s22, 1
      %p87 = por %p85, %p86
      %p89 = scmp.ne.s32.totalorder %s74, %s88
      %p90 = scmp.eq.s32.totalorder %s22, 0
      %p91 = por %p89, %p90
      %s92 = ssub.s32 %s16, %s23
      %p93 = scmp.eq.s32.totalorder %s92, 0
      %s95 = sadd.s32 %s94, 1
      %s96 = scalar_select %p93, %s94, %s95
      %p99 = pneg %p93
      %p100 = scmp.eq.s32.totalorder %s16, 1
      %p101 = por %p99, %p100
      %p102 = scmp.ne.s32.totalorder %s94, %s97
      %p103 = scmp.eq.s32.totalorder %s16, 0
      %p104 = por %p102, %p103
      %p105 = scmp.ne.s32.totalorder %s94, %s97
      %p106 = scmp.eq.s32.totalorder %s21, 1
      %p107 = por %p105, %p106
      %p108 = scmp.ne.s32.totalorder %s97, %s98
      %p109 = scmp.eq.s32.totalorder %s21, 0
      %p110 = por %p108, %p109
      %p111 = scmp.ne.s32.totalorder %s97, %s98
      %p112 = scmp.eq.s32.totalorder %s22, 1
      %p113 = por %p111, %p112
      %p115 = scmp.ne.s32.totalorder %s98, %s114
      %p116 = scmp.eq.s32.totalorder %s22, 0
      %p117 = por %p115, %p116
      %p118 = scmp.le.s32.totalorder 1, %s16
      %p119 = scmp.lt.s32.totalorder %s16, 3
      %p120 = pnand %p118, %p119
      %p121 = pneg %p120
      // Predicated region
      $region9: #{tpu_custom_call.1} parent=5 // pred_check
        _
      $region10: #{tpu_custom_call.1} parent=5 // pred_check_branch
        %123 = sbr.rel (%p120) target = $region12
      $region11: #{tpu_custom_call.1} parent=5 // pred_region
        %s124 = ssub.s32 %s16, 1
        // Predicated region
        $region13: #{tpu_custom_call.1} parent=11 // pred_check
          %p125 = pneg %p63
        $region14: #{tpu_custom_call.1} parent=11 // pred_check_branch
          %127 = sbr.rel (%p125) target = $region16
        $region15: #{tpu_custom_call.1} parent=11 // pred_region
          _
        $region16: #{tpu_custom_call.1} parent=11 // pred_fallthru
          _
        // Predicated region
        $region17: #{tpu_custom_call.1} parent=11 // pred_check
          %p128 = pneg %p84
        $region18: #{tpu_custom_call.1} parent=11 // pred_check_branch
          %130 = sbr.rel (%p128) target = $region20
        $region19: #{tpu_custom_call.1} parent=11 // pred_region
          %s132 = ssub.s32 2048, 2048
          %133 = vsyncadd [#allocation6], %s132
          %s134 = sshll.u32 [#allocation5], 4
          %s135 = int_to_ptr.vmem [resolvable:$true] %s134
          %140 = dma.hbm_to_vmem [thread:$0]  %s2, 2048, %s135, [#allocation6], 256, 256, 16
        $region20: #{tpu_custom_call.1} parent=11 // pred_fallthru
          _
      $region12: #{tpu_custom_call.1} parent=5 // pred_fallthru
        _
      %p141 = scmp.lt.s32.totalorder %s16, 2
      // Predicated region
      $region21: #{tpu_custom_call.1} parent=5 // pred_check
        %p142 = pneg %p141
      $region22: #{tpu_custom_call.1} parent=5 // pred_check_branch
        %144 = sbr.rel (%p142) target = $region24
      $region23: #{tpu_custom_call.1} parent=5 // pred_region
        // Predicated region
        $region25: #{tpu_custom_call.1} parent=23 // pred_check
          %p145 = pneg %p36
        $region26: #{tpu_custom_call.1} parent=23 // pred_check_branch
          %147 = sbr.rel (%p145) target = $region28
        $region27: #{tpu_custom_call.1} parent=23 // pred_region
          %s148 = sand.u32 %s26, 1
          %s149 = scalar_lea.sflag [#allocation3], %s148
          %s150 = sand.u32 %s26, 1
          %s151 = smul.addr %s150, 16
          %s152 = scalar_lea.vmem [#allocation2], %s151
          %s153 = smul.u32 4, %s16
          %s155 = ssub.s32 256, 256
          %156 = vsyncadd %s149, %s155
          %s157 = smul.addr %s153, 64
          %s158 = scalar_lea.hbm %s0, %s157
          %s159 = sshll.u32 %s152, 4
          %s160 = int_to_ptr.vmem [resolvable:$true] %s159
          %165 = dma.hbm_to_vmem [thread:$0]  %s158, 256, %s160, %s149, 64, 64, 4
        $region28: #{tpu_custom_call.1} parent=23 // pred_fallthru
          _
      $region24: #{tpu_custom_call.1} parent=5 // pred_fallthru
        _
      %p166 = scmp.le.s32.totalorder 1, %s16
      %p167 = scmp.lt.s32.totalorder %s16, 3
      %p168 = pnand %p166, %p167
      %p169 = pneg %p168
      // Predicated region
      $region29: #{tpu_custom_call.1} parent=5 // pred_check
        _
      $region30: #{tpu_custom_call.1} parent=5 // pred_check_branch
        %171 = sbr.rel (%p168) target = $region32
      $region31: #{tpu_custom_call.1} parent=5 // pred_region
        %s172 = ssub.s32 %s16, 1
        %s173 = sand.u32 %s29, 1
        %s174 = scalar_lea.sflag [#allocation3], %s173
        %s175 = sand.u32 %s29, 1
        %s176 = smul.addr %s175, 16
        %s177 = scalar_lea.vmem [#allocation2], %s176
        // Predicated region
        $region33: #{tpu_custom_call.1} parent=31 // pred_check
          %p178 = pneg %p42
        $region34: #{tpu_custom_call.1} parent=31 // pred_check_branch
          %180 = sbr.rel (%p178) target = $region36
        $region35: #{tpu_custom_call.1} parent=31 // pred_region
          %181 = dma.done %s174, 256
        $region36: #{tpu_custom_call.1} parent=31 // pred_fallthru
          _
        // Predicated region
        $region37: #{tpu_custom_call.1} parent=31 // pred_check
          %p182 = pneg %p84
        $region38: #{tpu_custom_call.1} parent=31 // pred_check_branch
          %184 = sbr.rel (%p182) target = $region40
        $region39: #{tpu_custom_call.1} parent=31 // pred_region
          %185 = dma.done [#allocation6], 2048
        $region40: #{tpu_custom_call.1} parent=31 // pred_fallthru
          _
        %s186 = sand.u32 %s29, 1
        %s187 = scalar_lea.sflag [#allocation3], %s186
        %s188 = sand.u32 %s29, 1
        %s189 = smul.addr %s188, 16
        %s190 = scalar_lea.vmem [#allocation2], %s189
        %p191 = pneg %p42
        %p192 = pneg %p39
        %p193 = pneg %p63
        %p194 = pneg %p60
        %p195 = pneg %p84
        %p196 = pneg %p81
        %p197 = pneg %p110
        %p198 = pneg %p107
        %s199 = sand.u32 %s97, 1
        %s200 = scalar_lea.sflag [#allocation4], %s199
        %s201 = sand.u32 %s97, 1
        %s202 = smul.addr %s201, 64
        %s203 = scalar_lea.vmem [#allocation7], %s202
        %s204 = smul.u32 4, %s21
        %s205 = smul.u32 4, %s21
        %v206 = vld [vmem:[%s1] sm:$0xff]
        %v207 = vld [vmem:[#allocation5] sm:$0xff]
        %v208 = vld [vmem:[#allocation5 + $0x8] sm:$0xff]
        %v209 = vld [vmem:[#allocation5 + $0x10] sm:$0xff]
        %v210 = vld [vmem:[#allocation5 + $0x18] sm:$0xff]
        %v211 = vld [vmem:[#allocation5 + $0x20] sm:$0xff]
        %v212 = vld [vmem:[#allocation5 + $0x28] sm:$0xff]
        %v213 = vld [vmem:[#allocation5 + $0x30] sm:$0xff]
        %v214 = vld [vmem:[#allocation5 + $0x38] sm:$0xff]
        %v215 = vld [vmem:[#allocation5 + $0x40] sm:$0xff]
        %v216 = vld [vmem:[#allocation5 + $0x48] sm:$0xff]
        %v217 = vld [vmem:[#allocation5 + $0x50] sm:$0xff]
        %v218 = vld [vmem:[#allocation5 + $0x58] sm:$0xff]
        %v219 = vld [vmem:[#allocation5 + $0x60] sm:$0xff]
        %v220 = vld [vmem:[#allocation5 + $0x68] sm:$0xff]
        %v221 = vld [vmem:[#allocation5 + $0x70] sm:$0xff]
        %v222 = vld [vmem:[#allocation5 + $0x78] sm:$0xff]
        %v223 = vld [vmem:[%s177] sm:$0xf]
        %vm224 = vcmask 523264
        %v226 = vsel %vm224, %v223, 0
        %v228 = vand.u32 %v208, 4294901760
        %229 = vmatprep.subr.mxu0 %v228
        %v230 = vand.u32 %v207, 4294901760
        %231 = vmatpush1.msra.mxu0 %v230
        %v232 = vand.u32 %v210, 4294901760
        %233 = vmatprep.subr.mxu0 %v232
        %v234 = vand.u32 %v209, 4294901760
        %235 = vmatpush1.msra.mxu0 %v234
        %v236 = vand.u32 %v212, 4294901760
        %237 = vmatprep.subr.mxu0 %v236
        %v238 = vand.u32 %v211, 4294901760
        %239 = vmatpush1.msra.mxu0 %v238
        %v240 = vand.u32 %v214, 4294901760
        %241 = vmatprep.subr.mxu0 %v240
        %v242 = vand.u32 %v213, 4294901760
        %243 = vmatpush1.msra.mxu0 %v242
        %v244 = vand.u32 %v216, 4294901760
        %245 = vmatprep.subr.mxu0 %v244
        %v246 = vand.u32 %v215, 4294901760
        %247 = vmatpush1.msra.mxu0 %v246
        %v248 = vand.u32 %v218, 4294901760
        %249 = vmatprep.subr.mxu0 %v248
        %v250 = vand.u32 %v217, 4294901760
        %251 = vmatpush1.msra.mxu0 %v250
        %v252 = vand.u32 %v220, 4294901760
        %253 = vmatprep.subr.mxu0 %v252
        %v254 = vand.u32 %v219, 4294901760
        %255 = vmatpush1.msra.mxu0 %v254
        %v256 = vand.u32 %v222, 4294901760
        %257 = vmatprep.subr.mxu0 %v256
        %v258 = vand.u32 %v221, 4294901760
        %259 = vmatpush1.msra.mxu0 %v258
        %260 = vmatprep.subr.mxu0 0.0
        %261 = vmatpush1.msra.mxu0 0.0
        %262 = vmatprep.subr.mxu0 0.0
        %263 = vmatpush1.msra.mxu0 0.0
        %264 = vmatprep.subr.mxu0 0.0
        %265 = vmatpush1.msra.mxu0 0.0
        %266 = vmatprep.subr.mxu0 0.0
        %267 = vmatpush1.msra.mxu0 0.0
        %268 = vmatprep.subr.mxu0 0.0
        %269 = vmatpush1.msra.mxu0 0.0
        %270 = vmatprep.subr.mxu0 0.0
        %271 = vmatpush1.msra.mxu0 0.0
        %272 = vmatprep.subr.mxu0 0.0
        %273 = vmatpush1.msra.mxu0 0.0
        %274 = vmatprep.subr.mxu0 0.0
        %275 = vmatpush1.msra.mxu0 0.0
        %276 = vmatprep.subr.mxu0 0.0
        %277 = vmatpush1.msra.mxu0 0.0
        %278 = vmatprep.subr.mxu0 0.0
        %279 = vmatpush1.msra.mxu0 0.0
        %280 = vmatprep.subr.mxu0 0.0
        %281 = vmatpush1.msra.mxu0 0.0
        %282 = vmatprep.subr.mxu0 0.0
        %283 = vmatpush1.msra.mxu0 0.0
        %284 = vmatprep.subr.mxu0 0.0
        %285 = vmatpush1.msra.mxu0 0.0
        %286 = vmatprep.subr.mxu0 0.0
        %287 = vmatpush1.msra.mxu0 0.0
        %288 = vmatprep.subr.mxu0 0.0
        %289 = vmatpush1.msra.mxu0 0.0
        %290 = vmatprep.subr.mxu0 0.0
        %291 = vmatpush1.msra.mxu0 0.0
        %292 = vmatprep.subr.mxu0 0.0
        %293 = vmatpush1.msra.mxu0 0.0
        %294 = vmatprep.subr.mxu0 0.0
        %295 = vmatpush1.msra.mxu0 0.0
        %296 = vmatprep.subr.mxu0 0.0
        %297 = vmatpush1.msra.mxu0 0.0
        %298 = vmatprep.subr.mxu0 0.0
        %299 = vmatpush1.msra.mxu0 0.0
        %300 = vmatprep.subr.mxu0 0.0
        %301 = vmatpush1.msra.mxu0 0.0
        %302 = vmatprep.subr.mxu0 0.0
        %303 = vmatpush1.msra.mxu0 0.0
        %304 = vmatprep.subr.mxu0 0.0
        %305 = vmatpush1.msra.mxu0 0.0
        %306 = vmatprep.subr.mxu0 0.0
        %307 = vmatpush1.msra.mxu0 0.0
        %308 = vmatprep.mubr.f32.mxu0 0.0
        %v309 = vand.u32 %v226, 4294901760
        %v310 = vsub.f32 %v226, %v309
        %v311 = vand.u32 %v310, 4294901760
        %v312 = vsub.f32 %v310, %v311
        %v313 = vand.u32 %v312, 4294901760
        %314 = vmatmul.mubr.f32.gmra.mrb[0].mxu0 %v313
        %v315 = vpop.f32.mrb[0].mxu0
        %v316 = vadd.f32 0.0, %v315
        %v317 = vpop.f32.mrb[0].mxu0
        %v318 = vadd.f32 0.0, %v317
        %319 = vdwg.mxu0
        %v320 = vand.u32 %v208, 4294901760
        %v321 = vsub.f32 %v208, %v320
        %v322 = vand.u32 %v321, 4294901760
        %v323 = vsub.f32 %v321, %v322
        %v324 = vand.u32 %v323, 4294901760
        %325 = vmatprep.subr.mxu0 %v324
        %v326 = vand.u32 %v207, 4294901760
        %v327 = vsub.f32 %v207, %v326
        %v328 = vand.u32 %v327, 4294901760
        %v329 = vsub.f32 %v327, %v328
        %v330 = vand.u32 %v329, 4294901760
        %331 = vmatpush1.msra.mxu0 %v330
        %v332 = vand.u32 %v210, 4294901760
        %v333 = vsub.f32 %v210, %v332
        %v334 = vand.u32 %v333, 4294901760
        %v335 = vsub.f32 %v333, %v334
        %v336 = vand.u32 %v335, 4294901760
        %337 = vmatprep.subr.mxu0 %v336
        %v338 = vand.u32 %v209, 4294901760
        %v339 = vsub.f32 %v209, %v338
        %v340 = vand.u32 %v339, 4294901760
        %v341 = vsub.f32 %v339, %v340
        %v342 = vand.u32 %v341, 4294901760
        %343 = vmatpush1.msra.mxu0 %v342
        %v344 = vand.u32 %v212, 4294901760
        %v345 = vsub.f32 %v212, %v344
        %v346 = vand.u32 %v345, 4294901760
        %v347 = vsub.f32 %v345, %v346
        %v348 = vand.u32 %v347, 4294901760
        %349 = vmatprep.subr.mxu0 %v348
        %v350 = vand.u32 %v211, 4294901760
        %v351 = vsub.f32 %v211, %v350
        %v352 = vand.u32 %v351, 4294901760
        %v353 = vsub.f32 %v351, %v352
        %v354 = vand.u32 %v353, 4294901760
        %355 = vmatpush1.msra.mxu0 %v354
        %v356 = vand.u32 %v214, 4294901760
        %v357 = vsub.f32 %v214, %v356
        %v358 = vand.u32 %v357, 4294901760
        %v359 = vsub.f32 %v357, %v358
        %v360 = vand.u32 %v359, 4294901760
        %361 = vmatprep.subr.mxu0 %v360
        %v362 = vand.u32 %v213, 4294901760
        %v363 = vsub.f32 %v213, %v362
        %v364 = vand.u32 %v363, 4294901760
        %v365 = vsub.f32 %v363, %v364
        %v366 = vand.u32 %v365, 4294901760
        %367 = vmatpush1.msra.mxu0 %v366
        %v368 = vand.u32 %v216, 4294901760
        %v369 = vsub.f32 %v216, %v368
        %v370 = vand.u32 %v369, 4294901760
        %v371 = vsub.f32 %v369, %v370
        %v372 = vand.u32 %v371, 4294901760
        %373 = vmatprep.subr.mxu0 %v372
        %v374 = vand.u32 %v215, 4294901760
        %v375 = vsub.f32 %v215, %v374
        %v376 = vand.u32 %v375, 4294901760
        %v377 = vsub.f32 %v375, %v376
        %v378 = vand.u32 %v377, 4294901760
        %379 = vmatpush1.msra.mxu0 %v378
        %v380 = vand.u32 %v218, 4294901760
        %v381 = vsub.f32 %v218, %v380
        %v382 = vand.u32 %v381, 4294901760
        %v383 = vsub.f32 %v381, %v382
        %v384 = vand.u32 %v383, 4294901760
        %385 = vmatprep.subr.mxu0 %v384
        %v386 = vand.u32 %v217, 4294901760
        %v387 = vsub.f32 %v217, %v386
        %v388 = vand.u32 %v387, 4294901760
        %v389 = vsub.f32 %v387, %v388
        %v390 = vand.u32 %v389, 4294901760
        %391 = vmatpush1.msra.mxu0 %v390
        %v392 = vand.u32 %v220, 4294901760
        %v393 = vsub.f32 %v220, %v392
        %v394 = vand.u32 %v393, 4294901760
        %v395 = vsub.f32 %v393, %v394
        %v396 = vand.u32 %v395, 4294901760
        %397 = vmatprep.subr.mxu0 %v396
        %v398 = vand.u32 %v219, 4294901760
        %v399 = vsub.f32 %v219, %v398
        %v400 = vand.u32 %v399, 4294901760
        %v401 = vsub.f32 %v399, %v400
        %v402 = vand.u32 %v401, 4294901760
        %403 = vmatpush1.msra.mxu0 %v402
        %v404 = vand.u32 %v222, 4294901760
        %v405 = vsub.f32 %v222, %v404
        %v406 = vand.u32 %v405, 4294901760
        %v407 = vsub.f32 %v405, %v406
        %v408 = vand.u32 %v407, 4294901760
        %409 = vmatprep.subr.mxu0 %v408
        %v410 = vand.u32 %v221, 4294901760
        %v411 = vsub.f32 %v221, %v410
        %v412 = vand.u32 %v411, 4294901760
        %v413 = vsub.f32 %v411, %v412
        %v414 = vand.u32 %v413, 4294901760
        %415 = vmatpush1.msra.mxu0 %v414
        %416 = vmatprep.subr.mxu0 0.0
        %417 = vmatpush1.msra.mxu0 0.0
        %418 = vmatprep.subr.mxu0 0.0
        %419 = vmatpush1.msra.mxu0 0.0
        %420 = vmatprep.subr.mxu0 0.0
        %421 = vmatpush1.msra.mxu0 0.0
        %422 = vmatprep.subr.mxu0 0.0
        %423 = vmatpush1.msra.mxu0 0.0
        %424 = vmatprep.subr.mxu0 0.0
        %425 = vmatpush1.msra.mxu0 0.0
        %426 = vmatprep.subr.mxu0 0.0
        %427 = vmatpush1.msra.mxu0 0.0
        %428 = vmatprep.subr.mxu0 0.0
        %429 = vmatpush1.msra.mxu0 0.0
        %430 = vmatprep.subr.mxu0 0.0
        %431 = vmatpush1.msra.mxu0 0.0
        %432 = vmatprep.subr.mxu0 0.0
        %433 = vmatpush1.msra.mxu0 0.0
        %434 = vmatprep.subr.mxu0 0.0
        %435 = vmatpush1.msra.mxu0 0.0
        %436 = vmatprep.subr.mxu0 0.0
        %437 = vmatpush1.msra.mxu0 0.0
        %438 = vmatprep.subr.mxu0 0.0
        %439 = vmatpush1.msra.mxu0 0.0
        %440 = vmatprep.subr.mxu0 0.0
        %441 = vmatpush1.msra.mxu0 0.0
        %442 = vmatprep.subr.mxu0 0.0
        %443 = vmatpush1.msra.mxu0 0.0
        %444 = vmatprep.subr.mxu0 0.0
        %445 = vmatpush1.msra.mxu0 0.0
        %446 = vmatprep.subr.mxu0 0.0
        %447 = vmatpush1.msra.mxu0 0.0
        %448 = vmatprep.subr.mxu0 0.0
        %449 = vmatpush1.msra.mxu0 0.0
        %450 = vmatprep.subr.mxu0 0.0
        %451 = vmatpush1.msra.mxu0 0.0
        %452 = vmatprep.subr.mxu0 0.0
        %453 = vmatpush1.msra.mxu0 0.0
        %454 = vmatprep.subr.mxu0 0.0
        %455 = vmatpush1.msra.mxu0 0.0
        %456 = vmatprep.subr.mxu0 0.0
        %457 = vmatpush1.msra.mxu0 0.0
        %458 = vmatprep.subr.mxu0 0.0
        %459 = vmatpush1.msra.mxu0 0.0
        %460 = vmatprep.subr.mxu0 0.0
        %461 = vmatpush1.msra.mxu0 0.0
        %462 = vmatprep.subr.mxu0 0.0
        %463 = vmatpush1.msra.mxu0 0.0
        %464 = vmatprep.mubr.f32.mxu0 0.0
        %v465 = vand.u32 %v226, 4294901760
        %466 = vmatmul.mubr.f32.gmra.mrb[0].mxu0 %v465
        %v467 = vpop.f32.mrb[0].mxu0
        %v468 = vadd.f32 %v316, %v467
        %v469 = vpop.f32.mrb[0].mxu0
        %v470 = vadd.f32 %v318, %v469
        %471 = vdwg.mxu0
        %v472 = vand.u32 %v208, 4294901760
        %v473 = vsub.f32 %v208, %v472
        %474 = vmatprep.subr.mxu0 %v473
        %v475 = vand.u32 %v207, 4294901760
        %v476 = vsub.f32 %v207, %v475
        %477 = vmatpush1.msra.mxu0 %v476
        %v478 = vand.u32 %v210, 4294901760
        %v479 = vsub.f32 %v210, %v478
        %480 = vmatprep.subr.mxu0 %v479
        %v481 = vand.u32 %v209, 4294901760
        %v482 = vsub.f32 %v209, %v481
        %483 = vmatpush1.msra.mxu0 %v482
        %v484 = vand.u32 %v212, 4294901760
        %v485 = vsub.f32 %v212, %v484
        %486 = vmatprep.subr.mxu0 %v485
        %v487 = vand.u32 %v211, 4294901760
        %v488 = vsub.f32 %v211, %v487
        %489 = vmatpush1.msra.mxu0 %v488
        %v490 = vand.u32 %v214, 4294901760
        %v491 = vsub.f32 %v214, %v490
        %492 = vmatprep.subr.mxu0 %v491
        %v493 = vand.u32 %v213, 4294901760
        %v494 = vsub.f32 %v213, %v493
        %495 = vmatpush1.msra.mxu0 %v494
        %v496 = vand.u32 %v216, 4294901760
        %v497 = vsub.f32 %v216, %v496
        %498 = vmatprep.subr.mxu0 %v497
        %v499 = vand.u32 %v215, 4294901760
        %v500 = vsub.f32 %v215, %v499
        %501 = vmatpush1.msra.mxu0 %v500
        %v502 = vand.u32 %v218, 4294901760
        %v503 = vsub.f32 %v218, %v502
        %504 = vmatprep.subr.mxu0 %v503
        %v505 = vand.u32 %v217, 4294901760
        %v506 = vsub.f32 %v217, %v505
        %507 = vmatpush1.msra.mxu0 %v506
        %v508 = vand.u32 %v220, 4294901760
        %v509 = vsub.f32 %v220, %v508
        %510 = vmatprep.subr.mxu0 %v509
        %v511 = vand.u32 %v219, 4294901760
        %v512 = vsub.f32 %v219, %v511
        %513 = vmatpush1.msra.mxu0 %v512
        %v514 = vand.u32 %v222, 4294901760
        %v515 = vsub.f32 %v222, %v514
        %516 = vmatprep.subr.mxu0 %v515
        %v517 = vand.u32 %v221, 4294901760
        %v518 = vsub.f32 %v221, %v517
        %519 = vmatpush1.msra.mxu0 %v518
        %520 = vmatprep.subr.mxu0 0.0
        %521 = vmatpush1.msra.mxu0 0.0
        %522 = vmatprep.subr.mxu0 0.0
        %523 = vmatpush1.msra.mxu0 0.0
        %524 = vmatprep.subr.mxu0 0.0
        %525 = vmatpush1.msra.mxu0 0.0
        %526 = vmatprep.subr.mxu0 0.0
        %527 = vmatpush1.msra.mxu0 0.0
        %528 = vmatprep.subr.mxu0 0.0
        %529 = vmatpush1.msra.mxu0 0.0
        %530 = vmatprep.subr.mxu0 0.0
        %531 = vmatpush1.msra.mxu0 0.0
        %532 = vmatprep.subr.mxu0 0.0
        %533 = vmatpush1.msra.mxu0 0.0
        %534 = vmatprep.subr.mxu0 0.0
        %535 = vmatpush1.msra.mxu0 0.0
        %536 = vmatprep.subr.mxu0 0.0
        %537 = vmatpush1.msra.mxu0 0.0
        %538 = vmatprep.subr.mxu0 0.0
        %539 = vmatpush1.msra.mxu0 0.0
        %540 = vmatprep.subr.mxu0 0.0
        %541 = vmatpush1.msra.mxu0 0.0
        %542 = vmatprep.subr.mxu0 0.0
        %543 = vmatpush1.msra.mxu0 0.0
        %544 = vmatprep.subr.mxu0 0.0
        %545 = vmatpush1.msra.mxu0 0.0
        %546 = vmatprep.subr.mxu0 0.0
        %547 = vmatpush1.msra.mxu0 0.0
        %548 = vmatprep.subr.mxu0 0.0
        %549 = vmatpush1.msra.mxu0 0.0
        %550 = vmatprep.subr.mxu0 0.0
        %551 = vmatpush1.msra.mxu0 0.0
        %552 = vmatprep.subr.mxu0 0.0
        %553 = vmatpush1.msra.mxu0 0.0
        %554 = vmatprep.subr.mxu0 0.0
        %555 = vmatpush1.msra.mxu0 0.0
        %556 = vmatprep.subr.mxu0 0.0
        %557 = vmatpush1.msra.mxu0 0.0
        %558 = vmatprep.subr.mxu0 0.0
        %559 = vmatpush1.msra.mxu0 0.0
        %560 = vmatprep.subr.mxu0 0.0
        %561 = vmatpush1.msra.mxu0 0.0
        %562 = vmatprep.subr.mxu0 0.0
        %563 = vmatpush1.msra.mxu0 0.0
        %564 = vmatprep.subr.mxu0 0.0
        %565 = vmatpush1.msra.mxu0 0.0
        %566 = vmatprep.subr.mxu0 0.0
        %567 = vmatpush1.msra.mxu0 0.0
        %568 = vmatprep.mubr.f32.mxu0 0.0
        %v569 = vand.u32 %v226, 4294901760
        %v570 = vsub.f32 %v226, %v569
        %571 = vmatmul.mubr.f32.gmra.mrb[0].mxu0 %v570
        %v572 = vpop.f32.mrb[0].mxu0
        %v573 = vadd.f32 %v468, %v572
        %v574 = vpop.f32.mrb[0].mxu0
        %v575 = vadd.f32 %v470, %v574
        %576 = vdwg.mxu0
        %v577 = vand.u32 %v208, 4294901760
        %578 = vmatprep.subr.mxu0 %v577
        %v579 = vand.u32 %v207, 4294901760
        %580 = vmatpush1.msra.mxu0 %v579
        %v581 = vand.u32 %v210, 4294901760
        %582 = vmatprep.subr.mxu0 %v581
        %v583 = vand.u32 %v209, 4294901760
        %584 = vmatpush1.msra.mxu0 %v583
        %v585 = vand.u32 %v212, 4294901760
        %586 = vmatprep.subr.mxu0 %v585
        %v587 = vand.u32 %v211, 4294901760
        %588 = vmatpush1.msra.mxu0 %v587
        %v589 = vand.u32 %v214, 4294901760
        %590 = vmatprep.subr.mxu0 %v589
        %v591 = vand.u32 %v213, 4294901760
        %592 = vmatpush1.msra.mxu0 %v591
        %v593 = vand.u32 %v216, 4294901760
        %594 = vmatprep.subr.mxu0 %v593
        %v595 = vand.u32 %v215, 4294901760
        %596 = vmatpush1.msra.mxu0 %v595
        %v597 = vand.u32 %v218, 4294901760
        %598 = vmatprep.subr.mxu0 %v597
        %v599 = vand.u32 %v217, 4294901760
        %600 = vmatpush1.msra.mxu0 %v599
        %v601 = vand.u32 %v220, 4294901760
        %602 = vmatprep.subr.mxu0 %v601
        %v603 = vand.u32 %v219, 4294901760
        %604 = vmatpush1.msra.mxu0 %v603
        %v605 = vand.u32 %v222, 4294901760
        %606 = vmatprep.subr.mxu0 %v605
        %v607 = vand.u32 %v221, 4294901760
        %608 = vmatpush1.msra.mxu0 %v607
        %609 = vmatprep.subr.mxu0 0.0
        %610 = vmatpush1.msra.mxu0 0.0
        %611 = vmatprep.subr.mxu0 0.0
        %612 = vmatpush1.msra.mxu0 0.0
        %613 = vmatprep.subr.mxu0 0.0
        %614 = vmatpush1.msra.mxu0 0.0
        %615 = vmatprep.subr.mxu0 0.0
        %616 = vmatpush1.msra.mxu0 0.0
        %617 = vmatprep.subr.mxu0 0.0
        %618 = vmatpush1.msra.mxu0 0.0
        %619 = vmatprep.subr.mxu0 0.0
        %620 = vmatpush1.msra.mxu0 0.0
        %621 = vmatprep.subr.mxu0 0.0
        %622 = vmatpush1.msra.mxu0 0.0
        %623 = vmatprep.subr.mxu0 0.0
        %624 = vmatpush1.msra.mxu0 0.0
        %625 = vmatprep.subr.mxu0 0.0
        %626 = vmatpush1.msra.mxu0 0.0
        %627 = vmatprep.subr.mxu0 0.0
        %628 = vmatpush1.msra.mxu0 0.0
        %629 = vmatprep.subr.mxu0 0.0
        %630 = vmatpush1.msra.mxu0 0.0
        %631 = vmatprep.subr.mxu0 0.0
        %632 = vmatpush1.msra.mxu0 0.0
        %633 = vmatprep.subr.mxu0 0.0
        %634 = vmatpush1.msra.mxu0 0.0
        %635 = vmatprep.subr.mxu0 0.0
        %636 = vmatpush1.msra.mxu0 0.0
        %637 = vmatprep.subr.mxu0 0.0
        %638 = vmatpush1.msra.mxu0 0.0
        %639 = vmatprep.subr.mxu0 0.0
        %640 = vmatpush1.msra.mxu0 0.0
        %641 = vmatprep.subr.mxu0 0.0
        %642 = vmatpush1.msra.mxu0 0.0
        %643 = vmatprep.subr.mxu0 0.0
        %644 = vmatpush1.msra.mxu0 0.0
        %645 = vmatprep.subr.mxu0 0.0
        %646 = vmatpush1.msra.mxu0 0.0
        %647 = vmatprep.subr.mxu0 0.0
        %648 = vmatpush1.msra.mxu0 0.0
        %649 = vmatprep.subr.mxu0 0.0
        %650 = vmatpush1.msra.mxu0 0.0
        %651 = vmatprep.subr.mxu0 0.0
        %652 = vmatpush1.msra.mxu0 0.0
        %653 = vmatprep.subr.mxu0 0.0
        %654 = vmatpush1.msra.mxu0 0.0
        %655 = vmatprep.subr.mxu0 0.0
        %656 = vmatpush1.msra.mxu0 0.0
        %657 = vmatprep.mubr.f32.mxu0 0.0
        %v658 = vand.u32 %v226, 4294901760
        %v659 = vsub.f32 %v226, %v658
        %v660 = vand.u32 %v659, 4294901760
        %661 = vmatmul.mubr.f32.gmra.mrb[0].mxu0 %v660
        %v662 = vpop.f32.mrb[0].mxu0
        %v663 = vadd.f32 %v573, %v662
        %v664 = vpop.f32.mrb[0].mxu0
        %v665 = vadd.f32 %v575, %v664
        %666 = vdwg.mxu0
        %v667 = vand.u32 %v208, 4294901760
        %v668 = vsub.f32 %v208, %v667
        %v669 = vand.u32 %v668, 4294901760
        %670 = vmatprep.subr.mxu0 %v669
        %v671 = vand.u32 %v207, 4294901760
        %v672 = vsub.f32 %v207, %v671
        %v673 = vand.u32 %v672, 4294901760
        %674 = vmatpush1.msra.mxu0 %v673
        %v675 = vand.u32 %v210, 4294901760
        %v676 = vsub.f32 %v210, %v675
        %v677 = vand.u32 %v676, 4294901760
        %678 = vmatprep.subr.mxu0 %v677
        %v679 = vand.u32 %v209, 4294901760
        %v680 = vsub.f32 %v209, %v679
        %v681 = vand.u32 %v680, 4294901760
        %682 = vmatpush1.msra.mxu0 %v681
        %v683 = vand.u32 %v212, 4294901760
        %v684 = vsub.f32 %v212, %v683
        %v685 = vand.u32 %v684, 4294901760
        %686 = vmatprep.subr.mxu0 %v685
        %v687 = vand.u32 %v211, 4294901760
        %v688 = vsub.f32 %v211, %v687
        %v689 = vand.u32 %v688, 4294901760
        %690 = vmatpush1.msra.mxu0 %v689
        %v691 = vand.u32 %v214, 4294901760
        %v692 = vsub.f32 %v214, %v691
        %v693 = vand.u32 %v692, 4294901760
        %694 = vmatprep.subr.mxu0 %v693
        %v695 = vand.u32 %v213, 4294901760
        %v696 = vsub.f32 %v213, %v695
        %v697 = vand.u32 %v696, 4294901760
        %698 = vmatpush1.msra.mxu0 %v697
        %v699 = vand.u32 %v216, 4294901760
        %v700 = vsub.f32 %v216, %v699
        %v701 = vand.u32 %v700, 4294901760
        %702 = vmatprep.subr.mxu0 %v701
        %v703 = vand.u32 %v215, 4294901760
        %v704 = vsub.f32 %v215, %v703
        %v705 = vand.u32 %v704, 4294901760
        %706 = vmatpush1.msra.mxu0 %v705
        %v707 = vand.u32 %v218, 4294901760
        %v708 = vsub.f32 %v218, %v707
        %v709 = vand.u32 %v708, 4294901760
        %710 = vmatprep.subr.mxu0 %v709
        %v711 = vand.u32 %v217, 4294901760
        %v712 = vsub.f32 %v217, %v711
        %v713 = vand.u32 %v712, 4294901760
        %714 = vmatpush1.msra.mxu0 %v713
        %v715 = vand.u32 %v220, 4294901760
        %v716 = vsub.f32 %v220, %v715
        %v717 = vand.u32 %v716, 4294901760
        %718 = vmatprep.subr.mxu0 %v717
        %v719 = vand.u32 %v219, 4294901760
        %v720 = vsub.f32 %v219, %v719
        %v721 = vand.u32 %v720, 4294901760
        %722 = vmatpush1.msra.mxu0 %v721
        %v723 = vand.u32 %v222, 4294901760
        %v724 = vsub.f32 %v222, %v723
        %v725 = vand.u32 %v724, 4294901760
        %726 = vmatprep.subr.mxu0 %v725
        %v727 = vand.u32 %v221, 4294901760
        %v728 = vsub.f32 %v221, %v727
        %v729 = vand.u32 %v728, 4294901760
        %730 = vmatpush1.msra.mxu0 %v729
        %731 = vmatprep.subr.mxu0 0.0
        %732 = vmatpush1.msra.mxu0 0.0
        %733 = vmatprep.subr.mxu0 0.0
        %734 = vmatpush1.msra.mxu0 0.0
        %735 = vmatprep.subr.mxu0 0.0
        %736 = vmatpush1.msra.mxu0 0.0
        %737 = vmatprep.subr.mxu0 0.0
        %738 = vmatpush1.msra.mxu0 0.0
        %739 = vmatprep.subr.mxu0 0.0
        %740 = vmatpush1.msra.mxu0 0.0
        %741 = vmatprep.subr.mxu0 0.0
        %742 = vmatpush1.msra.mxu0 0.0
        %743 = vmatprep.subr.mxu0 0.0
        %744 = vmatpush1.msra.mxu0 0.0
        %745 = vmatprep.subr.mxu0 0.0
        %746 = vmatpush1.msra.mxu0 0.0
        %747 = vmatprep.subr.mxu0 0.0
        %748 = vmatpush1.msra.mxu0 0.0
        %749 = vmatprep.subr.mxu0 0.0
        %750 = vmatpush1.msra.mxu0 0.0
        %751 = vmatprep.subr.mxu0 0.0
        %752 = vmatpush1.msra.mxu0 0.0
        %753 = vmatprep.subr.mxu0 0.0
        %754 = vmatpush1.msra.mxu0 0.0
        %755 = vmatprep.subr.mxu0 0.0
        %756 = vmatpush1.msra.mxu0 0.0
        %757 = vmatprep.subr.mxu0 0.0
        %758 = vmatpush1.msra.mxu0 0.0
        %759 = vmatprep.subr.mxu0 0.0
        %760 = vmatpush1.msra.mxu0 0.0
        %761 = vmatprep.subr.mxu0 0.0
        %762 = vmatpush1.msra.mxu0 0.0
        %763 = vmatprep.subr.mxu0 0.0
        %764 = vmatpush1.msra.mxu0 0.0
        %765 = vmatprep.subr.mxu0 0.0
        %766 = vmatpush1.msra.mxu0 0.0
        %767 = vmatprep.subr.mxu0 0.0
        %768 = vmatpush1.msra.mxu0 0.0
        %769 = vmatprep.subr.mxu0 0.0
        %770 = vmatpush1.msra.mxu0 0.0
        %771 = vmatprep.subr.mxu0 0.0
        %772 = vmatpush1.msra.mxu0 0.0
        %773 = vmatprep.subr.mxu0 0.0
        %774 = vmatpush1.msra.mxu0 0.0
        %775 = vmatprep.subr.mxu0 0.0
        %776 = vmatpush1.msra.mxu0 0.0
        %777 = vmatprep.subr.mxu0 0.0
        %778 = vmatpush1.msra.mxu0 0.0
        %779 = vmatprep.mubr.f32.mxu0 0.0
        %v780 = vand.u32 %v226, 4294901760
        %781 = vmatmul.mubr.f32.gmra.mrb[0].mxu0 %v780
        %v782 = vpop.f32.mrb[0].mxu0
        %v783 = vadd.f32 %v663, %v782
        %v784 = vpop.f32.mrb[0].mxu0
        %v785 = vadd.f32 %v665, %v784
        %786 = vdwg.mxu0
        %v787 = vand.u32 %v208, 4294901760
        %788 = vmatprep.subr.mxu0 %v787
        %v789 = vand.u32 %v207, 4294901760
        %790 = vmatpush1.msra.mxu0 %v789
        %v791 = vand.u32 %v210, 4294901760
        %792 = vmatprep.subr.mxu0 %v791
        %v793 = vand.u32 %v209, 4294901760
        %794 = vmatpush1.msra.mxu0 %v793
        %v795 = vand.u32 %v212, 4294901760
        %796 = vmatprep.subr.mxu0 %v795
        %v797 = vand.u32 %v211, 4294901760
        %798 = vmatpush1.msra.mxu0 %v797
        %v799 = vand.u32 %v214, 4294901760
        %800 = vmatprep.subr.mxu0 %v799
        %v801 = vand.u32 %v213, 4294901760
        %802 = vmatpush1.msra.mxu0 %v801
        %v803 = vand.u32 %v216, 4294901760
        %804 = vmatprep.subr.mxu0 %v803
        %v805 = vand.u32 %v215, 4294901760
        %806 = vmatpush1.msra.mxu0 %v805
        %v807 = vand.u32 %v218, 4294901760
        %808 = vmatprep.subr.mxu0 %v807
        %v809 = vand.u32 %v217, 4294901760
        %810 = vmatpush1.msra.mxu0 %v809
        %v811 = vand.u32 %v220, 4294901760
        %812 = vmatprep.subr.mxu0 %v811
        %v813 = vand.u32 %v219, 4294901760
        %814 = vmatpush1.msra.mxu0 %v813
        %v815 = vand.u32 %v222, 4294901760
        %816 = vmatprep.subr.mxu0 %v815
        %v817 = vand.u32 %v221, 4294901760
        %818 = vmatpush1.msra.mxu0 %v817
        %819 = vmatprep.subr.mxu0 0.0
        %820 = vmatpush1.msra.mxu0 0.0
        %821 = vmatprep.subr.mxu0 0.0
        %822 = vmatpush1.msra.mxu0 0.0
        %823 = vmatprep.subr.mxu0 0.0
        %824 = vmatpush1.msra.mxu0 0.0
        %825 = vmatprep.subr.mxu0 0.0
        %826 = vmatpush1.msra.mxu0 0.0
        %827 = vmatprep.subr.mxu0 0.0
        %828 = vmatpush1.msra.mxu0 0.0
        %829 = vmatprep.subr.mxu0 0.0
        %830 = vmatpush1.msra.mxu0 0.0
        %831 = vmatprep.subr.mxu0 0.0
        %832 = vmatpush1.msra.mxu0 0.0
        %833 = vmatprep.subr.mxu0 0.0
        %834 = vmatpush1.msra.mxu0 0.0
        %835 = vmatprep.subr.mxu0 0.0
        %836 = vmatpush1.msra.mxu0 0.0
        %837 = vmatprep.subr.mxu0 0.0
        %838 = vmatpush1.msra.mxu0 0.0
        %839 = vmatprep.subr.mxu0 0.0
        %840 = vmatpush1.msra.mxu0 0.0
        %841 = vmatprep.subr.mxu0 0.0
        %842 = vmatpush1.msra.mxu0 0.0
        %843 = vmatprep.subr.mxu0 0.0
        %844 = vmatpush1.msra.mxu0 0.0
        %845 = vmatprep.subr.mxu0 0.0
        %846 = vmatpush1.msra.mxu0 0.0
        %847 = vmatprep.subr.mxu0 0.0
        %848 = vmatpush1.msra.mxu0 0.0
        %849 = vmatprep.subr.mxu0 0.0
        %850 = vmatpush1.msra.mxu0 0.0
        %851 = vmatprep.subr.mxu0 0.0
        %852 = vmatpush1.msra.mxu0 0.0
        %853 = vmatprep.subr.mxu0 0.0
        %854 = vmatpush1.msra.mxu0 0.0
        %855 = vmatprep.subr.mxu0 0.0
        %856 = vmatpush1.msra.mxu0 0.0
        %857 = vmatprep.subr.mxu0 0.0
        %858 = vmatpush1.msra.mxu0 0.0
        %859 = vmatprep.subr.mxu0 0.0
        %860 = vmatpush1.msra.mxu0 0.0
        %861 = vmatprep.subr.mxu0 0.0
        %862 = vmatpush1.msra.mxu0 0.0
        %863 = vmatprep.subr.mxu0 0.0
        %864 = vmatpush1.msra.mxu0 0.0
        %865 = vmatprep.subr.mxu0 0.0
        %866 = vmatpush1.msra.mxu0 0.0
        %867 = vmatprep.mubr.f32.mxu0 0.0
        %v868 = vand.u32 %v226, 4294901760
        %869 = vmatmul.mubr.f32.gmra.mrb[0].mxu0 %v868
        %v870 = vpop.f32.mrb[0].mxu0
        %v871 = vadd.f32 %v783, %v870
        %v872 = vpop.f32.mrb[0].mxu0
        %v873 = vadd.f32 %v785, %v872
        %874 = vdwg.mxu0
        %vm875 = vcmask 31744
        %v877 = vsel %vm875, %v206, 0
        %vm879 = vcmask 1043456
        %v881 = vsel %vm879, %v871, 0
        %v884 = vsel %vm879, %v873, 0
        %v886 = vand.u32 %v884, 4294901760
        %887 = vmatprep.subr.mxu0 %v886
        %v888 = vand.u32 %v881, 4294901760
        %889 = vmatpush1.msra.mxu0 %v888
        %890 = vmatprep.subr.mxu0 0.0
        %891 = vmatpush1.msra.mxu0 0.0
        %892 = vmatprep.subr.mxu0 0.0
        %893 = vmatpush1.msra.mxu0 0.0
        %894 = vmatprep.subr.mxu0 0.0
        %895 = vmatpush1.msra.mxu0 0.0
        %896 = vmatprep.subr.mxu0 0.0
        %897 = vmatpush1.msra.mxu0 0.0
        %898 = vmatprep.subr.mxu0 0.0
        %899 = vmatpush1.msra.mxu0 0.0
        %900 = vmatprep.subr.mxu0 0.0
        %901 = vmatpush1.msra.mxu0 0.0
        %902 = vmatprep.subr.mxu0 0.0
        %903 = vmatpush1.msra.mxu0 0.0
        %904 = vmatprep.subr.mxu0 0.0
        %905 = vmatpush1.msra.mxu0 0.0
        %906 = vmatprep.subr.mxu0 0.0
        %907 = vmatpush1.msra.mxu0 0.0
        %908 = vmatprep.subr.mxu0 0.0
        %909 = vmatpush1.msra.mxu0 0.0
        %910 = vmatprep.subr.mxu0 0.0
        %911 = vmatpush1.msra.mxu0 0.0
        %912 = vmatprep.subr.mxu0 0.0
        %913 = vmatpush1.msra.mxu0 0.0
        %914 = vmatprep.subr.mxu0 0.0
        %915 = vmatpush1.msra.mxu0 0.0
        %916 = vmatprep.subr.mxu0 0.0
        %917 = vmatpush1.msra.mxu0 0.0
        %918 = vmatprep.subr.mxu0 0.0
        %919 = vmatpush1.msra.mxu0 0.0
        %920 = vmatprep.subr.mxu0 0.0
        %921 = vmatpush1.msra.mxu0 0.0
        %922 = vmatprep.subr.mxu0 0.0
        %923 = vmatpush1.msra.mxu0 0.0
        %924 = vmatprep.subr.mxu0 0.0
        %925 = vmatpush1.msra.mxu0 0.0
        %926 = vmatprep.subr.mxu0 0.0
        %927 = vmatpush1.msra.mxu0 0.0
        %928 = vmatprep.subr.mxu0 0.0
        %929 = vmatpush1.msra.mxu0 0.0
        %930 = vmatprep.subr.mxu0 0.0
        %931 = vmatpush1.msra.mxu0 0.0
        %932 = vmatprep.subr.mxu0 0.0
        %933 = vmatpush1.msra.mxu0 0.0
        %934 = vmatprep.subr.mxu0 0.0
        %935 = vmatpush1.msra.mxu0 0.0
        %936 = vmatprep.subr.mxu0 0.0
        %937 = vmatpush1.msra.mxu0 0.0
        %938 = vmatprep.subr.mxu0 0.0
        %939 = vmatpush1.msra.mxu0 0.0
        %940 = vmatprep.subr.mxu0 0.0
        %941 = vmatpush1.msra.mxu0 0.0
        %942 = vmatprep.subr.mxu0 0.0
        %943 = vmatpush1.msra.mxu0 0.0
        %944 = vmatprep.subr.mxu0 0.0
        %945 = vmatpush1.msra.mxu0 0.0
        %946 = vmatprep.subr.mxu0 0.0
        %947 = vmatpush1.msra.mxu0 0.0
        %948 = vmatprep.subr.mxu0 0.0
        %949 = vmatpush1.msra.mxu0 0.0
        %950 = vmatprep.subr.mxu0 0.0
        %951 = vmatpush1.msra.mxu0 0.0
        %952 = vmatprep.mubr.f32.mxu0 0.0
        %v953 = vand.u32 %v877, 4294901760
        %v954 = vsub.f32 %v877, %v953
        %v955 = vand.u32 %v954, 4294901760
        %v956 = vsub.f32 %v954, %v955
        %v957 = vand.u32 %v956, 4294901760
        %958 = vmatmul.mubr.f32.gmra.mrb[0].mxu0 %v957
        %v959 = vpop.f32.mrb[0].mxu0
        %v960 = vadd.f32 0.0, %v959
        %v961 = vpop.f32.mrb[0].mxu0
        %v962 = vadd.f32 0.0, %v961
        %963 = vdwg.mxu0
        %v964 = vand.u32 %v884, 4294901760
        %v965 = vsub.f32 %v884, %v964
        %v966 = vand.u32 %v965, 4294901760
        %v967 = vsub.f32 %v965, %v966
        %v968 = vand.u32 %v967, 4294901760
        %969 = vmatprep.subr.mxu0 %v968
        %v970 = vand.u32 %v881, 4294901760
        %v971 = vsub.f32 %v881, %v970
        %v972 = vand.u32 %v971, 4294901760
        %v973 = vsub.f32 %v971, %v972
        %v974 = vand.u32 %v973, 4294901760
        %975 = vmatpush1.msra.mxu0 %v974
        %976 = vmatprep.subr.mxu0 0.0
        %977 = vmatpush1.msra.mxu0 0.0
        %978 = vmatprep.subr.mxu0 0.0
        %979 = vmatpush1.msra.mxu0 0.0
        %980 = vmatprep.subr.mxu0 0.0
        %981 = vmatpush1.msra.mxu0 0.0
        %982 = vmatprep.subr.mxu0 0.0
        %983 = vmatpush1.msra.mxu0 0.0
        %984 = vmatprep.subr.mxu0 0.0
        %985 = vmatpush1.msra.mxu0 0.0
        %986 = vmatprep.subr.mxu0 0.0
        %987 = vmatpush1.msra.mxu0 0.0
        %988 = vmatprep.subr.mxu0 0.0
        %989 = vmatpush1.msra.mxu0 0.0
        %990 = vmatprep.subr.mxu0 0.0
        %991 = vmatpush1.msra.mxu0 0.0
        %992 = vmatprep.subr.mxu0 0.0
        %993 = vmatpush1.msra.mxu0 0.0
        %994 = vmatprep.subr.mxu0 0.0
        %995 = vmatpush1.msra.mxu0 0.0
        %996 = vmatprep.subr.mxu0 0.0
        %997 = vmatpush1.msra.mxu0 0.0
        %998 = vmatprep.subr.mxu0 0.0
        %999 = vmatpush1.msra.mxu0 0.0
        %1000 = vmatprep.subr.mxu0 0.0
        %1001 = vmatpush1.msra.mxu0 0.0
        %1002 = vmatprep.subr.mxu0 0.0
        %1003 = vmatpush1.msra.mxu0 0.0
        %1004 = vmatprep.subr.mxu0 0.0
        %1005 = vmatpush1.msra.mxu0 0.0
        %1006 = vmatprep.subr.mxu0 0.0
        %1007 = vmatpush1.msra.mxu0 0.0
        %1008 = vmatprep.subr.mxu0 0.0
        %1009 = vmatpush1.msra.mxu0 0.0
        %1010 = vmatprep.subr.mxu0 0.0
        %1011 = vmatpush1.msra.mxu0 0.0
        %1012 = vmatprep.subr.mxu0 0.0
        %1013 = vmatpush1.msra.mxu0 0.0
        %1014 = vmatprep.subr.mxu0 0.0
        %1015 = vmatpush1.msra.mxu0 0.0
        %1016 = vmatprep.subr.mxu0 0.0
        %1017 = vmatpush1.msra.mxu0 0.0
        %1018 = vmatprep.subr.mxu0 0.0
        %1019 = vmatpush1.msra.mxu0 0.0
        %1020 = vmatprep.subr.mxu0 0.0
        %1021 = vmatpush1.msra.mxu0 0.0
        %1022 = vmatprep.subr.mxu0 0.0
        %1023 = vmatpush1.msra.mxu0 0.0
        %1024 = vmatprep.subr.mxu0 0.0
        %1025 = vmatpush1.msra.mxu0 0.0
        %1026 = vmatprep.subr.mxu0 0.0
        %1027 = vmatpush1.msra.mxu0 0.0
        %1028 = vmatprep.subr.mxu0 0.0
        %1029 = vmatpush1.msra.mxu0 0.0
        %1030 = vmatprep.subr.mxu0 0.0
        %1031 = vmatpush1.msra.mxu0 0.0
        %1032 = vmatprep.subr.mxu0 0.0
        %1033 = vmatpush1.msra.mxu0 0.0
        %1034 = vmatprep.subr.mxu0 0.0
        %1035 = vmatpush1.msra.mxu0 0.0
        %1036 = vmatprep.subr.mxu0 0.0
        %1037 = vmatpush1.msra.mxu0 0.0
        %1038 = vmatprep.mubr.f32.mxu0 0.0
        %v1039 = vand.u32 %v877, 4294901760
        %1040 = vmatmul.mubr.f32.gmra.mrb[0].mxu0 %v1039
        %v1041 = vpop.f32.mrb[0].mxu0
        %v1042 = vadd.f32 %v960, %v1041
        %v1043 = vpop.f32.mrb[0].mxu0
        %v1044 = vadd.f32 %v962, %v1043
        %1045 = vdwg.mxu0
        %v1046 = vand.u32 %v884, 4294901760
        %v1047 = vsub.f32 %v884, %v1046
        %1048 = vmatprep.subr.mxu0 %v1047
        %v1049 = vand.u32 %v881, 4294901760
        %v1050 = vsub.f32 %v881, %v1049
        %1051 = vmatpush1.msra.mxu0 %v1050
        %1052 = vmatprep.subr.mxu0 0.0
        %1053 = vmatpush1.msra.mxu0 0.0
        %1054 = vmatprep.subr.mxu0 0.0
        %1055 = vmatpush1.msra.mxu0 0.0
        %1056 = vmatprep.subr.mxu0 0.0
        %1057 = vmatpush1.msra.mxu0 0.0
        %1058 = vmatprep.subr.mxu0 0.0
        %1059 = vmatpush1.msra.mxu0 0.0
        %1060 = vmatprep.subr.mxu0 0.0
        %1061 = vmatpush1.msra.mxu0 0.0
        %1062 = vmatprep.subr.mxu0 0.0
        %1063 = vmatpush1.msra.mxu0 0.0
        %1064 = vmatprep.subr.mxu0 0.0
        %1065 = vmatpush1.msra.mxu0 0.0
        %1066 = vmatprep.subr.mxu0 0.0
        %1067 = vmatpush1.msra.mxu0 0.0
        %1068 = vmatprep.subr.mxu0 0.0
        %1069 = vmatpush1.msra.mxu0 0.0
        %1070 = vmatprep.subr.mxu0 0.0
        %1071 = vmatpush1.msra.mxu0 0.0
        %1072 = vmatprep.subr.mxu0 0.0
        %1073 = vmatpush1.msra.mxu0 0.0
        %1074 = vmatprep.subr.mxu0 0.0
        %1075 = vmatpush1.msra.mxu0 0.0
        %1076 = vmatprep.subr.mxu0 0.0
        %1077 = vmatpush1.msra.mxu0 0.0
        %1078 = vmatprep.subr.mxu0 0.0
        %1079 = vmatpush1.msra.mxu0 0.0
        %1080 = vmatprep.subr.mxu0 0.0
        %1081 = vmatpush1.msra.mxu0 0.0
        %1082 = vmatprep.subr.mxu0 0.0
        %1083 = vmatpush1.msra.mxu0 0.0
        %1084 = vmatprep.subr.mxu0 0.0
        %1085 = vmatpush1.msra.mxu0 0.0
        %1086 = vmatprep.subr.mxu0 0.0
        %1087 = vmatpush1.msra.mxu0 0.0
        %1088 = vmatprep.subr.mxu0 0.0
        %1089 = vmatpush1.msra.mxu0 0.0
        %1090 = vmatprep.subr.mxu0 0.0
        %1091 = vmatpush1.msra.mxu0 0.0
        %1092 = vmatprep.subr.mxu0 0.0
        %1093 = vmatpush1.msra.mxu0 0.0
        %1094 = vmatprep.subr.mxu0 0.0
        %1095 = vmatpush1.msra.mxu0 0.0
        %1096 = vmatprep.subr.mxu0 0.0
        %1097 = vmatpush1.msra.mxu0 0.0
        %1098 = vmatprep.subr.mxu0 0.0
        %1099 = vmatpush1.msra.mxu0 0.0
        %1100 = vmatprep.subr.mxu0 0.0
        %1101 = vmatpush1.msra.mxu0 0.0
        %1102 = vmatprep.subr.mxu0 0.0
        %1103 = vmatpush1.msra.mxu0 0.0
        %1104 = vmatprep.subr.mxu0 0.0
        %1105 = vmatpush1.msra.mxu0 0.0
        %1106 = vmatprep.subr.mxu0 0.0
        %1107 = vmatpush1.msra.mxu0 0.0
        %1108 = vmatprep.subr.mxu0 0.0
        %1109 = vmatpush1.msra.mxu0 0.0
        %1110 = vmatprep.subr.mxu0 0.0
        %1111 = vmatpush1.msra.mxu0 0.0
        %1112 = vmatprep.subr.mxu0 0.0
        %1113 = vmatpush1.msra.mxu0 0.0
        %1114 = vmatprep.mubr.f32.mxu0 0.0
        %v1115 = vand.u32 %v877, 4294901760
        %v1116 = vsub.f32 %v877, %v1115
        %1117 = vmatmul.mubr.f32.gmra.mrb[0].mxu0 %v1116
        %v1118 = vpop.f32.mrb[0].mxu0
        %v1119 = vadd.f32 %v1042, %v1118
        %v1120 = vpop.f32.mrb[0].mxu0
        %v1121 = vadd.f32 %v1044, %v1120
        %1122 = vdwg.mxu0
        %v1123 = vand.u32 %v884, 4294901760
        %1124 = vmatprep.subr.mxu0 %v1123
        %v1125 = vand.u32 %v881, 4294901760
        %1126 = vmatpush1.msra.mxu0 %v1125
        %1127 = vmatprep.subr.mxu0 0.0
        %1128 = vmatpush1.msra.mxu0 0.0
        %1129 = vmatprep.subr.mxu0 0.0
        %1130 = vmatpush1.msra.mxu0 0.0
        %1131 = vmatprep.subr.mxu0 0.0
        %1132 = vmatpush1.msra.mxu0 0.0
        %1133 = vmatprep.subr.mxu0 0.0
        %1134 = vmatpush1.msra.mxu0 0.0
        %1135 = vmatprep.subr.mxu0 0.0
        %1136 = vmatpush1.msra.mxu0 0.0
        %1137 = vmatprep.subr.mxu0 0.0
        %1138 = vmatpush1.msra.mxu0 0.0
        %1139 = vmatprep.subr.mxu0 0.0
        %1140 = vmatpush1.msra.mxu0 0.0
        %1141 = vmatprep.subr.mxu0 0.0
        %1142 = vmatpush1.msra.mxu0 0.0
        %1143 = vmatprep.subr.mxu0 0.0
        %1144 = vmatpush1.msra.mxu0 0.0
        %1145 = vmatprep.subr.mxu0 0.0
        %1146 = vmatpush1.msra.mxu0 0.0
        %1147 = vmatprep.subr.mxu0 0.0
        %1148 = vmatpush1.msra.mxu0 0.0
        %1149 = vmatprep.subr.mxu0 0.0
        %1150 = vmatpush1.msra.mxu0 0.0
        %1151 = vmatprep.subr.mxu0 0.0
        %1152 = vmatpush1.msra.mxu0 0.0
        %1153 = vmatprep.subr.mxu0 0.0
        %1154 = vmatpush1.msra.mxu0 0.0
        %1155 = vmatprep.subr.mxu0 0.0
        %1156 = vmatpush1.msra.mxu0 0.0
        %1157 = vmatprep.subr.mxu0 0.0
        %1158 = vmatpush1.msra.mxu0 0.0
        %1159 = vmatprep.subr.mxu0 0.0
        %1160 = vmatpush1.msra.mxu0 0.0
        %1161 = vmatprep.subr.mxu0 0.0
        %1162 = vmatpush1.msra.mxu0 0.0
        %1163 = vmatprep.subr.mxu0 0.0
        %1164 = vmatpush1.msra.mxu0 0.0
        %1165 = vmatprep.subr.mxu0 0.0
        %1166 = vmatpush1.msra.mxu0 0.0
        %1167 = vmatprep.subr.mxu0 0.0
        %1168 = vmatpush1.msra.mxu0 0.0
        %1169 = vmatprep.subr.mxu0 0.0
        %1170 = vmatpush1.msra.mxu0 0.0
        %1171 = vmatprep.subr.mxu0 0.0
        %1172 = vmatpush1.msra.mxu0 0.0
        %1173 = vmatprep.subr.mxu0 0.0
        %1174 = vmatpush1.msra.mxu0 0.0
        %1175 = vmatprep.subr.mxu0 0.0
        %1176 = vmatpush1.msra.mxu0 0.0
        %1177 = vmatprep.subr.mxu0 0.0
        %1178 = vmatpush1.msra.mxu0 0.0
        %1179 = vmatprep.subr.mxu0 0.0
        %1180 = vmatpush1.msra.mxu0 0.0
        %1181 = vmatprep.subr.mxu0 0.0
        %1182 = vmatpush1.msra.mxu0 0.0
        %1183 = vmatprep.subr.mxu0 0.0
        %1184 = vmatpush1.msra.mxu0 0.0
        %1185 = vmatprep.subr.mxu0 0.0
        %1186 = vmatpush1.msra.mxu0 0.0
        %1187 = vmatprep.subr.mxu0 0.0
        %1188 = vmatpush1.msra.mxu0 0.0
        %1189 = vmatprep.mubr.f32.mxu0 0.0
        %v1190 = vand.u32 %v877, 4294901760
        %v1191 = vsub.f32 %v877, %v1190
        %v1192 = vand.u32 %v1191, 4294901760
        %1193 = vmatmul.mubr.f32.gmra.mrb[0].mxu0 %v1192
        %v1194 = vpop.f32.mrb[0].mxu0
        %v1195 = vadd.f32 %v1119, %v1194
        %v1196 = vpop.f32.mrb[0].mxu0
        %v1197 = vadd.f32 %v1121, %v1196
        %1198 = vdwg.mxu0
        %v1199 = vand.u32 %v884, 4294901760
        %v1200 = vsub.f32 %v884, %v1199
        %v1201 = vand.u32 %v1200, 4294901760
        %1202 = vmatprep.subr.mxu0 %v1201
        %v1203 = vand.u32 %v881, 4294901760
        %v1204 = vsub.f32 %v881, %v1203
        %v1205 = vand.u32 %v1204, 4294901760
        %1206 = vmatpush1.msra.mxu0 %v1205
        %1207 = vmatprep.subr.mxu0 0.0
        %1208 = vmatpush1.msra.mxu0 0.0
        %1209 = vmatprep.subr.mxu0 0.0
        %1210 = vmatpush1.msra.mxu0 0.0
        %1211 = vmatprep.subr.mxu0 0.0
        %1212 = vmatpush1.msra.mxu0 0.0
        %1213 = vmatprep.subr.mxu0 0.0
        %1214 = vmatpush1.msra.mxu0 0.0
        %1215 = vmatprep.subr.mxu0 0.0
        %1216 = vmatpush1.msra.mxu0 0.0
        %1217 = vmatprep.subr.mxu0 0.0
        %1218 = vmatpush1.msra.mxu0 0.0
        %1219 = vmatprep.subr.mxu0 0.0
        %1220 = vmatpush1.msra.mxu0 0.0
        %1221 = vmatprep.subr.mxu0 0.0
        %1222 = vmatpush1.msra.mxu0 0.0
        %1223 = vmatprep.subr.mxu0 0.0
        %1224 = vmatpush1.msra.mxu0 0.0
        %1225 = vmatprep.subr.mxu0 0.0
        %1226 = vmatpush1.msra.mxu0 0.0
        %1227 = vmatprep.subr.mxu0 0.0
        %1228 = vmatpush1.msra.mxu0 0.0
        %1229 = vmatprep.subr.mxu0 0.0
        %1230 = vmatpush1.msra.mxu0 0.0
        %1231 = vmatprep.subr.mxu0 0.0
        %1232 = vmatpush1.msra.mxu0 0.0
        %1233 = vmatprep.subr.mxu0 0.0
        %1234 = vmatpush1.msra.mxu0 0.0
        %1235 = vmatprep.subr.mxu0 0.0
        %1236 = vmatpush1.msra.mxu0 0.0
        %1237 = vmatprep.subr.mxu0 0.0
        %1238 = vmatpush1.msra.mxu0 0.0
        %1239 = vmatprep.subr.mxu0 0.0
        %1240 = vmatpush1.msra.mxu0 0.0
        %1241 = vmatprep.subr.mxu0 0.0
        %1242 = vmatpush1.msra.mxu0 0.0
        %1243 = vmatprep.subr.mxu0 0.0
        %1244 = vmatpush1.msra.mxu0 0.0
        %1245 = vmatprep.subr.mxu0 0.0
        %1246 = vmatpush1.msra.mxu0 0.0
        %1247 = vmatprep.subr.mxu0 0.0
        %1248 = vmatpush1.msra.mxu0 0.0
        %1249 = vmatprep.subr.mxu0 0.0
        %1250 = vmatpush1.msra.mxu0 0.0
        %1251 = vmatprep.subr.mxu0 0.0
        %1252 = vmatpush1.msra.mxu0 0.0
        %1253 = vmatprep.subr.mxu0 0.0
        %1254 = vmatpush1.msra.mxu0 0.0
        %1255 = vmatprep.subr.mxu0 0.0
        %1256 = vmatpush1.msra.mxu0 0.0
        %1257 = vmatprep.subr.mxu0 0.0
        %1258 = vmatpush1.msra.mxu0 0.0
        %1259 = vmatprep.subr.mxu0 0.0
        %1260 = vmatpush1.msra.mxu0 0.0
        %1261 = vmatprep.subr.mxu0 0.0
        %1262 = vmatpush1.msra.mxu0 0.0
        %1263 = vmatprep.subr.mxu0 0.0
        %1264 = vmatpush1.msra.mxu0 0.0
        %1265 = vmatprep.subr.mxu0 0.0
        %1266 = vmatpush1.msra.mxu0 0.0
        %1267 = vmatprep.subr.mxu0 0.0
        %1268 = vmatpush1.msra.mxu0 0.0
        %1269 = vmatprep.mubr.f32.mxu0 0.0
        %v1270 = vand.u32 %v877, 4294901760
        %1271 = vmatmul.mubr.f32.gmra.mrb[0].mxu0 %v1270
        %v1272 = vpop.f32.mrb[0].mxu0
        %v1273 = vadd.f32 %v1195, %v1272
        %v1274 = vpop.f32.mrb[0].mxu0
        %v1275 = vadd.f32 %v1197, %v1274
        %1276 = vdwg.mxu0
        %v1277 = vand.u32 %v884, 4294901760
        %1278 = vmatprep.subr.mxu0 %v1277
        %v1279 = vand.u32 %v881, 4294901760
        %1280 = vmatpush1.msra.mxu0 %v1279
        %1281 = vmatprep.subr.mxu0 0.0
        %1282 = vmatpush1.msra.mxu0 0.0
        %1283 = vmatprep.subr.mxu0 0.0
        %1284 = vmatpush1.msra.mxu0 0.0
        %1285 = vmatprep.subr.mxu0 0.0
        %1286 = vmatpush1.msra.mxu0 0.0
        %1287 = vmatprep.subr.mxu0 0.0
        %1288 = vmatpush1.msra.mxu0 0.0
        %1289 = vmatprep.subr.mxu0 0.0
        %1290 = vmatpush1.msra.mxu0 0.0
        %1291 = vmatprep.subr.mxu0 0.0
        %1292 = vmatpush1.msra.mxu0 0.0
        %1293 = vmatprep.subr.mxu0 0.0
        %1294 = vmatpush1.msra.mxu0 0.0
        %1295 = vmatprep.subr.mxu0 0.0
        %1296 = vmatpush1.msra.mxu0 0.0
        %1297 = vmatprep.subr.mxu0 0.0
        %1298 = vmatpush1.msra.mxu0 0.0
        %1299 = vmatprep.subr.mxu0 0.0
        %1300 = vmatpush1.msra.mxu0 0.0
        %1301 = vmatprep.subr.mxu0 0.0
        %1302 = vmatpush1.msra.mxu0 0.0
        %1303 = vmatprep.subr.mxu0 0.0
        %1304 = vmatpush1.msra.mxu0 0.0
        %1305 = vmatprep.subr.mxu0 0.0
        %1306 = vmatpush1.msra.mxu0 0.0
        %1307 = vmatprep.subr.mxu0 0.0
        %1308 = vmatpush1.msra.mxu0 0.0
        %1309 = vmatprep.subr.mxu0 0.0
        %1310 = vmatpush1.msra.mxu0 0.0
        %1311 = vmatprep.subr.mxu0 0.0
        %1312 = vmatpush1.msra.mxu0 0.0
        %1313 = vmatprep.subr.mxu0 0.0
        %1314 = vmatpush1.msra.mxu0 0.0
        %1315 = vmatprep.subr.mxu0 0.0
        %1316 = vmatpush1.msra.mxu0 0.0
        %1317 = vmatprep.subr.mxu0 0.0
        %1318 = vmatpush1.msra.mxu0 0.0
        %1319 = vmatprep.subr.mxu0 0.0
        %1320 = vmatpush1.msra.mxu0 0.0
        %1321 = vmatprep.subr.mxu0 0.0
        %1322 = vmatpush1.msra.mxu0 0.0
        %1323 = vmatprep.subr.mxu0 0.0
        %1324 = vmatpush1.msra.mxu0 0.0
        %1325 = vmatprep.subr.mxu0 0.0
        %1326 = vmatpush1.msra.mxu0 0.0
        %1327 = vmatprep.subr.mxu0 0.0
        %1328 = vmatpush1.msra.mxu0 0.0
        %1329 = vmatprep.subr.mxu0 0.0
        %1330 = vmatpush1.msra.mxu0 0.0
        %1331 = vmatprep.subr.mxu0 0.0
        %1332 = vmatpush1.msra.mxu0 0.0
        %1333 = vmatprep.subr.mxu0 0.0
        %1334 = vmatpush1.msra.mxu0 0.0
        %1335 = vmatprep.subr.mxu0 0.0
        %1336 = vmatpush1.msra.mxu0 0.0
        %1337 = vmatprep.subr.mxu0 0.0
        %1338 = vmatpush1.msra.mxu0 0.0
        %1339 = vmatprep.subr.mxu0 0.0
        %1340 = vmatpush1.msra.mxu0 0.0
        %1341 = vmatprep.subr.mxu0 0.0
        %1342 = vmatpush1.msra.mxu0 0.0
        %1343 = vmatprep.mubr.f32.mxu0 0.0
        %v1344 = vand.u32 %v877, 4294901760
        %1345 = vmatmul.mubr.f32.gmra.mrb[0].mxu0 %v1344
        %v1346 = vpop.f32.mrb[0].mxu0
        %v1347 = vadd.f32 %v1273, %v1346
        %v1348 = vpop.f32.mrb[0].mxu0
        %v1349 = vadd.f32 %v1275, %v1348
        %1350 = vdwg.mxu0
        %1351 = vst [vmem:[%s203] sm:$0xff] %v1347
        %1352 = vst [vmem:[%s203 + $0x8] sm:$0xff] %v1349
        %s1353 = scalar_lea.vmem %s177, 4 [#allocation2]
        %v1354 = vld [vmem:[%s1353] sm:$0xf]
        %v1356 = vsel %vm224, %v1354, 0
        %v1358 = vand.u32 %v208, 4294901760
        %1359 = vmatprep.subr.mxu0 %v1358
        %v1360 = vand.u32 %v207, 4294901760
        %1361 = vmatpush1.msra.mxu0 %v1360
        %v1362 = vand.u32 %v210, 4294901760
        %1363 = vmatprep.subr.mxu0 %v1362
        %v1364 = vand.u32 %v209, 4294901760
        %1365 = vmatpush1.msra.mxu0 %v1364
        %v1366 = vand.u32 %v212, 4294901760
        %1367 = vmatprep.subr.mxu0 %v1366
        %v1368 = vand.u32 %v211, 4294901760
        %1369 = vmatpush1.msra.mxu0 %v1368
        %v1370 = vand.u32 %v214, 4294901760
        %1371 = vmatprep.subr.mxu0 %v1370
        %v1372 = vand.u32 %v213, 4294901760
        %1373 = vmatpush1.msra.mxu0 %v1372
        %v1374 = vand.u32 %v216, 4294901760
        %1375 = vmatprep.subr.mxu0 %v1374
        %v1376 = vand.u32 %v215, 4294901760
        %1377 = vmatpush1.msra.mxu0 %v1376
        %v1378 = vand.u32 %v218, 4294901760
        %1379 = vmatprep.subr.mxu0 %v1378
        %v1380 = vand.u32 %v217, 4294901760
        %1381 = vmatpush1.msra.mxu0 %v1380
        %v1382 = vand.u32 %v220, 4294901760
        %1383 = vmatprep.subr.mxu0 %v1382
        %v1384 = vand.u32 %v219, 4294901760
        %1385 = vmatpush1.msra.mxu0 %v1384
        %v1386 = vand.u32 %v222, 4294901760
        %1387 = vmatprep.subr.mxu0 %v1386
        %v1388 = vand.u32 %v221, 4294901760
        %1389 = vmatpush1.msra.mxu0 %v1388
        %1390 = vmatprep.subr.mxu0 0.0
        %1391 = vmatpush1.msra.mxu0 0.0
        %1392 = vmatprep.subr.mxu0 0.0
        %1393 = vmatpush1.msra.mxu0 0.0
        %1394 = vmatprep.subr.mxu0 0.0
        %1395 = vmatpush1.msra.mxu0 0.0
        %1396 = vmatprep.subr.mxu0 0.0
        %1397 = vmatpush1.msra.mxu0 0.0
        %1398 = vmatprep.subr.mxu0 0.0
        %1399 = vmatpush1.msra.mxu0 0.0
        %1400 = vmatprep.subr.mxu0 0.0
        %1401 = vmatpush1.msra.mxu0 0.0
        %1402 = vmatprep.subr.mxu0 0.0
        %1403 = vmatpush1.msra.mxu0 0.0
        %1404 = vmatprep.subr.mxu0 0.0
        %1405 = vmatpush1.msra.mxu0 0.0
        %1406 = vmatprep.subr.mxu0 0.0
        %1407 = vmatpush1.msra.mxu0 0.0
        %1408 = vmatprep.subr.mxu0 0.0
        %1409 = vmatpush1.msra.mxu0 0.0
        %1410 = vmatprep.subr.mxu0 0.0
        %1411 = vmatpush1.msra.mxu0 0.0
        %1412 = vmatprep.subr.mxu0 0.0
        %1413 = vmatpush1.msra.mxu0 0.0
        %1414 = vmatprep.subr.mxu0 0.0
        %1415 = vmatpush1.msra.mxu0 0.0
        %1416 = vmatprep.subr.mxu0 0.0
        %1417 = vmatpush1.msra.mxu0 0.0
        %1418 = vmatprep.subr.mxu0 0.0
        %1419 = vmatpush1.msra.mxu0 0.0
        %1420 = vmatprep.subr.mxu0 0.0
        %1421 = vmatpush1.msra.mxu0 0.0
        %1422 = vmatprep.subr.mxu0 0.0
        %1423 = vmatpush1.msra.mxu0 0.0
        %1424 = vmatprep.subr.mxu0 0.0
        %1425 = vmatpush1.msra.mxu0 0.0
        %1426 = vmatprep.subr.mxu0 0.0
        %1427 = vmatpush1.msra.mxu0 0.0
        %1428 = vmatprep.subr.mxu0 0.0
        %1429 = vmatpush1.msra.mxu0 0.0
        %1430 = vmatprep.subr.mxu0 0.0
        %1431 = vmatpush1.msra.mxu0 0.0
        %1432 = vmatprep.subr.mxu0 0.0
        %1433 = vmatpush1.msra.mxu0 0.0
        %1434 = vmatprep.subr.mxu0 0.0
        %1435 = vmatpush1.msra.mxu0 0.0
        %1436 = vmatprep.subr.mxu0 0.0
        %1437 = vmatpush1.msra.mxu0 0.0
        %1438 = vmatprep.mubr.f32.mxu0 0.0
        %v1439 = vand.u32 %v1356, 4294901760
        %v1440 = vsub.f32 %v1356, %v1439
        %v1441 = vand.u32 %v1440, 4294901760
        %v1442 = vsub.f32 %v1440, %v1441
        %v1443 = vand.u32 %v1442, 4294901760
        %1444 = vmatmul.mubr.f32.gmra.mrb[0].mxu0 %v1443
        %v1445 = vpop.f32.mrb[0].mxu0
        %v1446 = vadd.f32 0.0, %v1445
        %v1447 = vpop.f32.mrb[0].mxu0
        %v1448 = vadd.f32 0.0, %v1447
        %1449 = vdwg.mxu0
        %v1450 = vand.u32 %v208, 4294901760
        %v1451 = vsub.f32 %v208, %v1450
        %v1452 = vand.u32 %v1451, 4294901760
        %v1453 = vsub.f32 %v1451, %v1452
        %v1454 = vand.u32 %v1453, 4294901760
        %1455 = vmatprep.subr.mxu0 %v1454
        %v1456 = vand.u32 %v207, 4294901760
        %v1457 = vsub.f32 %v207, %v1456
        %v1458 = vand.u32 %v1457, 4294901760
        %v1459 = vsub.f32 %v1457, %v1458
        %v1460 = vand.u32 %v1459, 4294901760
        %1461 = vmatpush1.msra.mxu0 %v1460
        %v1462 = vand.u32 %v210, 4294901760
        %v1463 = vsub.f32 %v210, %v1462
        %v1464 = vand.u32 %v1463, 4294901760
        %v1465 = vsub.f32 %v1463, %v1464
        %v1466 = vand.u32 %v1465, 4294901760
        %1467 = vmatprep.subr.mxu0 %v1466
        %v1468 = vand.u32 %v209, 4294901760
        %v1469 = vsub.f32 %v209, %v1468
        %v1470 = vand.u32 %v1469, 4294901760
        %v1471 = vsub.f32 %v1469, %v1470
        %v1472 = vand.u32 %v1471, 4294901760
        %1473 = vmatpush1.msra.mxu0 %v1472
        %v1474 = vand.u32 %v212, 4294901760
        %v1475 = vsub.f32 %v212, %v1474
        %v1476 = vand.u32 %v1475, 4294901760
        %v1477 = vsub.f32 %v1475, %v1476
        %v1478 = vand.u32 %v1477, 4294901760
        %1479 = vmatprep.subr.mxu0 %v1478
        %v1480 = vand.u32 %v211, 4294901760
        %v1481 = vsub.f32 %v211, %v1480
        %v1482 = vand.u32 %v1481, 4294901760
        %v1483 = vsub.f32 %v1481, %v1482
        %v1484 = vand.u32 %v1483, 4294901760
        %1485 = vmatpush1.msra.mxu0 %v1484
        %v1486 = vand.u32 %v214, 4294901760
        %v1487 = vsub.f32 %v214, %v1486
        %v1488 = vand.u32 %v1487, 4294901760
        %v1489 = vsub.f32 %v1487, %v1488
        %v1490 = vand.u32 %v1489, 4294901760
        %1491 = vmatprep.subr.mxu0 %v1490
        %v1492 = vand.u32 %v213, 4294901760
        %v1493 = vsub.f32 %v213, %v1492
        %v1494 = vand.u32 %v1493, 4294901760
        %v1495 = vsub.f32 %v1493, %v1494
        %v1496 = vand.u32 %v1495, 4294901760
        %1497 = vmatpush1.msra.mxu0 %v1496
        %v1498 = vand.u32 %v216, 4294901760
        %v1499 = vsub.f32 %v216, %v1498
        %v1500 = vand.u32 %v1499, 4294901760
        %v1501 = vsub.f32 %v1499, %v1500
        %v1502 = vand.u32 %v1501, 4294901760
        %1503 = vmatprep.subr.mxu0 %v1502
        %v1504 = vand.u32 %v215, 4294901760
        %v1505 = vsub.f32 %v215, %v1504
        %v1506 = vand.u32 %v1505, 4294901760
        %v1507 = vsub.f32 %v1505, %v1506
        %v1508 = vand.u32 %v1507, 4294901760
        %1509 = vmatpush1.msra.mxu0 %v1508
        %v1510 = vand.u32 %v218, 4294901760
        %v1511 = vsub.f32 %v218, %v1510
        %v1512 = vand.u32 %v1511, 4294901760
        %v1513 = vsub.f32 %v1511, %v1512
        %v1514 = vand.u32 %v1513, 4294901760
        %1515 = vmatprep.subr.mxu0 %v1514
        %v1516 = vand.u32 %v217, 4294901760
        %v1517 = vsub.f32 %v217, %v1516
        %v1518 = vand.u32 %v1517, 4294901760
        %v1519 = vsub.f32 %v1517, %v1518
        %v1520 = vand.u32 %v1519, 4294901760
        %1521 = vmatpush1.msra.mxu0 %v1520
        %v1522 = vand.u32 %v220, 4294901760
        %v1523 = vsub.f32 %v220, %v1522
        %v1524 = vand.u32 %v1523, 4294901760
        %v1525 = vsub.f32 %v1523, %v1524
        %v1526 = vand.u32 %v1525, 4294901760
        %1527 = vmatprep.subr.mxu0 %v1526
        %v1528 = vand.u32 %v219, 4294901760
        %v1529 = vsub.f32 %v219, %v1528
        %v1530 = vand.u32 %v1529, 4294901760
        %v1531 = vsub.f32 %v1529, %v1530
        %v1532 = vand.u32 %v1531, 4294901760
        %1533 = vmatpush1.msra.mxu0 %v1532
        %v1534 = vand.u32 %v222, 4294901760
        %v1535 = vsub.f32 %v222, %v1534
        %v1536 = vand.u32 %v1535, 4294901760
        %v1537 = vsub.f32 %v1535, %v1536
        %v1538 = vand.u32 %v1537, 4294901760
        %1539 = vmatprep.subr.mxu0 %v1538
        %v1540 = vand.u32 %v221, 4294901760
        %v1541 = vsub.f32 %v221, %v1540
        %v1542 = vand.u32 %v1541, 4294901760
        %v1543 = vsub.f32 %v1541, %v1542
        %v1544 = vand.u32 %v1543, 4294901760
        %1545 = vmatpush1.msra.mxu0 %v1544
        %1546 = vmatprep.subr.mxu0 0.0
        %1547 = vmatpush1.msra.mxu0 0.0
        %1548 = vmatprep.subr.mxu0 0.0
        %1549 = vmatpush1.msra.mxu0 0.0
        %1550 = vmatprep.subr.mxu0 0.0
        %1551 = vmatpush1.msra.mxu0 0.0
        %1552 = vmatprep.subr.mxu0 0.0
        %1553 = vmatpush1.msra.mxu0 0.0
        %1554 = vmatprep.subr.mxu0 0.0
        %1555 = vmatpush1.msra.mxu0 0.0
        %1556 = vmatprep.subr.mxu0 0.0
        %1557 = vmatpush1.msra.mxu0 0.0
        %1558 = vmatprep.subr.mxu0 0.0
        %1559 = vmatpush1.msra.mxu0 0.0
        %1560 = vmatprep.subr.mxu0 0.0
        %1561 = vmatpush1.msra.mxu0 0.0
        %1562 = vmatprep.subr.mxu0 0.0
        %1563 = vmatpush1.msra.mxu0 0.0
        %1564 = vmatprep.subr.mxu0 0.0
        %1565 = vmatpush1.msra.mxu0 0.0
        %1566 = vmatprep.subr.mxu0 0.0
        %1567 = vmatpush1.msra.mxu0 0.0
        %1568 = vmatprep.subr.mxu0 0.0
        %1569 = vmatpush1.msra.mxu0 0.0
        %1570 = vmatprep.subr.mxu0 0.0
        %1571 = vmatpush1.msra.mxu0 0.0
        %1572 = vmatprep.subr.mxu0 0.0
        %1573 = vmatpush1.msra.mxu0 0.0
        %1574 = vmatprep.subr.mxu0 0.0
        %1575 = vmatpush1.msra.mxu0 0.0
        %1576 = vmatprep.subr.mxu0 0.0
        %1577 = vmatpush1.msra.mxu0 0.0
        %1578 = vmatprep.subr.mxu0 0.0
        %1579 = vmatpush1.msra.mxu0 0.0
        %1580 = vmatprep.subr.mxu0 0.0
        %1581 = vmatpush1.msra.mxu0 0.0
        %1582 = vmatprep.subr.mxu0 0.0
        %1583 = vmatpush1.msra.mxu0 0.0
        %1584 = vmatprep.subr.mxu0 0.0
        %1585 = vmatpush1.msra.mxu0 0.0
        %1586 = vmatprep.subr.mxu0 0.0
        %1587 = vmatpush1.msra.mxu0 0.0
        %1588 = vmatprep.subr.mxu0 0.0
        %1589 = vmatpush1.msra.mxu0 0.0
        %1590 = vmatprep.subr.mxu0 0.0
        %1591 = vmatpush1.msra.mxu0 0.0
        %1592 = vmatprep.subr.mxu0 0.0
        %1593 = vmatpush1.msra.mxu0 0.0
        %1594 = vmatprep.mubr.f32.mxu0 0.0
        %v1595 = vand.u32 %v1356, 4294901760
        %1596 = vmatmul.mubr.f32.gmra.mrb[0].mxu0 %v1595
        %v1597 = vpop.f32.mrb[0].mxu0
        %v1598 = vadd.f32 %v1446, %v1597
        %v1599 = vpop.f32.mrb[0].mxu0
        %v1600 = vadd.f32 %v1448, %v1599
        %1601 = vdwg.mxu0
        %v1602 = vand.u32 %v208, 4294901760
        %v1603 = vsub.f32 %v208, %v1602
        %1604 = vmatprep.subr.mxu0 %v1603
        %v1605 = vand.u32 %v207, 4294901760
        %v1606 = vsub.f32 %v207, %v1605
        %1607 = vmatpush1.msra.mxu0 %v1606
        %v1608 = vand.u32 %v210, 4294901760
        %v1609 = vsub.f32 %v210, %v1608
        %1610 = vmatprep.subr.mxu0 %v1609
        %v1611 = vand.u32 %v209, 4294901760
        %v1612 = vsub.f32 %v209, %v1611
        %1613 = vmatpush1.msra.mxu0 %v1612
        %v1614 = vand.u32 %v212, 4294901760
        %v1615 = vsub.f32 %v212, %v1614
        %1616 = vmatprep.subr.mxu0 %v1615
        %v1617 = vand.u32 %v211, 4294901760
        %v1618 = vsub.f32 %v211, %v1617
        %1619 = vmatpush1.msra.mxu0 %v1618
        %v1620 = vand.u32 %v214, 4294901760
        %v1621 = vsub.f32 %v214, %v1620
        %1622 = vmatprep.subr.mxu0 %v1621
        %v1623 = vand.u32 %v213, 4294901760
        %v1624 = vsub.f32 %v213, %v1623
        %1625 = vmatpush1.msra.mxu0 %v1624
        %v1626 = vand.u32 %v216, 4294901760
        %v1627 = vsub.f32 %v216, %v1626
        %1628 = vmatprep.subr.mxu0 %v1627
        %v1629 = vand.u32 %v215, 4294901760
        %v1630 = vsub.f32 %v215, %v1629
        %1631 = vmatpush1.msra.mxu0 %v1630
        %v1632 = vand.u32 %v218, 4294901760
        %v1633 = vsub.f32 %v218, %v1632
        %1634 = vmatprep.subr.mxu0 %v1633
        %v1635 = vand.u32 %v217, 4294901760
        %v1636 = vsub.f32 %v217, %v1635
        %1637 = vmatpush1.msra.mxu0 %v1636
        %v1638 = vand.u32 %v220, 4294901760
        %v1639 = vsub.f32 %v220, %v1638
        %1640 = vmatprep.subr.mxu0 %v1639
        %v1641 = vand.u32 %v219, 4294901760
        %v1642 = vsub.f32 %v219, %v1641
        %1643 = vmatpush1.msra.mxu0 %v1642
        %v1644 = vand.u32 %v222, 4294901760
        %v1645 = vsub.f32 %v222, %v1644
        %1646 = vmatprep.subr.mxu0 %v1645
        %v1647 = vand.u32 %v221, 4294901760
        %v1648 = vsub.f32 %v221, %v1647
        %1649 = vmatpush1.msra.mxu0 %v1648
        %1650 = vmatprep.subr.mxu0 0.0
        %1651 = vmatpush1.msra.mxu0 0.0
        %1652 = vmatprep.subr.mxu0 0.0
        %1653 = vmatpush1.msra.mxu0 0.0
        %1654 = vmatprep.subr.mxu0 0.0
        %1655 = vmatpush1.msra.mxu0 0.0
        %1656 = vmatprep.subr.mxu0 0.0
        %1657 = vmatpush1.msra.mxu0 0.0
        %1658 = vmatprep.subr.mxu0 0.0
        %1659 = vmatpush1.msra.mxu0 0.0
        %1660 = vmatprep.subr.mxu0 0.0
        %1661 = vmatpush1.msra.mxu0 0.0
        %1662 = vmatprep.subr.mxu0 0.0
        %1663 = vmatpush1.msra.mxu0 0.0
        %1664 = vmatprep.subr.mxu0 0.0
        %1665 = vmatpush1.msra.mxu0 0.0
        %1666 = vmatprep.subr.mxu0 0.0
        %1667 = vmatpush1.msra.mxu0 0.0
        %1668 = vmatprep.subr.mxu0 0.0
        %1669 = vmatpush1.msra.mxu0 0.0
        %1670 = vmatprep.subr.mxu0 0.0
        %1671 = vmatpush1.msra.mxu0 0.0
        %1672 = vmatprep.subr.mxu0 0.0
        %1673 = vmatpush1.msra.mxu0 0.0
        %1674 = vmatprep.subr.mxu0 0.0
        %1675 = vmatpush1.msra.mxu0 0.0
        %1676 = vmatprep.subr.mxu0 0.0
        %1677 = vmatpush1.msra.mxu0 0.0
        %1678 = vmatprep.subr.mxu0 0.0
        %1679 = vmatpush1.msra.mxu0 0.0
        %1680 = vmatprep.subr.mxu0 0.0
        %1681 = vmatpush1.msra.mxu0 0.0
        %1682 = vmatprep.subr.mxu0 0.0
        %1683 = vmatpush1.msra.mxu0 0.0
        %1684 = vmatprep.subr.mxu0 0.0
        %1685 = vmatpush1.msra.mxu0 0.0
        %1686 = vmatprep.subr.mxu0 0.0
        %1687 = vmatpush1.msra.mxu0 0.0
        %1688 = vmatprep.subr.mxu0 0.0
        %1689 = vmatpush1.msra.mxu0 0.0
        %1690 = vmatprep.subr.mxu0 0.0
        %1691 = vmatpush1.msra.mxu0 0.0
        %1692 = vmatprep.subr.mxu0 0.0
        %1693 = vmatpush1.msra.mxu0 0.0
        %1694 = vmatprep.subr.mxu0 0.0
        %1695 = vmatpush1.msra.mxu0 0.0
        %1696 = vmatprep.subr.mxu0 0.0
        %1697 = vmatpush1.msra.mxu0 0.0
        %1698 = vmatprep.mubr.f32.mxu0 0.0
        %v1699 = vand.u32 %v1356, 4294901760
        %v1700 = vsub.f32 %v1356, %v1699
        %1701 = vmatmul.mubr.f32.gmra.mrb[0].mxu0 %v1700
        %v1702 = vpop.f32.mrb[0].mxu0
        %v1703 = vadd.f32 %v1598, %v1702
        %v1704 = vpop.f32.mrb[0].mxu0
        %v1705 = vadd.f32 %v1600, %v1704
        %1706 = vdwg.mxu0
        %v1707 = vand.u32 %v208, 4294901760
        %1708 = vmatprep.subr.mxu0 %v1707
        %v1709 = vand.u32 %v207, 4294901760
        %1710 = vmatpush1.msra.mxu0 %v1709
        %v1711 = vand.u32 %v210, 4294901760
        %1712 = vmatprep.subr.mxu0 %v1711
        %v1713 = vand.u32 %v209, 4294901760
        %1714 = vmatpush1.msra.mxu0 %v1713
        %v1715 = vand.u32 %v212, 4294901760
        %1716 = vmatprep.subr.mxu0 %v1715
        %v1717 = vand.u32 %v211, 4294901760
        %1718 = vmatpush1.msra.mxu0 %v1717
        %v1719 = vand.u32 %v214, 4294901760
        %1720 = vmatprep.subr.mxu0 %v1719
        %v1721 = vand.u32 %v213, 4294901760
        %1722 = vmatpush1.msra.mxu0 %v1721
        %v1723 = vand.u32 %v216, 4294901760
        %1724 = vmatprep.subr.mxu0 %v1723
        %v1725 = vand.u32 %v215, 4294901760
        %1726 = vmatpush1.msra.mxu0 %v1725
        %v1727 = vand.u32 %v218, 4294901760
        %1728 = vmatprep.subr.mxu0 %v1727
        %v1729 = vand.u32 %v217, 4294901760
        %1730 = vmatpush1.msra.mxu0 %v1729
        %v1731 = vand.u32 %v220, 4294901760
        %1732 = vmatprep.subr.mxu0 %v1731
        %v1733 = vand.u32 %v219, 4294901760
        %1734 = vmatpush1.msra.mxu0 %v1733
        %v1735 = vand.u32 %v222, 4294901760
        %1736 = vmatprep.subr.mxu0 %v1735
        %v1737 = vand.u32 %v221, 4294901760
        %1738 = vmatpush1.msra.mxu0 %v1737
        %1739 = vmatprep.subr.mxu0 0.0
        %1740 = vmatpush1.msra.mxu0 0.0
        %1741 = vmatprep.subr.mxu0 0.0
        %1742 = vmatpush1.msra.mxu0 0.0
        %1743 = vmatprep.subr.mxu0 0.0
        %1744 = vmatpush1.msra.mxu0 0.0
        %1745 = vmatprep.subr.mxu0 0.0
        %1746 = vmatpush1.msra.mxu0 0.0
        %1747 = vmatprep.subr.mxu0 0.0
        %1748 = vmatpush1.msra.mxu0 0.0
        %1749 = vmatprep.subr.mxu0 0.0
        %1750 = vmatpush1.msra.mxu0 0.0
        %1751 = vmatprep.subr.mxu0 0.0
        %1752 = vmatpush1.msra.mxu0 0.0
        %1753 = vmatprep.subr.mxu0 0.0
        %1754 = vmatpush1.msra.mxu0 0.0
        %1755 = vmatprep.subr.mxu0 0.0
        %1756 = vmatpush1.msra.mxu0 0.0
        %1757 = vmatprep.subr.mxu0 0.0
        %1758 = vmatpush1.msra.mxu0 0.0
        %1759 = vmatprep.subr.mxu0 0.0
        %1760 = vmatpush1.msra.mxu0 0.0
        %1761 = vmatprep.subr.mxu0 0.0
        %1762 = vmatpush1.msra.mxu0 0.0
        %1763 = vmatprep.subr.mxu0 0.0
        %1764 = vmatpush1.msra.mxu0 0.0
        %1765 = vmatprep.subr.mxu0 0.0
        %1766 = vmatpush1.msra.mxu0 0.0
        %1767 = vmatprep.subr.mxu0 0.0
        %1768 = vmatpush1.msra.mxu0 0.0
        %1769 = vmatprep.subr.mxu0 0.0
        %1770 = vmatpush1.msra.mxu0 0.0
        %1771 = vmatprep.subr.mxu0 0.0
        %1772 = vmatpush1.msra.mxu0 0.0
        %1773 = vmatprep.subr.mxu0 0.0
        %1774 = vmatpush1.msra.mxu0 0.0
        %1775 = vmatprep.subr.mxu0 0.0
        %1776 = vmatpush1.msra.mxu0 0.0
        %1777 = vmatprep.subr.mxu0 0.0
        %1778 = vmatpush1.msra.mxu0 0.0
        %1779 = vmatprep.subr.mxu0 0.0
        %1780 = vmatpush1.msra.mxu0 0.0
        %1781 = vmatprep.subr.mxu0 0.0
        %1782 = vmatpush1.msra.mxu0 0.0
        %1783 = vmatprep.subr.mxu0 0.0
        %1784 = vmatpush1.msra.mxu0 0.0
        %1785 = vmatprep.subr.mxu0 0.0
        %1786 = vmatpush1.msra.mxu0 0.0
        %1787 = vmatprep.mubr.f32.mxu0 0.0
        %v1788 = vand.u32 %v1356, 4294901760
        %v1789 = vsub.f32 %v1356, %v1788
        %v1790 = vand.u32 %v1789, 4294901760
        %1791 = vmatmul.mubr.f32.gmra.mrb[0].mxu0 %v1790
        %v1792 = vpop.f32.mrb[0].mxu0
        %v1793 = vadd.f32 %v1703, %v1792
        %v1794 = vpop.f32.mrb[0].mxu0
        %v1795 = vadd.f32 %v1705, %v1794
        %1796 = vdwg.mxu0
        %v1797 = vand.u32 %v208, 4294901760
        %v1798 = vsub.f32 %v208, %v1797
        %v1799 = vand.u32 %v1798, 4294901760
        %1800 = vmatprep.subr.mxu0 %v1799
        %v1801 = vand.u32 %v207, 4294901760
        %v1802 = vsub.f32 %v207, %v1801
        %v1803 = vand.u32 %v1802, 4294901760
        %1804 = vmatpush1.msra.mxu0 %v1803
        %v1805 = vand.u32 %v210, 4294901760
        %v1806 = vsub.f32 %v210, %v1805
        %v1807 = vand.u32 %v1806, 4294901760
        %1808 = vmatprep.subr.mxu0 %v1807
        %v1809 = vand.u32 %v209, 4294901760
        %v1810 = vsub.f32 %v209, %v1809
        %v1811 = vand.u32 %v1810, 4294901760
        %1812 = vmatpush1.msra.mxu0 %v1811
        %v1813 = vand.u32 %v212, 4294901760
        %v1814 = vsub.f32 %v212, %v1813
        %v1815 = vand.u32 %v1814, 4294901760
        %1816 = vmatprep.subr.mxu0 %v1815
        %v1817 = vand.u32 %v211, 4294901760
        %v1818 = vsub.f32 %v211, %v1817
        %v1819 = vand.u32 %v1818, 4294901760
        %1820 = vmatpush1.msra.mxu0 %v1819
        %v1821 = vand.u32 %v214, 4294901760
        %v1822 = vsub.f32 %v214, %v1821
        %v1823 = vand.u32 %v1822, 4294901760
        %1824 = vmatprep.subr.mxu0 %v1823
        %v1825 = vand.u32 %v213, 4294901760
        %v1826 = vsub.f32 %v213, %v1825
        %v1827 = vand.u32 %v1826, 4294901760
        %1828 = vmatpush1.msra.mxu0 %v1827
        %v1829 = vand.u32 %v216, 4294901760
        %v1830 = vsub.f32 %v216, %v1829
        %v1831 = vand.u32 %v1830, 4294901760
        %1832 = vmatprep.subr.mxu0 %v1831
        %v1833 = vand.u32 %v215, 4294901760
        %v1834 = vsub.f32 %v215, %v1833
        %v1835 = vand.u32 %v1834, 4294901760
        %1836 = vmatpush1.msra.mxu0 %v1835
        %v1837 = vand.u32 %v218, 4294901760
        %v1838 = vsub.f32 %v218, %v1837
        %v1839 = vand.u32 %v1838, 4294901760
        %1840 = vmatprep.subr.mxu0 %v1839
        %v1841 = vand.u32 %v217, 4294901760
        %v1842 = vsub.f32 %v217, %v1841
        %v1843 = vand.u32 %v1842, 4294901760
        %1844 = vmatpush1.msra.mxu0 %v1843
        %v1845 = vand.u32 %v220, 4294901760
        %v1846 = vsub.f32 %v220, %v1845
        %v1847 = vand.u32 %v1846, 4294901760
        %1848 = vmatprep.subr.mxu0 %v1847
        %v1849 = vand.u32 %v219, 4294901760
        %v1850 = vsub.f32 %v219, %v1849
        %v1851 = vand.u32 %v1850, 4294901760
        %1852 = vmatpush1.msra.mxu0 %v1851
        %v1853 = vand.u32 %v222, 4294901760
        %v1854 = vsub.f32 %v222, %v1853
        %v1855 = vand.u32 %v1854, 4294901760
        %1856 = vmatprep.subr.mxu0 %v1855
        %v1857 = vand.u32 %v221, 4294901760
        %v1858 = vsub.f32 %v221, %v1857
        %v1859 = vand.u32 %v1858, 4294901760
        %1860 = vmatpush1.msra.mxu0 %v1859
        %1861 = vmatprep.subr.mxu0 0.0
        %1862 = vmatpush1.msra.mxu0 0.0
        %1863 = vmatprep.subr.mxu0 0.0
        %1864 = vmatpush1.msra.mxu0 0.0
        %1865 = vmatprep.subr.mxu0 0.0
        %1866 = vmatpush1.msra.mxu0 0.0
        %1867 = vmatprep.subr.mxu0 0.0
        %1868 = vmatpush1.msra.mxu0 0.0
        %1869 = vmatprep.subr.mxu0 0.0
        %1870 = vmatpush1.msra.mxu0 0.0
        %1871 = vmatprep.subr.mxu0 0.0
        %1872 = vmatpush1.msra.mxu0 0.0
        %1873 = vmatprep.subr.mxu0 0.0
        %1874 = vmatpush1.msra.mxu0 0.0
        %1875 = vmatprep.subr.mxu0 0.0
        %1876 = vmatpush1.msra.mxu0 0.0
        %1877 = vmatprep.subr.mxu0 0.0
        %1878 = vmatpush1.msra.mxu0 0.0
        %1879 = vmatprep.subr.mxu0 0.0
        %1880 = vmatpush1.msra.mxu0 0.0
        %1881 = vmatprep.subr.mxu0 0.0
        %1882 = vmatpush1.msra.mxu0 0.0
        %1883 = vmatprep.subr.mxu0 0.0
        %1884 = vmatpush1.msra.mxu0 0.0
        %1885 = vmatprep.subr.mxu0 0.0
        %1886 = vmatpush1.msra.mxu0 0.0
        %1887 = vmatprep.subr.mxu0 0.0
        %1888 = vmatpush1.msra.mxu0 0.0
        %1889 = vmatprep.subr.mxu0 0.0
        %1890 = vmatpush1.msra.mxu0 0.0
        %1891 = vmatprep.subr.mxu0 0.0
        %1892 = vmatpush1.msra.mxu0 0.0
        %1893 = vmatprep.subr.mxu0 0.0
        %1894 = vmatpush1.msra.mxu0 0.0
        %1895 = vmatprep.subr.mxu0 0.0
        %1896 = vmatpush1.msra.mxu0 0.0
        %1897 = vmatprep.subr.mxu0 0.0
        %1898 = vmatpush1.msra.mxu0 0.0
        %1899 = vmatprep.subr.mxu0 0.0
        %1900 = vmatpush1.msra.mxu0 0.0
        %1901 = vmatprep.subr.mxu0 0.0
        %1902 = vmatpush1.msra.mxu0 0.0
        %1903 = vmatprep.subr.mxu0 0.0
        %1904 = vmatpush1.msra.mxu0 0.0
        %1905 = vmatprep.subr.mxu0 0.0
        %1906 = vmatpush1.msra.mxu0 0.0
        %1907 = vmatprep.subr.mxu0 0.0
        %1908 = vmatpush1.msra.mxu0 0.0
        %1909 = vmatprep.mubr.f32.mxu0 0.0
        %v1910 = vand.u32 %v1356, 4294901760
        %1911 = vmatmul.mubr.f32.gmra.mrb[0].mxu0 %v1910
        %v1912 = vpop.f32.mrb[0].mxu0
        %v1913 = vadd.f32 %v1793, %v1912
        %v1914 = vpop.f32.mrb[0].mxu0
        %v1915 = vadd.f32 %v1795, %v1914
        %1916 = vdwg.mxu0
        %v1917 = vand.u32 %v208, 4294901760
        %1918 = vmatprep.subr.mxu0 %v1917
        %v1919 = vand.u32 %v207, 4294901760
        %1920 = vmatpush1.msra.mxu0 %v1919
        %v1921 = vand.u32 %v210, 4294901760
        %1922 = vmatprep.subr.mxu0 %v1921
        %v1923 = vand.u32 %v209, 4294901760
        %1924 = vmatpush1.msra.mxu0 %v1923
        %v1925 = vand.u32 %v212, 4294901760
        %1926 = vmatprep.subr.mxu0 %v1925
        %v1927 = vand.u32 %v211, 4294901760
        %1928 = vmatpush1.msra.mxu0 %v1927
        %v1929 = vand.u32 %v214, 4294901760
        %1930 = vmatprep.subr.mxu0 %v1929
        %v1931 = vand.u32 %v213, 4294901760
        %1932 = vmatpush1.msra.mxu0 %v1931
        %v1933 = vand.u32 %v216, 4294901760
        %1934 = vmatprep.subr.mxu0 %v1933
        %v1935 = vand.u32 %v215, 4294901760
        %1936 = vmatpush1.msra.mxu0 %v1935
        %v1937 = vand.u32 %v218, 4294901760
        %1938 = vmatprep.subr.mxu0 %v1937
        %v1939 = vand.u32 %v217, 4294901760
        %1940 = vmatpush1.msra.mxu0 %v1939
        %v1941 = vand.u32 %v220, 4294901760
        %1942 = vmatprep.subr.mxu0 %v1941
        %v1943 = vand.u32 %v219, 4294901760
        %1944 = vmatpush1.msra.mxu0 %v1943
        %v1945 = vand.u32 %v222, 4294901760
        %1946 = vmatprep.subr.mxu0 %v1945
        %v1947 = vand.u32 %v221, 4294901760
        %1948 = vmatpush1.msra.mxu0 %v1947
        %1949 = vmatprep.subr.mxu0 0.0
        %1950 = vmatpush1.msra.mxu0 0.0
        %1951 = vmatprep.subr.mxu0 0.0
        %1952 = vmatpush1.msra.mxu0 0.0
        %1953 = vmatprep.subr.mxu0 0.0
        %1954 = vmatpush1.msra.mxu0 0.0
        %1955 = vmatprep.subr.mxu0 0.0
        %1956 = vmatpush1.msra.mxu0 0.0
        %1957 = vmatprep.subr.mxu0 0.0
        %1958 = vmatpush1.msra.mxu0 0.0
        %1959 = vmatprep.subr.mxu0 0.0
        %1960 = vmatpush1.msra.mxu0 0.0
        %1961 = vmatprep.subr.mxu0 0.0
        %1962 = vmatpush1.msra.mxu0 0.0
        %1963 = vmatprep.subr.mxu0 0.0
        %1964 = vmatpush1.msra.mxu0 0.0
        %1965 = vmatprep.subr.mxu0 0.0
        %1966 = vmatpush1.msra.mxu0 0.0
        %1967 = vmatprep.subr.mxu0 0.0
        %1968 = vmatpush1.msra.mxu0 0.0
        %1969 = vmatprep.subr.mxu0 0.0
        %1970 = vmatpush1.msra.mxu0 0.0
        %1971 = vmatprep.subr.mxu0 0.0
        %1972 = vmatpush1.msra.mxu0 0.0
        %1973 = vmatprep.subr.mxu0 0.0
        %1974 = vmatpush1.msra.mxu0 0.0
        %1975 = vmatprep.subr.mxu0 0.0
        %1976 = vmatpush1.msra.mxu0 0.0
        %1977 = vmatprep.subr.mxu0 0.0
        %1978 = vmatpush1.msra.mxu0 0.0
        %1979 = vmatprep.subr.mxu0 0.0
        %1980 = vmatpush1.msra.mxu0 0.0
        %1981 = vmatprep.subr.mxu0 0.0
        %1982 = vmatpush1.msra.mxu0 0.0
        %1983 = vmatprep.subr.mxu0 0.0
        %1984 = vmatpush1.msra.mxu0 0.0
        %1985 = vmatprep.subr.mxu0 0.0
        %1986 = vmatpush1.msra.mxu0 0.0
        %1987 = vmatprep.subr.mxu0 0.0
        %1988 = vmatpush1.msra.mxu0 0.0
        %1989 = vmatprep.subr.mxu0 0.0
        %1990 = vmatpush1.msra.mxu0 0.0
        %1991 = vmatprep.subr.mxu0 0.0
        %1992 = vmatpush1.msra.mxu0 0.0
        %1993 = vmatprep.subr.mxu0 0.0
        %1994 = vmatpush1.msra.mxu0 0.0
        %1995 = vmatprep.subr.mxu0 0.0
        %1996 = vmatpush1.msra.mxu0 0.0
        %1997 = vmatprep.mubr.f32.mxu0 0.0
        %v1998 = vand.u32 %v1356, 4294901760
        %1999 = vmatmul.mubr.f32.gmra.mrb[0].mxu0 %v1998
        %v2000 = vpop.f32.mrb[0].mxu0
        %v2001 = vadd.f32 %v1913, %v2000
        %v2002 = vpop.f32.mrb[0].mxu0
        %v2003 = vadd.f32 %v1915, %v2002
        %2004 = vdwg.mxu0
        %v2006 = vsel %vm879, %v2001, 0
        %v2009 = vsel %vm879, %v2003, 0
        %v2011 = vand.u32 %v2009, 4294901760
        %2012 = vmatprep.subr.mxu0 %v2011
        %v2013 = vand.u32 %v2006, 4294901760
        %2014 = vmatpush1.msra.mxu0 %v2013
        %2015 = vmatprep.subr.mxu0 0.0
        %2016 = vmatpush1.msra.mxu0 0.0
        %2017 = vmatprep.subr.mxu0 0.0
        %2018 = vmatpush1.msra.mxu0 0.0
        %2019 = vmatprep.subr.mxu0 0.0
        %2020 = vmatpush1.msra.mxu0 0.0
        %2021 = vmatprep.subr.mxu0 0.0
        %2022 = vmatpush1.msra.mxu0 0.0
        %2023 = vmatprep.subr.mxu0 0.0
        %2024 = vmatpush1.msra.mxu0 0.0
        %2025 = vmatprep.subr.mxu0 0.0
        %2026 = vmatpush1.msra.mxu0 0.0
        %2027 = vmatprep.subr.mxu0 0.0
        %2028 = vmatpush1.msra.mxu0 0.0
        %2029 = vmatprep.subr.mxu0 0.0
        %2030 = vmatpush1.msra.mxu0 0.0
        %2031 = vmatprep.subr.mxu0 0.0
        %2032 = vmatpush1.msra.mxu0 0.0
        %2033 = vmatprep.subr.mxu0 0.0
        %2034 = vmatpush1.msra.mxu0 0.0
        %2035 = vmatprep.subr.mxu0 0.0
        %2036 = vmatpush1.msra.mxu0 0.0
        %2037 = vmatprep.subr.mxu0 0.0
        %2038 = vmatpush1.msra.mxu0 0.0
        %2039 = vmatprep.subr.mxu0 0.0
        %2040 = vmatpush1.msra.mxu0 0.0
        %2041 = vmatprep.subr.mxu0 0.0
        %2042 = vmatpush1.msra.mxu0 0.0
        %2043 = vmatprep.subr.mxu0 0.0
        %2044 = vmatpush1.msra.mxu0 0.0
        %2045 = vmatprep.subr.mxu0 0.0
        %2046 = vmatpush1.msra.mxu0 0.0
        %2047 = vmatprep.subr.mxu0 0.0
        %2048 = vmatpush1.msra.mxu0 0.0
        %2049 = vmatprep.subr.mxu0 0.0
        %2050 = vmatpush1.msra.mxu0 0.0
        %2051 = vmatprep.subr.mxu0 0.0
        %2052 = vmatpush1.msra.mxu0 0.0
        %2053 = vmatprep.subr.mxu0 0.0
        %2054 = vmatpush1.msra.mxu0 0.0
        %2055 = vmatprep.subr.mxu0 0.0
        %2056 = vmatpush1.msra.mxu0 0.0
        %2057 = vmatprep.subr.mxu0 0.0
        %2058 = vmatpush1.msra.mxu0 0.0
        %2059 = vmatprep.subr.mxu0 0.0
        %2060 = vmatpush1.msra.mxu0 0.0
        %2061 = vmatprep.subr.mxu0 0.0
        %2062 = vmatpush1.msra.mxu0 0.0
        %2063 = vmatprep.subr.mxu0 0.0
        %2064 = vmatpush1.msra.mxu0 0.0
        %2065 = vmatprep.subr.mxu0 0.0
        %2066 = vmatpush1.msra.mxu0 0.0
        %2067 = vmatprep.subr.mxu0 0.0
        %2068 = vmatpush1.msra.mxu0 0.0
        %2069 = vmatprep.subr.mxu0 0.0
        %2070 = vmatpush1.msra.mxu0 0.0
        %2071 = vmatprep.subr.mxu0 0.0
        %2072 = vmatpush1.msra.mxu0 0.0
        %2073 = vmatprep.subr.mxu0 0.0
        %2074 = vmatpush1.msra.mxu0 0.0
        %2075 = vmatprep.subr.mxu0 0.0
        %2076 = vmatpush1.msra.mxu0 0.0
        %2077 = vmatprep.mubr.f32.mxu0 0.0
        %v2078 = vand.u32 %v877, 4294901760
        %v2079 = vsub.f32 %v877, %v2078
        %v2080 = vand.u32 %v2079, 4294901760
        %v2081 = vsub.f32 %v2079, %v2080
        %v2082 = vand.u32 %v2081, 4294901760
        %2083 = vmatmul.mubr.f32.gmra.mrb[0].mxu0 %v2082
        %v2084 = vpop.f32.mrb[0].mxu0
        %v2085 = vadd.f32 0.0, %v2084
        %v2086 = vpop.f32.mrb[0].mxu0
        %v2087 = vadd.f32 0.0, %v2086
        %2088 = vdwg.mxu0
        %v2089 = vand.u32 %v2009, 4294901760
        %v2090 = vsub.f32 %v2009, %v2089
        %v2091 = vand.u32 %v2090, 4294901760
        %v2092 = vsub.f32 %v2090, %v2091
        %v2093 = vand.u32 %v2092, 4294901760
        %2094 = vmatprep.subr.mxu0 %v2093
        %v2095 = vand.u32 %v2006, 4294901760
        %v2096 = vsub.f32 %v2006, %v2095
        %v2097 = vand.u32 %v2096, 4294901760
        %v2098 = vsub.f32 %v2096, %v2097
        %v2099 = vand.u32 %v2098, 4294901760
        %2100 = vmatpush1.msra.mxu0 %v2099
        %2101 = vmatprep.subr.mxu0 0.0
        %2102 = vmatpush1.msra.mxu0 0.0
        %2103 = vmatprep.subr.mxu0 0.0
        %2104 = vmatpush1.msra.mxu0 0.0
        %2105 = vmatprep.subr.mxu0 0.0
        %2106 = vmatpush1.msra.mxu0 0.0
        %2107 = vmatprep.subr.mxu0 0.0
        %2108 = vmatpush1.msra.mxu0 0.0
        %2109 = vmatprep.subr.mxu0 0.0
        %2110 = vmatpush1.msra.mxu0 0.0
        %2111 = vmatprep.subr.mxu0 0.0
        %2112 = vmatpush1.msra.mxu0 0.0
        %2113 = vmatprep.subr.mxu0 0.0
        %2114 = vmatpush1.msra.mxu0 0.0
        %2115 = vmatprep.subr.mxu0 0.0
        %2116 = vmatpush1.msra.mxu0 0.0
        %2117 = vmatprep.subr.mxu0 0.0
        %2118 = vmatpush1.msra.mxu0 0.0
        %2119 = vmatprep.subr.mxu0 0.0
        %2120 = vmatpush1.msra.mxu0 0.0
        %2121 = vmatprep.subr.mxu0 0.0
        %2122 = vmatpush1.msra.mxu0 0.0
        %2123 = vmatprep.subr.mxu0 0.0
        %2124 = vmatpush1.msra.mxu0 0.0
        %2125 = vmatprep.subr.mxu0 0.0
        %2126 = vmatpush1.msra.mxu0 0.0
        %2127 = vmatprep.subr.mxu0 0.0
        %2128 = vmatpush1.msra.mxu0 0.0
        %2129 = vmatprep.subr.mxu0 0.0
        %2130 = vmatpush1.msra.mxu0 0.0
        %2131 = vmatprep.subr.mxu0 0.0
        %2132 = vmatpush1.msra.mxu0 0.0
        %2133 = vmatprep.subr.mxu0 0.0
        %2134 = vmatpush1.msra.mxu0 0.0
        %2135 = vmatprep.subr.mxu0 0.0
        %2136 = vmatpush1.msra.mxu0 0.0
        %2137 = vmatprep.subr.mxu0 0.0
        %2138 = vmatpush1.msra.mxu0 0.0
        %2139 = vmatprep.subr.mxu0 0.0
        %2140 = vmatpush1.msra.mxu0 0.0
        %2141 = vmatprep.subr.mxu0 0.0
        %2142 = vmatpush1.msra.mxu0 0.0
        %2143 = vmatprep.subr.mxu0 0.0
        %2144 = vmatpush1.msra.mxu0 0.0
        %2145 = vmatprep.subr.mxu0 0.0
        %2146 = vmatpush1.msra.mxu0 0.0
        %2147 = vmatprep.subr.mxu0 0.0
        %2148 = vmatpush1.msra.mxu0 0.0
        %2149 = vmatprep.subr.mxu0 0.0
        %2150 = vmatpush1.msra.mxu0 0.0
        %2151 = vmatprep.subr.mxu0 0.0
        %2152 = vmatpush1.msra.mxu0 0.0
        %2153 = vmatprep.subr.mxu0 0.0
        %2154 = vmatpush1.msra.mxu0 0.0
        %2155 = vmatprep.subr.mxu0 0.0
        %2156 = vmatpush1.msra.mxu0 0.0
        %2157 = vmatprep.subr.mxu0 0.0
        %2158 = vmatpush1.msra.mxu0 0.0
        %2159 = vmatprep.subr.mxu0 0.0
        %2160 = vmatpush1.msra.mxu0 0.0
        %2161 = vmatprep.subr.mxu0 0.0
        %2162 = vmatpush1.msra.mxu0 0.0
        %2163 = vmatprep.mubr.f32.mxu0 0.0
        %v2164 = vand.u32 %v877, 4294901760
        %2165 = vmatmul.mubr.f32.gmra.mrb[0].mxu0 %v2164
        %v2166 = vpop.f32.mrb[0].mxu0
        %v2167 = vadd.f32 %v2085, %v2166
        %v2168 = vpop.f32.mrb[0].mxu0
        %v2169 = vadd.f32 %v2087, %v2168
        %2170 = vdwg.mxu0
        %v2171 = vand.u32 %v2009, 4294901760
        %v2172 = vsub.f32 %v2009, %v2171
        %2173 = vmatprep.subr.mxu0 %v2172
        %v2174 = vand.u32 %v2006, 4294901760
        %v2175 = vsub.f32 %v2006, %v2174
        %2176 = vmatpush1.msra.mxu0 %v2175
        %2177 = vmatprep.subr.mxu0 0.0
        %2178 = vmatpush1.msra.mxu0 0.0
        %2179 = vmatprep.subr.mxu0 0.0
        %2180 = vmatpush1.msra.mxu0 0.0
        %2181 = vmatprep.subr.mxu0 0.0
        %2182 = vmatpush1.msra.mxu0 0.0
        %2183 = vmatprep.subr.mxu0 0.0
        %2184 = vmatpush1.msra.mxu0 0.0
        %2185 = vmatprep.subr.mxu0 0.0
        %2186 = vmatpush1.msra.mxu0 0.0
        %2187 = vmatprep.subr.mxu0 0.0
        %2188 = vmatpush1.msra.mxu0 0.0
        %2189 = vmatprep.subr.mxu0 0.0
        %2190 = vmatpush1.msra.mxu0 0.0
        %2191 = vmatprep.subr.mxu0 0.0
        %2192 = vmatpush1.msra.mxu0 0.0
        %2193 = vmatprep.subr.mxu0 0.0
        %2194 = vmatpush1.msra.mxu0 0.0
        %2195 = vmatprep.subr.mxu0 0.0
        %2196 = vmatpush1.msra.mxu0 0.0
        %2197 = vmatprep.subr.mxu0 0.0
        %2198 = vmatpush1.msra.mxu0 0.0
        %2199 = vmatprep.subr.mxu0 0.0
        %2200 = vmatpush1.msra.mxu0 0.0
        %2201 = vmatprep.subr.mxu0 0.0
        %2202 = vmatpush1.msra.mxu0 0.0
        %2203 = vmatprep.subr.mxu0 0.0
        %2204 = vmatpush1.msra.mxu0 0.0
        %2205 = vmatprep.subr.mxu0 0.0
        %2206 = vmatpush1.msra.mxu0 0.0
        %2207 = vmatprep.subr.mxu0 0.0
        %2208 = vmatpush1.msra.mxu0 0.0
        %2209 = vmatprep.subr.mxu0 0.0
        %2210 = vmatpush1.msra.mxu0 0.0
        %2211 = vmatprep.subr.mxu0 0.0
        %2212 = vmatpush1.msra.mxu0 0.0
        %2213 = vmatprep.subr.mxu0 0.0
        %2214 = vmatpush1.msra.mxu0 0.0
        %2215 = vmatprep.subr.mxu0 0.0
        %2216 = vmatpush1.msra.mxu0 0.0
        %2217 = vmatprep.subr.mxu0 0.0
        %2218 = vmatpush1.msra.mxu0 0.0
        %2219 = vmatprep.subr.mxu0 0.0
        %2220 = vmatpush1.msra.mxu0 0.0
        %2221 = vmatprep.subr.mxu0 0.0
        %2222 = vmatpush1.msra.mxu0 0.0
        %2223 = vmatprep.subr.mxu0 0.0
        %2224 = vmatpush1.msra.mxu0 0.0
        %2225 = vmatprep.subr.mxu0 0.0
        %2226 = vmatpush1.msra.mxu0 0.0
        %2227 = vmatprep.subr.mxu0 0.0
        %2228 = vmatpush1.msra.mxu0 0.0
        %2229 = vmatprep.subr.mxu0 0.0
        %2230 = vmatpush1.msra.mxu0 0.0
        %2231 = vmatprep.subr.mxu0 0.0
        %2232 = vmatpush1.msra.mxu0 0.0
        %2233 = vmatprep.subr.mxu0 0.0
        %2234 = vmatpush1.msra.mxu0 0.0
        %2235 = vmatprep.subr.mxu0 0.0
        %2236 = vmatpush1.msra.mxu0 0.0
        %2237 = vmatprep.subr.mxu0 0.0
        %2238 = vmatpush1.msra.mxu0 0.0
        %2239 = vmatprep.mubr.f32.mxu0 0.0
        %v2240 = vand.u32 %v877, 4294901760
        %v2241 = vsub.f32 %v877, %v2240
        %2242 = vmatmul.mubr.f32.gmra.mrb[0].mxu0 %v2241
        %v2243 = vpop.f32.mrb[0].mxu0
        %v2244 = vadd.f32 %v2167, %v2243
        %v2245 = vpop.f32.mrb[0].mxu0
        %v2246 = vadd.f32 %v2169, %v2245
        %2247 = vdwg.mxu0
        %v2248 = vand.u32 %v2009, 4294901760
        %2249 = vmatprep.subr.mxu0 %v2248
        %v2250 = vand.u32 %v2006, 4294901760
        %2251 = vmatpush1.msra.mxu0 %v2250
        %2252 = vmatprep.subr.mxu0 0.0
        %2253 = vmatpush1.msra.mxu0 0.0
        %2254 = vmatprep.subr.mxu0 0.0
        %2255 = vmatpush1.msra.mxu0 0.0
        %2256 = vmatprep.subr.mxu0 0.0
        %2257 = vmatpush1.msra.mxu0 0.0
        %2258 = vmatprep.subr.mxu0 0.0
        %2259 = vmatpush1.msra.mxu0 0.0
        %2260 = vmatprep.subr.mxu0 0.0
        %2261 = vmatpush1.msra.mxu0 0.0
        %2262 = vmatprep.subr.mxu0 0.0
        %2263 = vmatpush1.msra.mxu0 0.0
        %2264 = vmatprep.subr.mxu0 0.0
        %2265 = vmatpush1.msra.mxu0 0.0
        %2266 = vmatprep.subr.mxu0 0.0
        %2267 = vmatpush1.msra.mxu0 0.0
        %2268 = vmatprep.subr.mxu0 0.0
        %2269 = vmatpush1.msra.mxu0 0.0
        %2270 = vmatprep.subr.mxu0 0.0
        %2271 = vmatpush1.msra.mxu0 0.0
        %2272 = vmatprep.subr.mxu0 0.0
        %2273 = vmatpush1.msra.mxu0 0.0
        %2274 = vmatprep.subr.mxu0 0.0
        %2275 = vmatpush1.msra.mxu0 0.0
        %2276 = vmatprep.subr.mxu0 0.0
        %2277 = vmatpush1.msra.mxu0 0.0
        %2278 = vmatprep.subr.mxu0 0.0
        %2279 = vmatpush1.msra.mxu0 0.0
        %2280 = vmatprep.subr.mxu0 0.0
        %2281 = vmatpush1.msra.mxu0 0.0
        %2282 = vmatprep.subr.mxu0 0.0
        %2283 = vmatpush1.msra.mxu0 0.0
        %2284 = vmatprep.subr.mxu0 0.0
        %2285 = vmatpush1.msra.mxu0 0.0
        %2286 = vmatprep.subr.mxu0 0.0
        %2287 = vmatpush1.msra.mxu0 0.0
        %2288 = vmatprep.subr.mxu0 0.0
        %2289 = vmatpush1.msra.mxu0 0.0
        %2290 = vmatprep.subr.mxu0 0.0
        %2291 = vmatpush1.msra.mxu0 0.0
        %2292 = vmatprep.subr.mxu0 0.0
        %2293 = vmatpush1.msra.mxu0 0.0
        %2294 = vmatprep.subr.mxu0 0.0
        %2295 = vmatpush1.msra.mxu0 0.0
        %2296 = vmatprep.subr.mxu0 0.0
        %2297 = vmatpush1.msra.mxu0 0.0
        %2298 = vmatprep.subr.mxu0 0.0
        %2299 = vmatpush1.msra.mxu0 0.0
        %2300 = vmatprep.subr.mxu0 0.0
        %2301 = vmatpush1.msra.mxu0 0.0
        %2302 = vmatprep.subr.mxu0 0.0
        %2303 = vmatpush1.msra.mxu0 0.0
        %2304 = vmatprep.subr.mxu0 0.0
        %2305 = vmatpush1.msra.mxu0 0.0
        %2306 = vmatprep.subr.mxu0 0.0
        %2307 = vmatpush1.msra.mxu0 0.0
        %2308 = vmatprep.subr.mxu0 0.0
        %2309 = vmatpush1.msra.mxu0 0.0
        %2310 = vmatprep.subr.mxu0 0.0
        %2311 = vmatpush1.msra.mxu0 0.0
        %2312 = vmatprep.subr.mxu0 0.0
        %2313 = vmatpush1.msra.mxu0 0.0
        %2314 = vmatprep.mubr.f32.mxu0 0.0
        %v2315 = vand.u32 %v877, 4294901760
        %v2316 = vsub.f32 %v877, %v2315
        %v2317 = vand.u32 %v2316, 4294901760
        %2318 = vmatmul.mubr.f32.gmra.mrb[0].mxu0 %v2317
        %v2319 = vpop.f32.mrb[0].mxu0
        %v2320 = vadd.f32 %v2244, %v2319
        %v2321 = vpop.f32.mrb[0].mxu0
        %v2322 = vadd.f32 %v2246, %v2321
        %2323 = vdwg.mxu0
        %v2324 = vand.u32 %v2009, 4294901760
        %v2325 = vsub.f32 %v2009, %v2324
        %v2326 = vand.u32 %v2325, 4294901760
        %2327 = vmatprep.subr.mxu0 %v2326
        %v2328 = vand.u32 %v2006, 4294901760
        %v2329 = vsub.f32 %v2006, %v2328
        %v2330 = vand.u32 %v2329, 4294901760
        %2331 = vmatpush1.msra.mxu0 %v2330
        %2332 = vmatprep.subr.mxu0 0.0
        %2333 = vmatpush1.msra.mxu0 0.0
        %2334 = vmatprep.subr.mxu0 0.0
        %2335 = vmatpush1.msra.mxu0 0.0
        %2336 = vmatprep.subr.mxu0 0.0
        %2337 = vmatpush1.msra.mxu0 0.0
        %2338 = vmatprep.subr.mxu0 0.0
        %2339 = vmatpush1.msra.mxu0 0.0
        %2340 = vmatprep.subr.mxu0 0.0
        %2341 = vmatpush1.msra.mxu0 0.0
        %2342 = vmatprep.subr.mxu0 0.0
        %2343 = vmatpush1.msra.mxu0 0.0
        %2344 = vmatprep.subr.mxu0 0.0
        %2345 = vmatpush1.msra.mxu0 0.0
        %2346 = vmatprep.subr.mxu0 0.0
        %2347 = vmatpush1.msra.mxu0 0.0
        %2348 = vmatprep.subr.mxu0 0.0
        %2349 = vmatpush1.msra.mxu0 0.0
        %2350 = vmatprep.subr.mxu0 0.0
        %2351 = vmatpush1.msra.mxu0 0.0
        %2352 = vmatprep.subr.mxu0 0.0
        %2353 = vmatpush1.msra.mxu0 0.0
        %2354 = vmatprep.subr.mxu0 0.0
        %2355 = vmatpush1.msra.mxu0 0.0
        %2356 = vmatprep.subr.mxu0 0.0
        %2357 = vmatpush1.msra.mxu0 0.0
        %2358 = vmatprep.subr.mxu0 0.0
        %2359 = vmatpush1.msra.mxu0 0.0
        %2360 = vmatprep.subr.mxu0 0.0
        %2361 = vmatpush1.msra.mxu0 0.0
        %2362 = vmatprep.subr.mxu0 0.0
        %2363 = vmatpush1.msra.mxu0 0.0
        %2364 = vmatprep.subr.mxu0 0.0
        %2365 = vmatpush1.msra.mxu0 0.0
        %2366 = vmatprep.subr.mxu0 0.0
        %2367 = vmatpush1.msra.mxu0 0.0
        %2368 = vmatprep.subr.mxu0 0.0
        %2369 = vmatpush1.msra.mxu0 0.0
        %2370 = vmatprep.subr.mxu0 0.0
        %2371 = vmatpush1.msra.mxu0 0.0
        %2372 = vmatprep.subr.mxu0 0.0
        %2373 = vmatpush1.msra.mxu0 0.0
        %2374 = vmatprep.subr.mxu0 0.0
        %2375 = vmatpush1.msra.mxu0 0.0
        %2376 = vmatprep.subr.mxu0 0.0
        %2377 = vmatpush1.msra.mxu0 0.0
        %2378 = vmatprep.subr.mxu0 0.0
        %2379 = vmatpush1.msra.mxu0 0.0
        %2380 = vmatprep.subr.mxu0 0.0
        %2381 = vmatpush1.msra.mxu0 0.0
        %2382 = vmatprep.subr.mxu0 0.0
        %2383 = vmatpush1.msra.mxu0 0.0
        %2384 = vmatprep.subr.mxu0 0.0
        %2385 = vmatpush1.msra.mxu0 0.0
        %2386 = vmatprep.subr.mxu0 0.0
        %2387 = vmatpush1.msra.mxu0 0.0
        %2388 = vmatprep.subr.mxu0 0.0
        %2389 = vmatpush1.msra.mxu0 0.0
        %2390 = vmatprep.subr.mxu0 0.0
        %2391 = vmatpush1.msra.mxu0 0.0
        %2392 = vmatprep.subr.mxu0 0.0
        %2393 = vmatpush1.msra.mxu0 0.0
        %2394 = vmatprep.mubr.f32.mxu0 0.0
        %v2395 = vand.u32 %v877, 4294901760
        %2396 = vmatmul.mubr.f32.gmra.mrb[0].mxu0 %v2395
        %v2397 = vpop.f32.mrb[0].mxu0
        %v2398 = vadd.f32 %v2320, %v2397
        %v2399 = vpop.f32.mrb[0].mxu0
        %v2400 = vadd.f32 %v2322, %v2399
        %2401 = vdwg.mxu0
        %v2402 = vand.u32 %v2009, 4294901760
        %2403 = vmatprep.subr.mxu0 %v2402
        %v2404 = vand.u32 %v2006, 4294901760
        %2405 = vmatpush1.msra.mxu0 %v2404
        %2406 = vmatprep.subr.mxu0 0.0
        %2407 = vmatpush1.msra.mxu0 0.0
        %2408 = vmatprep.subr.mxu0 0.0
        %2409 = vmatpush1.msra.mxu0 0.0
        %2410 = vmatprep.subr.mxu0 0.0
        %2411 = vmatpush1.msra.mxu0 0.0
        %2412 = vmatprep.subr.mxu0 0.0
        %2413 = vmatpush1.msra.mxu0 0.0
        %2414 = vmatprep.subr.mxu0 0.0
        %2415 = vmatpush1.msra.mxu0 0.0
        %2416 = vmatprep.subr.mxu0 0.0
        %2417 = vmatpush1.msra.mxu0 0.0
        %2418 = vmatprep.subr.mxu0 0.0
        %2419 = vmatpush1.msra.mxu0 0.0
        %2420 = vmatprep.subr.mxu0 0.0
        %2421 = vmatpush1.msra.mxu0 0.0
        %2422 = vmatprep.subr.mxu0 0.0
        %2423 = vmatpush1.msra.mxu0 0.0
        %2424 = vmatprep.subr.mxu0 0.0
        %2425 = vmatpush1.msra.mxu0 0.0
        %2426 = vmatprep.subr.mxu0 0.0
        %2427 = vmatpush1.msra.mxu0 0.0
        %2428 = vmatprep.subr.mxu0 0.0
        %2429 = vmatpush1.msra.mxu0 0.0
        %2430 = vmatprep.subr.mxu0 0.0
        %2431 = vmatpush1.msra.mxu0 0.0
        %2432 = vmatprep.subr.mxu0 0.0
        %2433 = vmatpush1.msra.mxu0 0.0
        %2434 = vmatprep.subr.mxu0 0.0
        %2435 = vmatpush1.msra.mxu0 0.0
        %2436 = vmatprep.subr.mxu0 0.0
        %2437 = vmatpush1.msra.mxu0 0.0
        %2438 = vmatprep.subr.mxu0 0.0
        %2439 = vmatpush1.msra.mxu0 0.0
        %2440 = vmatprep.subr.mxu0 0.0
        %2441 = vmatpush1.msra.mxu0 0.0
        %2442 = vmatprep.subr.mxu0 0.0
        %2443 = vmatpush1.msra.mxu0 0.0
        %2444 = vmatprep.subr.mxu0 0.0
        %2445 = vmatpush1.msra.mxu0 0.0
        %2446 = vmatprep.subr.mxu0 0.0
        %2447 = vmatpush1.msra.mxu0 0.0
        %2448 = vmatprep.subr.mxu0 0.0
        %2449 = vmatpush1.msra.mxu0 0.0
        %2450 = vmatprep.subr.mxu0 0.0
        %2451 = vmatpush1.msra.mxu0 0.0
        %2452 = vmatprep.subr.mxu0 0.0
        %2453 = vmatpush1.msra.mxu0 0.0
        %2454 = vmatprep.subr.mxu0 0.0
        %2455 = vmatpush1.msra.mxu0 0.0
        %2456 = vmatprep.subr.mxu0 0.0
        %2457 = vmatpush1.msra.mxu0 0.0
        %2458 = vmatprep.subr.mxu0 0.0
        %2459 = vmatpush1.msra.mxu0 0.0
        %2460 = vmatprep.subr.mxu0 0.0
        %2461 = vmatpush1.msra.mxu0 0.0
        %2462 = vmatprep.subr.mxu0 0.0
        %2463 = vmatpush1.msra.mxu0 0.0
        %2464 = vmatprep.subr.mxu0 0.0
        %2465 = vmatpush1.msra.mxu0 0.0
        %2466 = vmatprep.subr.mxu0 0.0
        %2467 = vmatpush1.msra.mxu0 0.0
        %2468 = vmatprep.mubr.f32.mxu0 0.0
        %v2469 = vand.u32 %v877, 4294901760
        %2470 = vmatmul.mubr.f32.gmra.mrb[0].mxu0 %v2469
        %v2471 = vpop.f32.mrb[0].mxu0
        %v2472 = vadd.f32 %v2398, %v2471
        %v2473 = vpop.f32.mrb[0].mxu0
        %v2474 = vadd.f32 %v2400, %v2473
        %2475 = vdwg.mxu0
        %s2476 = scalar_lea.vmem %s203, 16 [#allocation7]
        %2477 = vst [vmem:[%s2476] sm:$0xff] %v2472
        %2478 = vst [vmem:[%s2476 + $0x8] sm:$0xff] %v2474
        %s2479 = scalar_lea.vmem %s177, 8 [#allocation2]
        %v2480 = vld [vmem:[%s2479] sm:$0xf]
        %v2482 = vsel %vm224, %v2480, 0
        %v2484 = vand.u32 %v208, 4294901760
        %2485 = vmatprep.subr.mxu0 %v2484
        %v2486 = vand.u32 %v207, 4294901760
        %2487 = vmatpush1.msra.mxu0 %v2486
        %v2488 = vand.u32 %v210, 4294901760
        %2489 = vmatprep.subr.mxu0 %v2488
        %v2490 = vand.u32 %v209, 4294901760
        %2491 = vmatpush1.msra.mxu0 %v2490
        %v2492 = vand.u32 %v212, 4294901760
        %2493 = vmatprep.subr.mxu0 %v2492
        %v2494 = vand.u32 %v211, 4294901760
        %2495 = vmatpush1.msra.mxu0 %v2494
        %v2496 = vand.u32 %v214, 4294901760
        %2497 = vmatprep.subr.mxu0 %v2496
        %v2498 = vand.u32 %v213, 4294901760
        %2499 = vmatpush1.msra.mxu0 %v2498
        %v2500 = vand.u32 %v216, 4294901760
        %2501 = vmatprep.subr.mxu0 %v2500
        %v2502 = vand.u32 %v215, 4294901760
        %2503 = vmatpush1.msra.mxu0 %v2502
        %v2504 = vand.u32 %v218, 4294901760
        %2505 = vmatprep.subr.mxu0 %v2504
        %v2506 = vand.u32 %v217, 4294901760
        %2507 = vmatpush1.msra.mxu0 %v2506
        %v2508 = vand.u32 %v220, 4294901760
        %2509 = vmatprep.subr.mxu0 %v2508
        %v2510 = vand.u32 %v219, 4294901760
        %2511 = vmatpush1.msra.mxu0 %v2510
        %v2512 = vand.u32 %v222, 4294901760
        %2513 = vmatprep.subr.mxu0 %v2512
        %v2514 = vand.u32 %v221, 4294901760
        %2515 = vmatpush1.msra.mxu0 %v2514
        %2516 = vmatprep.subr.mxu0 0.0
        %2517 = vmatpush1.msra.mxu0 0.0
        %2518 = vmatprep.subr.mxu0 0.0
        %2519 = vmatpush1.msra.mxu0 0.0
        %2520 = vmatprep.subr.mxu0 0.0
        %2521 = vmatpush1.msra.mxu0 0.0
        %2522 = vmatprep.subr.mxu0 0.0
        %2523 = vmatpush1.msra.mxu0 0.0
        %2524 = vmatprep.subr.mxu0 0.0
        %2525 = vmatpush1.msra.mxu0 0.0
        %2526 = vmatprep.subr.mxu0 0.0
        %2527 = vmatpush1.msra.mxu0 0.0
        %2528 = vmatprep.subr.mxu0 0.0
        %2529 = vmatpush1.msra.mxu0 0.0
        %2530 = vmatprep.subr.mxu0 0.0
        %2531 = vmatpush1.msra.mxu0 0.0
        %2532 = vmatprep.subr.mxu0 0.0
        %2533 = vmatpush1.msra.mxu0 0.0
        %2534 = vmatprep.subr.mxu0 0.0
        %2535 = vmatpush1.msra.mxu0 0.0
        %2536 = vmatprep.subr.mxu0 0.0
        %2537 = vmatpush1.msra.mxu0 0.0
        %2538 = vmatprep.subr.mxu0 0.0
        %2539 = vmatpush1.msra.mxu0 0.0
        %2540 = vmatprep.subr.mxu0 0.0
        %2541 = vmatpush1.msra.mxu0 0.0
        %2542 = vmatprep.subr.mxu0 0.0
        %2543 = vmatpush1.msra.mxu0 0.0
        %2544 = vmatprep.subr.mxu0 0.0
        %2545 = vmatpush1.msra.mxu0 0.0
        %2546 = vmatprep.subr.mxu0 0.0
        %2547 = vmatpush1.msra.mxu0 0.0
        %2548 = vmatprep.subr.mxu0 0.0
        %2549 = vmatpush1.msra.mxu0 0.0
        %2550 = vmatprep.subr.mxu0 0.0
        %2551 = vmatpush1.msra.mxu0 0.0
        %2552 = vmatprep.subr.mxu0 0.0
        %2553 = vmatpush1.msra.mxu0 0.0
        %2554 = vmatprep.subr.mxu0 0.0
        %2555 = vmatpush1.msra.mxu0 0.0
        %2556 = vmatprep.subr.mxu0 0.0
        %2557 = vmatpush1.msra.mxu0 0.0
        %2558 = vmatprep.subr.mxu0 0.0
        %2559 = vmatpush1.msra.mxu0 0.0
        %2560 = vmatprep.subr.mxu0 0.0
        %2561 = vmatpush1.msra.mxu0 0.0
        %2562 = vmatprep.subr.mxu0 0.0
        %2563 = vmatpush1.msra.mxu0 0.0
        %2564 = vmatprep.mubr.f32.mxu0 0.0
        %v2565 = vand.u32 %v2482, 4294901760
        %v2566 = vsub.f32 %v2482, %v2565
        %v2567 = vand.u32 %v2566, 4294901760
        %v2568 = vsub.f32 %v2566, %v2567
        %v2569 = vand.u32 %v2568, 4294901760
        %2570 = vmatmul.mubr.f32.gmra.mrb[0].mxu0 %v2569
        %v2571 = vpop.f32.mrb[0].mxu0
        %v2572 = vadd.f32 0.0, %v2571
        %v2573 = vpop.f32.mrb[0].mxu0
        %v2574 = vadd.f32 0.0, %v2573
        %2575 = vdwg.mxu0
        %v2576 = vand.u32 %v208, 4294901760
        %v2577 = vsub.f32 %v208, %v2576
        %v2578 = vand.u32 %v2577, 4294901760
        %v2579 = vsub.f32 %v2577, %v2578
        %v2580 = vand.u32 %v2579, 4294901760
        %2581 = vmatprep.subr.mxu0 %v2580
        %v2582 = vand.u32 %v207, 4294901760
        %v2583 = vsub.f32 %v207, %v2582
        %v2584 = vand.u32 %v2583, 4294901760
        %v2585 = vsub.f32 %v2583, %v2584
        %v2586 = vand.u32 %v2585, 4294901760
        %2587 = vmatpush1.msra.mxu0 %v2586
        %v2588 = vand.u32 %v210, 4294901760
        %v2589 = vsub.f32 %v210, %v2588
        %v2590 = vand.u32 %v2589, 4294901760
        %v2591 = vsub.f32 %v2589, %v2590
        %v2592 = vand.u32 %v2591, 4294901760
        %2593 = vmatprep.subr.mxu0 %v2592
        %v2594 = vand.u32 %v209, 4294901760
        %v2595 = vsub.f32 %v209, %v2594
        %v2596 = vand.u32 %v2595, 4294901760
        %v2597 = vsub.f32 %v2595, %v2596
        %v2598 = vand.u32 %v2597, 4294901760
        %2599 = vmatpush1.msra.mxu0 %v2598
        %v2600 = vand.u32 %v212, 4294901760
        %v2601 = vsub.f32 %v212, %v2600
        %v2602 = vand.u32 %v2601, 4294901760
        %v2603 = vsub.f32 %v2601, %v2602
        %v2604 = vand.u32 %v2603, 4294901760
        %2605 = vmatprep.subr.mxu0 %v2604
        %v2606 = vand.u32 %v211, 4294901760
        %v2607 = vsub.f32 %v211, %v2606
        %v2608 = vand.u32 %v2607, 4294901760
        %v2609 = vsub.f32 %v2607, %v2608
        %v2610 = vand.u32 %v2609, 4294901760
        %2611 = vmatpush1.msra.mxu0 %v2610
        %v2612 = vand.u32 %v214, 4294901760
        %v2613 = vsub.f32 %v214, %v2612
        %v2614 = vand.u32 %v2613, 4294901760
        %v2615 = vsub.f32 %v2613, %v2614
        %v2616 = vand.u32 %v2615, 4294901760
        %2617 = vmatprep.subr.mxu0 %v2616
        %v2618 = vand.u32 %v213, 4294901760
        %v2619 = vsub.f32 %v213, %v2618
        %v2620 = vand.u32 %v2619, 4294901760
        %v2621 = vsub.f32 %v2619, %v2620
        %v2622 = vand.u32 %v2621, 4294901760
        %2623 = vmatpush1.msra.mxu0 %v2622
        %v2624 = vand.u32 %v216, 4294901760
        %v2625 = vsub.f32 %v216, %v2624
        %v2626 = vand.u32 %v2625, 4294901760
        %v2627 = vsub.f32 %v2625, %v2626
        %v2628 = vand.u32 %v2627, 4294901760
        %2629 = vmatprep.subr.mxu0 %v2628
        %v2630 = vand.u32 %v215, 4294901760
        %v2631 = vsub.f32 %v215, %v2630
        %v2632 = vand.u32 %v2631, 4294901760
        %v2633 = vsub.f32 %v2631, %v2632
        %v2634 = vand.u32 %v2633, 4294901760
        %2635 = vmatpush1.msra.mxu0 %v2634
        %v2636 = vand.u32 %v218, 4294901760
        %v2637 = vsub.f32 %v218, %v2636
        %v2638 = vand.u32 %v2637, 4294901760
        %v2639 = vsub.f32 %v2637, %v2638
        %v2640 = vand.u32 %v2639, 4294901760
        %2641 = vmatprep.subr.mxu0 %v2640
        %v2642 = vand.u32 %v217, 4294901760
        %v2643 = vsub.f32 %v217, %v2642
        %v2644 = vand.u32 %v2643, 4294901760
        %v2645 = vsub.f32 %v2643, %v2644
        %v2646 = vand.u32 %v2645, 4294901760
        %2647 = vmatpush1.msra.mxu0 %v2646
        %v2648 = vand.u32 %v220, 4294901760
        %v2649 = vsub.f32 %v220, %v2648
        %v2650 = vand.u32 %v2649, 4294901760
        %v2651 = vsub.f32 %v2649, %v2650
        %v2652 = vand.u32 %v2651, 4294901760
        %2653 = vmatprep.subr.mxu0 %v2652
        %v2654 = vand.u32 %v219, 4294901760
        %v2655 = vsub.f32 %v219, %v2654
        %v2656 = vand.u32 %v2655, 4294901760
        %v2657 = vsub.f32 %v2655, %v2656
        %v2658 = vand.u32 %v2657, 4294901760
        %2659 = vmatpush1.msra.mxu0 %v2658
        %v2660 = vand.u32 %v222, 4294901760
        %v2661 = vsub.f32 %v222, %v2660
        %v2662 = vand.u32 %v2661, 4294901760
        %v2663 = vsub.f32 %v2661, %v2662
        %v2664 = vand.u32 %v2663, 4294901760
        %2665 = vmatprep.subr.mxu0 %v2664
        %v2666 = vand.u32 %v221, 4294901760
        %v2667 = vsub.f32 %v221, %v2666
        %v2668 = vand.u32 %v2667, 4294901760
        %v2669 = vsub.f32 %v2667, %v2668
        %v2670 = vand.u32 %v2669, 4294901760
        %2671 = vmatpush1.msra.mxu0 %v2670
        %2672 = vmatprep.subr.mxu0 0.0
        %2673 = vmatpush1.msra.mxu0 0.0
        %2674 = vmatprep.subr.mxu0 0.0
        %2675 = vmatpush1.msra.mxu0 0.0
        %2676 = vmatprep.subr.mxu0 0.0
        %2677 = vmatpush1.msra.mxu0 0.0
        %2678 = vmatprep.subr.mxu0 0.0
        %2679 = vmatpush1.msra.mxu0 0.0
        %2680 = vmatprep.subr.mxu0 0.0
        %2681 = vmatpush1.msra.mxu0 0.0
        %2682 = vmatprep.subr.mxu0 0.0
        %2683 = vmatpush1.msra.mxu0 0.0
        %2684 = vmatprep.subr.mxu0 0.0
        %2685 = vmatpush1.msra.mxu0 0.0
        %2686 = vmatprep.subr.mxu0 0.0
        %2687 = vmatpush1.msra.mxu0 0.0
        %2688 = vmatprep.subr.mxu0 0.0
        %2689 = vmatpush1.msra.mxu0 0.0
        %2690 = vmatprep.subr.mxu0 0.0
        %2691 = vmatpush1.msra.mxu0 0.0
        %2692 = vmatprep.subr.mxu0 0.0
        %2693 = vmatpush1.msra.mxu0 0.0
        %2694 = vmatprep.subr.mxu0 0.0
        %2695 = vmatpush1.msra.mxu0 0.0
        %2696 = vmatprep.subr.mxu0 0.0
        %2697 = vmatpush1.msra.mxu0 0.0
        %2698 = vmatprep.subr.mxu0 0.0
        %2699 = vmatpush1.msra.mxu0 0.0
        %2700 = vmatprep.subr.mxu0 0.0
        %2701 = vmatpush1.msra.mxu0 0.0
        %2702 = vmatprep.subr.mxu0 0.0
        %2703 = vmatpush1.msra.mxu0 0.0
        %2704 = vmatprep.subr.mxu0 0.0
        %2705 = vmatpush1.msra.mxu0 0.0
        %2706 = vmatprep.subr.mxu0 0.0
        %2707 = vmatpush1.msra.mxu0 0.0
        %2708 = vmatprep.subr.mxu0 0.0
        %2709 = vmatpush1.msra.mxu0 0.0
        %2710 = vmatprep.subr.mxu0 0.0
        %2711 = vmatpush1.msra.mxu0 0.0
        %2712 = vmatprep.subr.mxu0 0.0
        %2713 = vmatpush1.msra.mxu0 0.0
        %2714 = vmatprep.subr.mxu0 0.0
        %2715 = vmatpush1.msra.mxu0 0.0
        %2716 = vmatprep.subr.mxu0 0.0
        %2717 = vmatpush1.msra.mxu0 0.0
        %2718 = vmatprep.subr.mxu0 0.0
        %2719 = vmatpush1.msra.mxu0 0.0
        %2720 = vmatprep.mubr.f32.mxu0 0.0
        %v2721 = vand.u32 %v2482, 4294901760
        %2722 = vmatmul.mubr.f32.gmra.mrb[0].mxu0 %v2721
        %v2723 = vpop.f32.mrb[0].mxu0
        %v2724 = vadd.f32 %v2572, %v2723
        %v2725 = vpop.f32.mrb[0].mxu0
        %v2726 = vadd.f32 %v2574, %v2725
        %2727 = vdwg.mxu0
        %v2728 = vand.u32 %v208, 4294901760
        %v2729 = vsub.f32 %v208, %v2728
        %2730 = vmatprep.subr.mxu0 %v2729
        %v2731 = vand.u32 %v207, 4294901760
        %v2732 = vsub.f32 %v207, %v2731
        %2733 = vmatpush1.msra.mxu0 %v2732
        %v2734 = vand.u32 %v210, 4294901760
        %v2735 = vsub.f32 %v210, %v2734
        %2736 = vmatprep.subr.mxu0 %v2735
        %v2737 = vand.u32 %v209, 4294901760
        %v2738 = vsub.f32 %v209, %v2737
        %2739 = vmatpush1.msra.mxu0 %v2738
        %v2740 = vand.u32 %v212, 4294901760
        %v2741 = vsub.f32 %v212, %v2740
        %2742 = vmatprep.subr.mxu0 %v2741
        %v2743 = vand.u32 %v211, 4294901760
        %v2744 = vsub.f32 %v211, %v2743
        %2745 = vmatpush1.msra.mxu0 %v2744
        %v2746 = vand.u32 %v214, 4294901760
        %v2747 = vsub.f32 %v214, %v2746
        %2748 = vmatprep.subr.mxu0 %v2747
        %v2749 = vand.u32 %v213, 4294901760
        %v2750 = vsub.f32 %v213, %v2749
        %2751 = vmatpush1.msra.mxu0 %v2750
        %v2752 = vand.u32 %v216, 4294901760
        %v2753 = vsub.f32 %v216, %v2752
        %2754 = vmatprep.subr.mxu0 %v2753
        %v2755 = vand.u32 %v215, 4294901760
        %v2756 = vsub.f32 %v215, %v2755
        %2757 = vmatpush1.msra.mxu0 %v2756
        %v2758 = vand.u32 %v218, 4294901760
        %v2759 = vsub.f32 %v218, %v2758
        %2760 = vmatprep.subr.mxu0 %v2759
        %v2761 = vand.u32 %v217, 4294901760
        %v2762 = vsub.f32 %v217, %v2761
        %2763 = vmatpush1.msra.mxu0 %v2762
        %v2764 = vand.u32 %v220, 4294901760
        %v2765 = vsub.f32 %v220, %v2764
        %2766 = vmatprep.subr.mxu0 %v2765
        %v2767 = vand.u32 %v219, 4294901760
        %v2768 = vsub.f32 %v219, %v2767
        %2769 = vmatpush1.msra.mxu0 %v2768
        %v2770 = vand.u32 %v222, 4294901760
        %v2771 = vsub.f32 %v222, %v2770
        %2772 = vmatprep.subr.mxu0 %v2771
        %v2773 = vand.u32 %v221, 4294901760
        %v2774 = vsub.f32 %v221, %v2773
        %2775 = vmatpush1.msra.mxu0 %v2774
        %2776 = vmatprep.subr.mxu0 0.0
        %2777 = vmatpush1.msra.mxu0 0.0
        %2778 = vmatprep.subr.mxu0 0.0
        %2779 = vmatpush1.msra.mxu0 0.0
        %2780 = vmatprep.subr.mxu0 0.0
        %2781 = vmatpush1.msra.mxu0 0.0
        %2782 = vmatprep.subr.mxu0 0.0
        %2783 = vmatpush1.msra.mxu0 0.0
        %2784 = vmatprep.subr.mxu0 0.0
        %2785 = vmatpush1.msra.mxu0 0.0
        %2786 = vmatprep.subr.mxu0 0.0
        %2787 = vmatpush1.msra.mxu0 0.0
        %2788 = vmatprep.subr.mxu0 0.0
        %2789 = vmatpush1.msra.mxu0 0.0
        %2790 = vmatprep.subr.mxu0 0.0
        %2791 = vmatpush1.msra.mxu0 0.0
        %2792 = vmatprep.subr.mxu0 0.0
        %2793 = vmatpush1.msra.mxu0 0.0
        %2794 = vmatprep.subr.mxu0 0.0
        %2795 = vmatpush1.msra.mxu0 0.0
        %2796 = vmatprep.subr.mxu0 0.0
        %2797 = vmatpush1.msra.mxu0 0.0
        %2798 = vmatprep.subr.mxu0 0.0
        %2799 = vmatpush1.msra.mxu0 0.0
        %2800 = vmatprep.subr.mxu0 0.0
        %2801 = vmatpush1.msra.mxu0 0.0
        %2802 = vmatprep.subr.mxu0 0.0
        %2803 = vmatpush1.msra.mxu0 0.0
        %2804 = vmatprep.subr.mxu0 0.0
        %2805 = vmatpush1.msra.mxu0 0.0
        %2806 = vmatprep.subr.mxu0 0.0
        %2807 = vmatpush1.msra.mxu0 0.0
        %2808 = vmatprep.subr.mxu0 0.0
        %2809 = vmatpush1.msra.mxu0 0.0
        %2810 = vmatprep.subr.mxu0 0.0
        %2811 = vmatpush1.msra.mxu0 0.0
        %2812 = vmatprep.subr.mxu0 0.0
        %2813 = vmatpush1.msra.mxu0 0.0
        %2814 = vmatprep.subr.mxu0 0.0
        %2815 = vmatpush1.msra.mxu0 0.0
        %2816 = vmatprep.subr.mxu0 0.0
        %2817 = vmatpush1.msra.mxu0 0.0
        %2818 = vmatprep.subr.mxu0 0.0
        %2819 = vmatpush1.msra.mxu0 0.0
        %2820 = vmatprep.subr.mxu0 0.0
        %2821 = vmatpush1.msra.mxu0 0.0
        %2822 = vmatprep.subr.mxu0 0.0
        %2823 = vmatpush1.msra.mxu0 0.0
        %2824 = vmatprep.mubr.f32.mxu0 0.0
        %v2825 = vand.u32 %v2482, 4294901760
        %v2826 = vsub.f32 %v2482, %v2825
        %2827 = vmatmul.mubr.f32.gmra.mrb[0].mxu0 %v2826
        %v2828 = vpop.f32.mrb[0].mxu0
        %v2829 = vadd.f32 %v2724, %v2828
        %v2830 = vpop.f32.mrb[0].mxu0
        %v2831 = vadd.f32 %v2726, %v2830
        %2832 = vdwg.mxu0
        %v2833 = vand.u32 %v208, 4294901760
        %2834 = vmatprep.subr.mxu0 %v2833
        %v2835 = vand.u32 %v207, 4294901760
        %2836 = vmatpush1.msra.mxu0 %v2835
        %v2837 = vand.u32 %v210, 4294901760
        %2838 = vmatprep.subr.mxu0 %v2837
        %v2839 = vand.u32 %v209, 4294901760
        %2840 = vmatpush1.msra.mxu0 %v2839
        %v2841 = vand.u32 %v212, 4294901760
        %2842 = vmatprep.subr.mxu0 %v2841
        %v2843 = vand.u32 %v211, 4294901760
        %2844 = vmatpush1.msra.mxu0 %v2843
        %v2845 = vand.u32 %v214, 4294901760
        %2846 = vmatprep.subr.mxu0 %v2845
        %v2847 = vand.u32 %v213, 4294901760
        %2848 = vmatpush1.msra.mxu0 %v2847
        %v2849 = vand.u32 %v216, 4294901760
        %2850 = vmatprep.subr.mxu0 %v2849
        %v2851 = vand.u32 %v215, 4294901760
        %2852 = vmatpush1.msra.mxu0 %v2851
        %v2853 = vand.u32 %v218, 4294901760
        %2854 = vmatprep.subr.mxu0 %v2853
        %v2855 = vand.u32 %v217, 4294901760
        %2856 = vmatpush1.msra.mxu0 %v2855
        %v2857 = vand.u32 %v220, 4294901760
        %2858 = vmatprep.subr.mxu0 %v2857
        %v2859 = vand.u32 %v219, 4294901760
        %2860 = vmatpush1.msra.mxu0 %v2859
        %v2861 = vand.u32 %v222, 4294901760
        %2862 = vmatprep.subr.mxu0 %v2861
        %v2863 = vand.u32 %v221, 4294901760
        %2864 = vmatpush1.msra.mxu0 %v2863
        %2865 = vmatprep.subr.mxu0 0.0
        %2866 = vmatpush1.msra.mxu0 0.0
        %2867 = vmatprep.subr.mxu0 0.0
        %2868 = vmatpush1.msra.mxu0 0.0
        %2869 = vmatprep.subr.mxu0 0.0
        %2870 = vmatpush1.msra.mxu0 0.0
        %2871 = vmatprep.subr.mxu0 0.0
        %2872 = vmatpush1.msra.mxu0 0.0
        %2873 = vmatprep.subr.mxu0 0.0
        %2874 = vmatpush1.msra.mxu0 0.0
        %2875 = vmatprep.subr.mxu0 0.0
        %2876 = vmatpush1.msra.mxu0 0.0
        %2877 = vmatprep.subr.mxu0 0.0
        %2878 = vmatpush1.msra.mxu0 0.0
        %2879 = vmatprep.subr.mxu0 0.0
        %2880 = vmatpush1.msra.mxu0 0.0
        %2881 = vmatprep.subr.mxu0 0.0
        %2882 = vmatpush1.msra.mxu0 0.0
        %2883 = vmatprep.subr.mxu0 0.0
        %2884 = vmatpush1.msra.mxu0 0.0
        %2885 = vmatprep.subr.mxu0 0.0
        %2886 = vmatpush1.msra.mxu0 0.0
        %2887 = vmatprep.subr.mxu0 0.0
        %2888 = vmatpush1.msra.mxu0 0.0
        %2889 = vmatprep.subr.mxu0 0.0
        %2890 = vmatpush1.msra.mxu0 0.0
        %2891 = vmatprep.subr.mxu0 0.0
        %2892 = vmatpush1.msra.mxu0 0.0
        %2893 = vmatprep.subr.mxu0 0.0
        %2894 = vmatpush1.msra.mxu0 0.0
        %2895 = vmatprep.subr.mxu0 0.0
        %2896 = vmatpush1.msra.mxu0 0.0
        %2897 = vmatprep.subr.mxu0 0.0
        %2898 = vmatpush1.msra.mxu0 0.0
        %2899 = vmatprep.subr.mxu0 0.0
        %2900 = vmatpush1.msra.mxu0 0.0
        %2901 = vmatprep.subr.mxu0 0.0
        %2902 = vmatpush1.msra.mxu0 0.0
        %2903 = vmatprep.subr.mxu0 0.0
        %2904 = vmatpush1.msra.mxu0 0.0
        %2905 = vmatprep.subr.mxu0 0.0
        %2906 = vmatpush1.msra.mxu0 0.0
        %2907 = vmatprep.subr.mxu0 0.0
        %2908 = vmatpush1.msra.mxu0 0.0
        %2909 = vmatprep.subr.mxu0 0.0
        %2910 = vmatpush1.msra.mxu0 0.0
        %2911 = vmatprep.subr.mxu0 0.0
        %2912 = vmatpush1.msra.mxu0 0.0
        %2913 = vmatprep.mubr.f32.mxu0 0.0
        %v2914 = vand.u32 %v2482, 4294901760
        %v2915 = vsub.f32 %v2482, %v2914
        %v2916 = vand.u32 %v2915, 4294901760
        %2917 = vmatmul.mubr.f32.gmra.mrb[0].mxu0 %v2916
        %v2918 = vpop.f32.mrb[0].mxu0
        %v2919 = vadd.f32 %v2829, %v2918
        %v2920 = vpop.f32.mrb[0].mxu0
        %v2921 = vadd.f32 %v2831, %v2920
        %2922 = vdwg.mxu0
        %v2923 = vand.u32 %v208, 4294901760
        %v2924 = vsub.f32 %v208, %v2923
        %v2925 = vand.u32 %v2924, 4294901760
        %2926 = vmatprep.subr.mxu0 %v2925
        %v2927 = vand.u32 %v207, 4294901760
        %v2928 = vsub.f32 %v207, %v2927
        %v2929 = vand.u32 %v2928, 4294901760
        %2930 = vmatpush1.msra.mxu0 %v2929
        %v2931 = vand.u32 %v210, 4294901760
        %v2932 = vsub.f32 %v210, %v2931
        %v2933 = vand.u32 %v2932, 4294901760
        %2934 = vmatprep.subr.mxu0 %v2933
        %v2935 = vand.u32 %v209, 4294901760
        %v2936 = vsub.f32 %v209, %v2935
        %v2937 = vand.u32 %v2936, 4294901760
        %2938 = vmatpush1.msra.mxu0 %v2937
        %v2939 = vand.u32 %v212, 4294901760
        %v2940 = vsub.f32 %v212, %v2939
        %v2941 = vand.u32 %v2940, 4294901760
        %2942 = vmatprep.subr.mxu0 %v2941
        %v2943 = vand.u32 %v211, 4294901760
        %v2944 = vsub.f32 %v211, %v2943
        %v2945 = vand.u32 %v2944, 4294901760
        %2946 = vmatpush1.msra.mxu0 %v2945
        %v2947 = vand.u32 %v214, 4294901760
        %v2948 = vsub.f32 %v214, %v2947
        %v2949 = vand.u32 %v2948, 4294901760
        %2950 = vmatprep.subr.mxu0 %v2949
        %v2951 = vand.u32 %v213, 4294901760
        %v2952 = vsub.f32 %v213, %v2951
        %v2953 = vand.u32 %v2952, 4294901760
        %2954 = vmatpush1.msra.mxu0 %v2953
        %v2955 = vand.u32 %v216, 4294901760
        %v2956 = vsub.f32 %v216, %v2955
        %v2957 = vand.u32 %v2956, 4294901760
        %2958 = vmatprep.subr.mxu0 %v2957
        %v2959 = vand.u32 %v215, 4294901760
        %v2960 = vsub.f32 %v215, %v2959
        %v2961 = vand.u32 %v2960, 4294901760
        %2962 = vmatpush1.msra.mxu0 %v2961
        %v2963 = vand.u32 %v218, 4294901760
        %v2964 = vsub.f32 %v218, %v2963
        %v2965 = vand.u32 %v2964, 4294901760
        %2966 = vmatprep.subr.mxu0 %v2965
        %v2967 = vand.u32 %v217, 4294901760
        %v2968 = vsub.f32 %v217, %v2967
        %v2969 = vand.u32 %v2968, 4294901760
        %2970 = vmatpush1.msra.mxu0 %v2969
        %v2971 = vand.u32 %v220, 4294901760
        %v2972 = vsub.f32 %v220, %v2971
        %v2973 = vand.u32 %v2972, 4294901760
        %2974 = vmatprep.subr.mxu0 %v2973
        %v2975 = vand.u32 %v219, 4294901760
        %v2976 = vsub.f32 %v219, %v2975
        %v2977 = vand.u32 %v2976, 4294901760
        %2978 = vmatpush1.msra.mxu0 %v2977
        %v2979 = vand.u32 %v222, 4294901760
        %v2980 = vsub.f32 %v222, %v2979
        %v2981 = vand.u32 %v2980, 4294901760
        %2982 = vmatprep.subr.mxu0 %v2981
        %v2983 = vand.u32 %v221, 4294901760
        %v2984 = vsub.f32 %v221, %v2983
        %v2985 = vand.u32 %v2984, 4294901760
        %2986 = vmatpush1.msra.mxu0 %v2985
        %2987 = vmatprep.subr.mxu0 0.0
        %2988 = vmatpush1.msra.mxu0 0.0
        %2989 = vmatprep.subr.mxu0 0.0
        %2990 = vmatpush1.msra.mxu0 0.0
        %2991 = vmatprep.subr.mxu0 0.0
        %2992 = vmatpush1.msra.mxu0 0.0
        %2993 = vmatprep.subr.mxu0 0.0
        %2994 = vmatpush1.msra.mxu0 0.0
        %2995 = vmatprep.subr.mxu0 0.0
        %2996 = vmatpush1.msra.mxu0 0.0
        %2997 = vmatprep.subr.mxu0 0.0
        %2998 = vmatpush1.msra.mxu0 0.0
        %2999 = vmatprep.subr.mxu0 0.0
        %3000 = vmatpush1.msra.mxu0 0.0
        %3001 = vmatprep.subr.mxu0 0.0
        %3002 = vmatpush1.msra.mxu0 0.0
        %3003 = vmatprep.subr.mxu0 0.0
        %3004 = vmatpush1.msra.mxu0 0.0
        %3005 = vmatprep.subr.mxu0 0.0
        %3006 = vmatpush1.msra.mxu0 0.0
        %3007 = vmatprep.subr.mxu0 0.0
        %3008 = vmatpush1.msra.mxu0 0.0
        %3009 = vmatprep.subr.mxu0 0.0
        %3010 = vmatpush1.msra.mxu0 0.0
        %3011 = vmatprep.subr.mxu0 0.0
        %3012 = vmatpush1.msra.mxu0 0.0
        %3013 = vmatprep.subr.mxu0 0.0
        %3014 = vmatpush1.msra.mxu0 0.0
        %3015 = vmatprep.subr.mxu0 0.0
        %3016 = vmatpush1.msra.mxu0 0.0
        %3017 = vmatprep.subr.mxu0 0.0
        %3018 = vmatpush1.msra.mxu0 0.0
        %3019 = vmatprep.subr.mxu0 0.0
        %3020 = vmatpush1.msra.mxu0 0.0
        %3021 = vmatprep.subr.mxu0 0.0
        %3022 = vmatpush1.msra.mxu0 0.0
        %3023 = vmatprep.subr.mxu0 0.0
        %3024 = vmatpush1.msra.mxu0 0.0
        %3025 = vmatprep.subr.mxu0 0.0
        %3026 = vmatpush1.msra.mxu0 0.0
        %3027 = vmatprep.subr.mxu0 0.0
        %3028 = vmatpush1.msra.mxu0 0.0
        %3029 = vmatprep.subr.mxu0 0.0
        %3030 = vmatpush1.msra.mxu0 0.0
        %3031 = vmatprep.subr.mxu0 0.0
        %3032 = vmatpush1.msra.mxu0 0.0
        %3033 = vmatprep.subr.mxu0 0.0
        %3034 = vmatpush1.msra.mxu0 0.0
        %3035 = vmatprep.mubr.f32.mxu0 0.0
        %v3036 = vand.u32 %v2482, 4294901760
        %3037 = vmatmul.mubr.f32.gmra.mrb[0].mxu0 %v3036
        %v3038 = vpop.f32.mrb[0].mxu0
        %v3039 = vadd.f32 %v2919, %v3038
        %v3040 = vpop.f32.mrb[0].mxu0
        %v3041 = vadd.f32 %v2921, %v3040
        %3042 = vdwg.mxu0
        %v3043 = vand.u32 %v208, 4294901760
        %3044 = vmatprep.subr.mxu0 %v3043
        %v3045 = vand.u32 %v207, 4294901760
        %3046 = vmatpush1.msra.mxu0 %v3045
        %v3047 = vand.u32 %v210, 4294901760
        %3048 = vmatprep.subr.mxu0 %v3047
        %v3049 = vand.u32 %v209, 4294901760
        %3050 = vmatpush1.msra.mxu0 %v3049
        %v3051 = vand.u32 %v212, 4294901760
        %3052 = vmatprep.subr.mxu0 %v3051
        %v3053 = vand.u32 %v211, 4294901760
        %3054 = vmatpush1.msra.mxu0 %v3053
        %v3055 = vand.u32 %v214, 4294901760
        %3056 = vmatprep.subr.mxu0 %v3055
        %v3057 = vand.u32 %v213, 4294901760
        %3058 = vmatpush1.msra.mxu0 %v3057
        %v3059 = vand.u32 %v216, 4294901760
        %3060 = vmatprep.subr.mxu0 %v3059
        %v3061 = vand.u32 %v215, 4294901760
        %3062 = vmatpush1.msra.mxu0 %v3061
        %v3063 = vand.u32 %v218, 4294901760
        %3064 = vmatprep.subr.mxu0 %v3063
        %v3065 = vand.u32 %v217, 4294901760
        %3066 = vmatpush1.msra.mxu0 %v3065
        %v3067 = vand.u32 %v220, 4294901760
        %3068 = vmatprep.subr.mxu0 %v3067
        %v3069 = vand.u32 %v219, 4294901760
        %3070 = vmatpush1.msra.mxu0 %v3069
        %v3071 = vand.u32 %v222, 4294901760
        %3072 = vmatprep.subr.mxu0 %v3071
        %v3073 = vand.u32 %v221, 4294901760
        %3074 = vmatpush1.msra.mxu0 %v3073
        %3075 = vmatprep.subr.mxu0 0.0
        %3076 = vmatpush1.msra.mxu0 0.0
        %3077 = vmatprep.subr.mxu0 0.0
        %3078 = vmatpush1.msra.mxu0 0.0
        %3079 = vmatprep.subr.mxu0 0.0
        %3080 = vmatpush1.msra.mxu0 0.0
        %3081 = vmatprep.subr.mxu0 0.0
        %3082 = vmatpush1.msra.mxu0 0.0
        %3083 = vmatprep.subr.mxu0 0.0
        %3084 = vmatpush1.msra.mxu0 0.0
        %3085 = vmatprep.subr.mxu0 0.0
        %3086 = vmatpush1.msra.mxu0 0.0
        %3087 = vmatprep.subr.mxu0 0.0
        %3088 = vmatpush1.msra.mxu0 0.0
        %3089 = vmatprep.subr.mxu0 0.0
        %3090 = vmatpush1.msra.mxu0 0.0
        %3091 = vmatprep.subr.mxu0 0.0
        %3092 = vmatpush1.msra.mxu0 0.0
        %3093 = vmatprep.subr.mxu0 0.0
        %3094 = vmatpush1.msra.mxu0 0.0
        %3095 = vmatprep.subr.mxu0 0.0
        %3096 = vmatpush1.msra.mxu0 0.0
        %3097 = vmatprep.subr.mxu0 0.0
        %3098 = vmatpush1.msra.mxu0 0.0
        %3099 = vmatprep.subr.mxu0 0.0
        %3100 = vmatpush1.msra.mxu0 0.0
        %3101 = vmatprep.subr.mxu0 0.0
        %3102 = vmatpush1.msra.mxu0 0.0
        %3103 = vmatprep.subr.mxu0 0.0
        %3104 = vmatpush1.msra.mxu0 0.0
        %3105 = vmatprep.subr.mxu0 0.0
        %3106 = vmatpush1.msra.mxu0 0.0
        %3107 = vmatprep.subr.mxu0 0.0
        %3108 = vmatpush1.msra.mxu0 0.0
        %3109 = vmatprep.subr.mxu0 0.0
        %3110 = vmatpush1.msra.mxu0 0.0
        %3111 = vmatprep.subr.mxu0 0.0
        %3112 = vmatpush1.msra.mxu0 0.0
        %3113 = vmatprep.subr.mxu0 0.0
        %3114 = vmatpush1.msra.mxu0 0.0
        %3115 = vmatprep.subr.mxu0 0.0
        %3116 = vmatpush1.msra.mxu0 0.0
        %3117 = vmatprep.subr.mxu0 0.0
        %3118 = vmatpush1.msra.mxu0 0.0
        %3119 = vmatprep.subr.mxu0 0.0
        %3120 = vmatpush1.msra.mxu0 0.0
        %3121 = vmatprep.subr.mxu0 0.0
        %3122 = vmatpush1.msra.mxu0 0.0
        %3123 = vmatprep.mubr.f32.mxu0 0.0
        %v3124 = vand.u32 %v2482, 4294901760
        %3125 = vmatmul.mubr.f32.gmra.mrb[0].mxu0 %v3124
        %v3126 = vpop.f32.mrb[0].mxu0
        %v3127 = vadd.f32 %v3039, %v3126
        %v3128 = vpop.f32.mrb[0].mxu0
        %v3129 = vadd.f32 %v3041, %v3128
        %3130 = vdwg.mxu0
        %v3132 = vsel %vm879, %v3127, 0
        %v3135 = vsel %vm879, %v3129, 0
        %v3137 = vand.u32 %v3135, 4294901760
        %3138 = vmatprep.subr.mxu0 %v3137
        %v3139 = vand.u32 %v3132, 4294901760
        %3140 = vmatpush1.msra.mxu0 %v3139
        %3141 = vmatprep.subr.mxu0 0.0
        %3142 = vmatpush1.msra.mxu0 0.0
        %3143 = vmatprep.subr.mxu0 0.0
        %3144 = vmatpush1.msra.mxu0 0.0
        %3145 = vmatprep.subr.mxu0 0.0
        %3146 = vmatpush1.msra.mxu0 0.0
        %3147 = vmatprep.subr.mxu0 0.0
        %3148 = vmatpush1.msra.mxu0 0.0
        %3149 = vmatprep.subr.mxu0 0.0
        %3150 = vmatpush1.msra.mxu0 0.0
        %3151 = vmatprep.subr.mxu0 0.0
        %3152 = vmatpush1.msra.mxu0 0.0
        %3153 = vmatprep.subr.mxu0 0.0
        %3154 = vmatpush1.msra.mxu0 0.0
        %3155 = vmatprep.subr.mxu0 0.0
        %3156 = vmatpush1.msra.mxu0 0.0
        %3157 = vmatprep.subr.mxu0 0.0
        %3158 = vmatpush1.msra.mxu0 0.0
        %3159 = vmatprep.subr.mxu0 0.0
        %3160 = vmatpush1.msra.mxu0 0.0
        %3161 = vmatprep.subr.mxu0 0.0
        %3162 = vmatpush1.msra.mxu0 0.0
        %3163 = vmatprep.subr.mxu0 0.0
        %3164 = vmatpush1.msra.mxu0 0.0
        %3165 = vmatprep.subr.mxu0 0.0
        %3166 = vmatpush1.msra.mxu0 0.0
        %3167 = vmatprep.subr.mxu0 0.0
        %3168 = vmatpush1.msra.mxu0 0.0
        %3169 = vmatprep.subr.mxu0 0.0
        %3170 = vmatpush1.msra.mxu0 0.0
        %3171 = vmatprep.subr.mxu0 0.0
        %3172 = vmatpush1.msra.mxu0 0.0
        %3173 = vmatprep.subr.mxu0 0.0
        %3174 = vmatpush1.msra.mxu0 0.0
        %3175 = vmatprep.subr.mxu0 0.0
        %3176 = vmatpush1.msra.mxu0 0.0
        %3177 = vmatprep.subr.mxu0 0.0
        %3178 = vmatpush1.msra.mxu0 0.0
        %3179 = vmatprep.subr.mxu0 0.0
        %3180 = vmatpush1.msra.mxu0 0.0
        %3181 = vmatprep.subr.mxu0 0.0
        %3182 = vmatpush1.msra.mxu0 0.0
        %3183 = vmatprep.subr.mxu0 0.0
        %3184 = vmatpush1.msra.mxu0 0.0
        %3185 = vmatprep.subr.mxu0 0.0
        %3186 = vmatpush1.msra.mxu0 0.0
        %3187 = vmatprep.subr.mxu0 0.0
        %3188 = vmatpush1.msra.mxu0 0.0
        %3189 = vmatprep.subr.mxu0 0.0
        %3190 = vmatpush1.msra.mxu0 0.0
        %3191 = vmatprep.subr.mxu0 0.0
        %3192 = vmatpush1.msra.mxu0 0.0
        %3193 = vmatprep.subr.mxu0 0.0
        %3194 = vmatpush1.msra.mxu0 0.0
        %3195 = vmatprep.subr.mxu0 0.0
        %3196 = vmatpush1.msra.mxu0 0.0
        %3197 = vmatprep.subr.mxu0 0.0
        %3198 = vmatpush1.msra.mxu0 0.0
        %3199 = vmatprep.subr.mxu0 0.0
        %3200 = vmatpush1.msra.mxu0 0.0
        %3201 = vmatprep.subr.mxu0 0.0
        %3202 = vmatpush1.msra.mxu0 0.0
        %3203 = vmatprep.mubr.f32.mxu0 0.0
        %v3204 = vand.u32 %v877, 4294901760
        %v3205 = vsub.f32 %v877, %v3204
        %v3206 = vand.u32 %v3205, 4294901760
        %v3207 = vsub.f32 %v3205, %v3206
        %v3208 = vand.u32 %v3207, 4294901760
        %3209 = vmatmul.mubr.f32.gmra.mrb[0].mxu0 %v3208
        %v3210 = vpop.f32.mrb[0].mxu0
        %v3211 = vadd.f32 0.0, %v3210
        %v3212 = vpop.f32.mrb[0].mxu0
        %v3213 = vadd.f32 0.0, %v3212
        %3214 = vdwg.mxu0
        %v3215 = vand.u32 %v3135, 4294901760
        %v3216 = vsub.f32 %v3135, %v3215
        %v3217 = vand.u32 %v3216, 4294901760
        %v3218 = vsub.f32 %v3216, %v3217
        %v3219 = vand.u32 %v3218, 4294901760
        %3220 = vmatprep.subr.mxu0 %v3219
        %v3221 = vand.u32 %v3132, 4294901760
        %v3222 = vsub.f32 %v3132, %v3221
        %v3223 = vand.u32 %v3222, 4294901760
        %v3224 = vsub.f32 %v3222, %v3223
        %v3225 = vand.u32 %v3224, 4294901760
        %3226 = vmatpush1.msra.mxu0 %v3225
        %3227 = vmatprep.subr.mxu0 0.0
        %3228 = vmatpush1.msra.mxu0 0.0
        %3229 = vmatprep.subr.mxu0 0.0
        %3230 = vmatpush1.msra.mxu0 0.0
        %3231 = vmatprep.subr.mxu0 0.0
        %3232 = vmatpush1.msra.mxu0 0.0
        %3233 = vmatprep.subr.mxu0 0.0
        %3234 = vmatpush1.msra.mxu0 0.0
        %3235 = vmatprep.subr.mxu0 0.0
        %3236 = vmatpush1.msra.mxu0 0.0
        %3237 = vmatprep.subr.mxu0 0.0
        %3238 = vmatpush1.msra.mxu0 0.0
        %3239 = vmatprep.subr.mxu0 0.0
        %3240 = vmatpush1.msra.mxu0 0.0
        %3241 = vmatprep.subr.mxu0 0.0
        %3242 = vmatpush1.msra.mxu0 0.0
        %3243 = vmatprep.subr.mxu0 0.0
        %3244 = vmatpush1.msra.mxu0 0.0
        %3245 = vmatprep.subr.mxu0 0.0
        %3246 = vmatpush1.msra.mxu0 0.0
        %3247 = vmatprep.subr.mxu0 0.0
        %3248 = vmatpush1.msra.mxu0 0.0
        %3249 = vmatprep.subr.mxu0 0.0
        %3250 = vmatpush1.msra.mxu0 0.0
        %3251 = vmatprep.subr.mxu0 0.0
        %3252 = vmatpush1.msra.mxu0 0.0
        %3253 = vmatprep.subr.mxu0 0.0
        %3254 = vmatpush1.msra.mxu0 0.0
        %3255 = vmatprep.subr.mxu0 0.0
        %3256 = vmatpush1.msra.mxu0 0.0
        %3257 = vmatprep.subr.mxu0 0.0
        %3258 = vmatpush1.msra.mxu0 0.0
        %3259 = vmatprep.subr.mxu0 0.0
        %3260 = vmatpush1.msra.mxu0 0.0
        %3261 = vmatprep.subr.mxu0 0.0
        %3262 = vmatpush1.msra.mxu0 0.0
        %3263 = vmatprep.subr.mxu0 0.0
        %3264 = vmatpush1.msra.mxu0 0.0
        %3265 = vmatprep.subr.mxu0 0.0
        %3266 = vmatpush1.msra.mxu0 0.0
        %3267 = vmatprep.subr.mxu0 0.0
        %3268 = vmatpush1.msra.mxu0 0.0
        %3269 = vmatprep.subr.mxu0 0.0
        %3270 = vmatpush1.msra.mxu0 0.0
        %3271 = vmatprep.subr.mxu0 0.0
        %3272 = vmatpush1.msra.mxu0 0.0
        %3273 = vmatprep.subr.mxu0 0.0
        %3274 = vmatpush1.msra.mxu0 0.0
        %3275 = vmatprep.subr.mxu0 0.0
        %3276 = vmatpush1.msra.mxu0 0.0
        %3277 = vmatprep.subr.mxu0 0.0
        %3278 = vmatpush1.msra.mxu0 0.0
        %3279 = vmatprep.subr.mxu0 0.0
        %3280 = vmatpush1.msra.mxu0 0.0
        %3281 = vmatprep.subr.mxu0 0.0
        %3282 = vmatpush1.msra.mxu0 0.0
        %3283 = vmatprep.subr.mxu0 0.0
        %3284 = vmatpush1.msra.mxu0 0.0
        %3285 = vmatprep.subr.mxu0 0.0
        %3286 = vmatpush1.msra.mxu0 0.0
        %3287 = vmatprep.subr.mxu0 0.0
        %3288 = vmatpush1.msra.mxu0 0.0
        %3289 = vmatprep.mubr.f32.mxu0 0.0
        %v3290 = vand.u32 %v877, 4294901760
        %3291 = vmatmul.mubr.f32.gmra.mrb[0].mxu0 %v3290
        %v3292 = vpop.f32.mrb[0].mxu0
        %v3293 = vadd.f32 %v3211, %v3292
        %v3294 = vpop.f32.mrb[0].mxu0
        %v3295 = vadd.f32 %v3213, %v3294
        %3296 = vdwg.mxu0
        %v3297 = vand.u32 %v3135, 4294901760
        %v3298 = vsub.f32 %v3135, %v3297
        %3299 = vmatprep.subr.mxu0 %v3298
        %v3300 = vand.u32 %v3132, 4294901760
        %v3301 = vsub.f32 %v3132, %v3300
        %3302 = vmatpush1.msra.mxu0 %v3301
        %3303 = vmatprep.subr.mxu0 0.0
        %3304 = vmatpush1.msra.mxu0 0.0
        %3305 = vmatprep.subr.mxu0 0.0
        %3306 = vmatpush1.msra.mxu0 0.0
        %3307 = vmatprep.subr.mxu0 0.0
        %3308 = vmatpush1.msra.mxu0 0.0
        %3309 = vmatprep.subr.mxu0 0.0
        %3310 = vmatpush1.msra.mxu0 0.0
        %3311 = vmatprep.subr.mxu0 0.0
        %3312 = vmatpush1.msra.mxu0 0.0
        %3313 = vmatprep.subr.mxu0 0.0
        %3314 = vmatpush1.msra.mxu0 0.0
        %3315 = vmatprep.subr.mxu0 0.0
        %3316 = vmatpush1.msra.mxu0 0.0
        %3317 = vmatprep.subr.mxu0 0.0
        %3318 = vmatpush1.msra.mxu0 0.0
        %3319 = vmatprep.subr.mxu0 0.0
        %3320 = vmatpush1.msra.mxu0 0.0
        %3321 = vmatprep.subr.mxu0 0.0
        %3322 = vmatpush1.msra.mxu0 0.0
        %3323 = vmatprep.subr.mxu0 0.0
        %3324 = vmatpush1.msra.mxu0 0.0
        %3325 = vmatprep.subr.mxu0 0.0
        %3326 = vmatpush1.msra.mxu0 0.0
        %3327 = vmatprep.subr.mxu0 0.0
        %3328 = vmatpush1.msra.mxu0 0.0
        %3329 = vmatprep.subr.mxu0 0.0
        %3330 = vmatpush1.msra.mxu0 0.0
        %3331 = vmatprep.subr.mxu0 0.0
        %3332 = vmatpush1.msra.mxu0 0.0
        %3333 = vmatprep.subr.mxu0 0.0
        %3334 = vmatpush1.msra.mxu0 0.0
        %3335 = vmatprep.subr.mxu0 0.0
        %3336 = vmatpush1.msra.mxu0 0.0
        %3337 = vmatprep.subr.mxu0 0.0
        %3338 = vmatpush1.msra.mxu0 0.0
        %3339 = vmatprep.subr.mxu0 0.0
        %3340 = vmatpush1.msra.mxu0 0.0
        %3341 = vmatprep.subr.mxu0 0.0
        %3342 = vmatpush1.msra.mxu0 0.0
        %3343 = vmatprep.subr.mxu0 0.0
        %3344 = vmatpush1.msra.mxu0 0.0
        %3345 = vmatprep.subr.mxu0 0.0
        %3346 = vmatpush1.msra.mxu0 0.0
        %3347 = vmatprep.subr.mxu0 0.0
        %3348 = vmatpush1.msra.mxu0 0.0
        %3349 = vmatprep.subr.mxu0 0.0
        %3350 = vmatpush1.msra.mxu0 0.0
        %3351 = vmatprep.subr.mxu0 0.0
        %3352 = vmatpush1.msra.mxu0 0.0
        %3353 = vmatprep.subr.mxu0 0.0
        %3354 = vmatpush1.msra.mxu0 0.0
        %3355 = vmatprep.subr.mxu0 0.0
        %3356 = vmatpush1.msra.mxu0 0.0
        %3357 = vmatprep.subr.mxu0 0.0
        %3358 = vmatpush1.msra.mxu0 0.0
        %3359 = vmatprep.subr.mxu0 0.0
        %3360 = vmatpush1.msra.mxu0 0.0
        %3361 = vmatprep.subr.mxu0 0.0
        %3362 = vmatpush1.msra.mxu0 0.0
        %3363 = vmatprep.subr.mxu0 0.0
        %3364 = vmatpush1.msra.mxu0 0.0
        %3365 = vmatprep.mubr.f32.mxu0 0.0
        %v3366 = vand.u32 %v877, 4294901760
        %v3367 = vsub.f32 %v877, %v3366
        %3368 = vmatmul.mubr.f32.gmra.mrb[0].mxu0 %v3367
        %v3369 = vpop.f32.mrb[0].mxu0
        %v3370 = vadd.f32 %v3293, %v3369
        %v3371 = vpop.f32.mrb[0].mxu0
        %v3372 = vadd.f32 %v3295, %v3371
        %3373 = vdwg.mxu0
        %v3374 = vand.u32 %v3135, 4294901760
        %3375 = vmatprep.subr.mxu0 %v3374
        %v3376 = vand.u32 %v3132, 4294901760
        %3377 = vmatpush1.msra.mxu0 %v3376
        %3378 = vmatprep.subr.mxu0 0.0
        %3379 = vmatpush1.msra.mxu0 0.0
        %3380 = vmatprep.subr.mxu0 0.0
        %3381 = vmatpush1.msra.mxu0 0.0
        %3382 = vmatprep.subr.mxu0 0.0
        %3383 = vmatpush1.msra.mxu0 0.0
        %3384 = vmatprep.subr.mxu0 0.0
        %3385 = vmatpush1.msra.mxu0 0.0
        %3386 = vmatprep.subr.mxu0 0.0
        %3387 = vmatpush1.msra.mxu0 0.0
        %3388 = vmatprep.subr.mxu0 0.0
        %3389 = vmatpush1.msra.mxu0 0.0
        %3390 = vmatprep.subr.mxu0 0.0
        %3391 = vmatpush1.msra.mxu0 0.0
        %3392 = vmatprep.subr.mxu0 0.0
        %3393 = vmatpush1.msra.mxu0 0.0
        %3394 = vmatprep.subr.mxu0 0.0
        %3395 = vmatpush1.msra.mxu0 0.0
        %3396 = vmatprep.subr.mxu0 0.0
        %3397 = vmatpush1.msra.mxu0 0.0
        %3398 = vmatprep.subr.mxu0 0.0
        %3399 = vmatpush1.msra.mxu0 0.0
        %3400 = vmatprep.subr.mxu0 0.0
        %3401 = vmatpush1.msra.mxu0 0.0
        %3402 = vmatprep.subr.mxu0 0.0
        %3403 = vmatpush1.msra.mxu0 0.0
        %3404 = vmatprep.subr.mxu0 0.0
        %3405 = vmatpush1.msra.mxu0 0.0
        %3406 = vmatprep.subr.mxu0 0.0
        %3407 = vmatpush1.msra.mxu0 0.0
        %3408 = vmatprep.subr.mxu0 0.0
        %3409 = vmatpush1.msra.mxu0 0.0
        %3410 = vmatprep.subr.mxu0 0.0
        %3411 = vmatpush1.msra.mxu0 0.0
        %3412 = vmatprep.subr.mxu0 0.0
        %3413 = vmatpush1.msra.mxu0 0.0
        %3414 = vmatprep.subr.mxu0 0.0
        %3415 = vmatpush1.msra.mxu0 0.0
        %3416 = vmatprep.subr.mxu0 0.0
        %3417 = vmatpush1.msra.mxu0 0.0
        %3418 = vmatprep.subr.mxu0 0.0
        %3419 = vmatpush1.msra.mxu0 0.0
        %3420 = vmatprep.subr.mxu0 0.0
        %3421 = vmatpush1.msra.mxu0 0.0
        %3422 = vmatprep.subr.mxu0 0.0
        %3423 = vmatpush1.msra.mxu0 0.0
        %3424 = vmatprep.subr.mxu0 0.0
        %3425 = vmatpush1.msra.mxu0 0.0
        %3426 = vmatprep.subr.mxu0 0.0
        %3427 = vmatpush1.msra.mxu0 0.0
        %3428 = vmatprep.subr.mxu0 0.0
        %3429 = vmatpush1.msra.mxu0 0.0
        %3430 = vmatprep.subr.mxu0 0.0
        %3431 = vmatpush1.msra.mxu0 0.0
        %3432 = vmatprep.subr.mxu0 0.0
        %3433 = vmatpush1.msra.mxu0 0.0
        %3434 = vmatprep.subr.mxu0 0.0
        %3435 = vmatpush1.msra.mxu0 0.0
        %3436 = vmatprep.subr.mxu0 0.0
        %3437 = vmatpush1.msra.mxu0 0.0
        %3438 = vmatprep.subr.mxu0 0.0
        %3439 = vmatpush1.msra.mxu0 0.0
        %3440 = vmatprep.mubr.f32.mxu0 0.0
        %v3441 = vand.u32 %v877, 4294901760
        %v3442 = vsub.f32 %v877, %v3441
        %v3443 = vand.u32 %v3442, 4294901760
        %3444 = vmatmul.mubr.f32.gmra.mrb[0].mxu0 %v3443
        %v3445 = vpop.f32.mrb[0].mxu0
        %v3446 = vadd.f32 %v3370, %v3445
        %v3447 = vpop.f32.mrb[0].mxu0
        %v3448 = vadd.f32 %v3372, %v3447
        %3449 = vdwg.mxu0
        %v3450 = vand.u32 %v3135, 4294901760
        %v3451 = vsub.f32 %v3135, %v3450
        %v3452 = vand.u32 %v3451, 4294901760
        %3453 = vmatprep.subr.mxu0 %v3452
        %v3454 = vand.u32 %v3132, 4294901760
        %v3455 = vsub.f32 %v3132, %v3454
        %v3456 = vand.u32 %v3455, 4294901760
        %3457 = vmatpush1.msra.mxu0 %v3456
        %3458 = vmatprep.subr.mxu0 0.0
        %3459 = vmatpush1.msra.mxu0 0.0
        %3460 = vmatprep.subr.mxu0 0.0
        %3461 = vmatpush1.msra.mxu0 0.0
        %3462 = vmatprep.subr.mxu0 0.0
        %3463 = vmatpush1.msra.mxu0 0.0
        %3464 = vmatprep.subr.mxu0 0.0
        %3465 = vmatpush1.msra.mxu0 0.0
        %3466 = vmatprep.subr.mxu0 0.0
        %3467 = vmatpush1.msra.mxu0 0.0
        %3468 = vmatprep.subr.mxu0 0.0
        %3469 = vmatpush1.msra.mxu0 0.0
        %3470 = vmatprep.subr.mxu0 0.0
        %3471 = vmatpush1.msra.mxu0 0.0
        %3472 = vmatprep.subr.mxu0 0.0
        %3473 = vmatpush1.msra.mxu0 0.0
        %3474 = vmatprep.subr.mxu0 0.0
        %3475 = vmatpush1.msra.mxu0 0.0
        %3476 = vmatprep.subr.mxu0 0.0
        %3477 = vmatpush1.msra.mxu0 0.0
        %3478 = vmatprep.subr.mxu0 0.0
        %3479 = vmatpush1.msra.mxu0 0.0
        %3480 = vmatprep.subr.mxu0 0.0
        %3481 = vmatpush1.msra.mxu0 0.0
        %3482 = vmatprep.subr.mxu0 0.0
        %3483 = vmatpush1.msra.mxu0 0.0
        %3484 = vmatprep.subr.mxu0 0.0
        %3485 = vmatpush1.msra.mxu0 0.0
        %3486 = vmatprep.subr.mxu0 0.0
        %3487 = vmatpush1.msra.mxu0 0.0
        %3488 = vmatprep.subr.mxu0 0.0
        %3489 = vmatpush1.msra.mxu0 0.0
        %3490 = vmatprep.subr.mxu0 0.0
        %3491 = vmatpush1.msra.mxu0 0.0
        %3492 = vmatprep.subr.mxu0 0.0
        %3493 = vmatpush1.msra.mxu0 0.0
        %3494 = vmatprep.subr.mxu0 0.0
        %3495 = vmatpush1.msra.mxu0 0.0
        %3496 = vmatprep.subr.mxu0 0.0
        %3497 = vmatpush1.msra.mxu0 0.0
        %3498 = vmatprep.subr.mxu0 0.0
        %3499 = vmatpush1.msra.mxu0 0.0
        %3500 = vmatprep.subr.mxu0 0.0
        %3501 = vmatpush1.msra.mxu0 0.0
        %3502 = vmatprep.subr.mxu0 0.0
        %3503 = vmatpush1.msra.mxu0 0.0
        %3504 = vmatprep.subr.mxu0 0.0
        %3505 = vmatpush1.msra.mxu0 0.0
        %3506 = vmatprep.subr.mxu0 0.0
        %3507 = vmatpush1.msra.mxu0 0.0
        %3508 = vmatprep.subr.mxu0 0.0
        %3509 = vmatpush1.msra.mxu0 0.0
        %3510 = vmatprep.subr.mxu0 0.0
        %3511 = vmatpush1.msra.mxu0 0.0
        %3512 = vmatprep.subr.mxu0 0.0
        %3513 = vmatpush1.msra.mxu0 0.0
        %3514 = vmatprep.subr.mxu0 0.0
        %3515 = vmatpush1.msra.mxu0 0.0
        %3516 = vmatprep.subr.mxu0 0.0
        %3517 = vmatpush1.msra.mxu0 0.0
        %3518 = vmatprep.subr.mxu0 0.0
        %3519 = vmatpush1.msra.mxu0 0.0
        %3520 = vmatprep.mubr.f32.mxu0 0.0
        %v3521 = vand.u32 %v877, 4294901760
        %3522 = vmatmul.mubr.f32.gmra.mrb[0].mxu0 %v3521
        %v3523 = vpop.f32.mrb[0].mxu0
        %v3524 = vadd.f32 %v3446, %v3523
        %v3525 = vpop.f32.mrb[0].mxu0
        %v3526 = vadd.f32 %v3448, %v3525
        %3527 = vdwg.mxu0
        %v3528 = vand.u32 %v3135, 4294901760
        %3529 = vmatprep.subr.mxu0 %v3528
        %v3530 = vand.u32 %v3132, 4294901760
        %3531 = vmatpush1.msra.mxu0 %v3530
        %3532 = vmatprep.subr.mxu0 0.0
        %3533 = vmatpush1.msra.mxu0 0.0
        %3534 = vmatprep.subr.mxu0 0.0
        %3535 = vmatpush1.msra.mxu0 0.0
        %3536 = vmatprep.subr.mxu0 0.0
        %3537 = vmatpush1.msra.mxu0 0.0
        %3538 = vmatprep.subr.mxu0 0.0
        %3539 = vmatpush1.msra.mxu0 0.0
        %3540 = vmatprep.subr.mxu0 0.0
        %3541 = vmatpush1.msra.mxu0 0.0
        %3542 = vmatprep.subr.mxu0 0.0
        %3543 = vmatpush1.msra.mxu0 0.0
        %3544 = vmatprep.subr.mxu0 0.0
        %3545 = vmatpush1.msra.mxu0 0.0
        %3546 = vmatprep.subr.mxu0 0.0
        %3547 = vmatpush1.msra.mxu0 0.0
        %3548 = vmatprep.subr.mxu0 0.0
        %3549 = vmatpush1.msra.mxu0 0.0
        %3550 = vmatprep.subr.mxu0 0.0
        %3551 = vmatpush1.msra.mxu0 0.0
        %3552 = vmatprep.subr.mxu0 0.0
        %3553 = vmatpush1.msra.mxu0 0.0
        %3554 = vmatprep.subr.mxu0 0.0
        %3555 = vmatpush1.msra.mxu0 0.0
        %3556 = vmatprep.subr.mxu0 0.0
        %3557 = vmatpush1.msra.mxu0 0.0
        %3558 = vmatprep.subr.mxu0 0.0
        %3559 = vmatpush1.msra.mxu0 0.0
        %3560 = vmatprep.subr.mxu0 0.0
        %3561 = vmatpush1.msra.mxu0 0.0
        %3562 = vmatprep.subr.mxu0 0.0
        %3563 = vmatpush1.msra.mxu0 0.0
        %3564 = vmatprep.subr.mxu0 0.0
        %3565 = vmatpush1.msra.mxu0 0.0
        %3566 = vmatprep.subr.mxu0 0.0
        %3567 = vmatpush1.msra.mxu0 0.0
        %3568 = vmatprep.subr.mxu0 0.0
        %3569 = vmatpush1.msra.mxu0 0.0
        %3570 = vmatprep.subr.mxu0 0.0
        %3571 = vmatpush1.msra.mxu0 0.0
        %3572 = vmatprep.subr.mxu0 0.0
        %3573 = vmatpush1.msra.mxu0 0.0
        %3574 = vmatprep.subr.mxu0 0.0
        %3575 = vmatpush1.msra.mxu0 0.0
        %3576 = vmatprep.subr.mxu0 0.0
        %3577 = vmatpush1.msra.mxu0 0.0
        %3578 = vmatprep.subr.mxu0 0.0
        %3579 = vmatpush1.msra.mxu0 0.0
        %3580 = vmatprep.subr.mxu0 0.0
        %3581 = vmatpush1.msra.mxu0 0.0
        %3582 = vmatprep.subr.mxu0 0.0
        %3583 = vmatpush1.msra.mxu0 0.0
        %3584 = vmatprep.subr.mxu0 0.0
        %3585 = vmatpush1.msra.mxu0 0.0
        %3586 = vmatprep.subr.mxu0 0.0
        %3587 = vmatpush1.msra.mxu0 0.0
        %3588 = vmatprep.subr.mxu0 0.0
        %3589 = vmatpush1.msra.mxu0 0.0
        %3590 = vmatprep.subr.mxu0 0.0
        %3591 = vmatpush1.msra.mxu0 0.0
        %3592 = vmatprep.subr.mxu0 0.0
        %3593 = vmatpush1.msra.mxu0 0.0
        %3594 = vmatprep.mubr.f32.mxu0 0.0
        %v3595 = vand.u32 %v877, 4294901760
        %3596 = vmatmul.mubr.f32.gmra.mrb[0].mxu0 %v3595
        %v3597 = vpop.f32.mrb[0].mxu0
        %v3598 = vadd.f32 %v3524, %v3597
        %v3599 = vpop.f32.mrb[0].mxu0
        %v3600 = vadd.f32 %v3526, %v3599
        %3601 = vdwg.mxu0
        %s3602 = scalar_lea.vmem %s203, 32 [#allocation7]
        %3603 = vst [vmem:[%s3602] sm:$0xff] %v3598
        %3604 = vst [vmem:[%s3602 + $0x8] sm:$0xff] %v3600
        %s3605 = scalar_lea.vmem %s177, 12 [#allocation2]
        %v3606 = vld [vmem:[%s3605] sm:$0xf]
        %v3608 = vsel %vm224, %v3606, 0
        %v3610 = vand.u32 %v208, 4294901760
        %3611 = vmatprep.subr.mxu0 %v3610
        %v3612 = vand.u32 %v207, 4294901760
        %3613 = vmatpush1.msra.mxu0 %v3612
        %v3614 = vand.u32 %v210, 4294901760
        %3615 = vmatprep.subr.mxu0 %v3614
        %v3616 = vand.u32 %v209, 4294901760
        %3617 = vmatpush1.msra.mxu0 %v3616
        %v3618 = vand.u32 %v212, 4294901760
        %3619 = vmatprep.subr.mxu0 %v3618
        %v3620 = vand.u32 %v211, 4294901760
        %3621 = vmatpush1.msra.mxu0 %v3620
        %v3622 = vand.u32 %v214, 4294901760
        %3623 = vmatprep.subr.mxu0 %v3622
        %v3624 = vand.u32 %v213, 4294901760
        %3625 = vmatpush1.msra.mxu0 %v3624
        %v3626 = vand.u32 %v216, 4294901760
        %3627 = vmatprep.subr.mxu0 %v3626
        %v3628 = vand.u32 %v215, 4294901760
        %3629 = vmatpush1.msra.mxu0 %v3628
        %v3630 = vand.u32 %v218, 4294901760
        %3631 = vmatprep.subr.mxu0 %v3630
        %v3632 = vand.u32 %v217, 4294901760
        %3633 = vmatpush1.msra.mxu0 %v3632
        %v3634 = vand.u32 %v220, 4294901760
        %3635 = vmatprep.subr.mxu0 %v3634
        %v3636 = vand.u32 %v219, 4294901760
        %3637 = vmatpush1.msra.mxu0 %v3636
        %v3638 = vand.u32 %v222, 4294901760
        %3639 = vmatprep.subr.mxu0 %v3638
        %v3640 = vand.u32 %v221, 4294901760
        %3641 = vmatpush1.msra.mxu0 %v3640
        %3642 = vmatprep.subr.mxu0 0.0
        %3643 = vmatpush1.msra.mxu0 0.0
        %3644 = vmatprep.subr.mxu0 0.0
        %3645 = vmatpush1.msra.mxu0 0.0
        %3646 = vmatprep.subr.mxu0 0.0
        %3647 = vmatpush1.msra.mxu0 0.0
        %3648 = vmatprep.subr.mxu0 0.0
        %3649 = vmatpush1.msra.mxu0 0.0
        %3650 = vmatprep.subr.mxu0 0.0
        %3651 = vmatpush1.msra.mxu0 0.0
        %3652 = vmatprep.subr.mxu0 0.0
        %3653 = vmatpush1.msra.mxu0 0.0
        %3654 = vmatprep.subr.mxu0 0.0
        %3655 = vmatpush1.msra.mxu0 0.0
        %3656 = vmatprep.subr.mxu0 0.0
        %3657 = vmatpush1.msra.mxu0 0.0
        %3658 = vmatprep.subr.mxu0 0.0
        %3659 = vmatpush1.msra.mxu0 0.0
        %3660 = vmatprep.subr.mxu0 0.0
        %3661 = vmatpush1.msra.mxu0 0.0
        %3662 = vmatprep.subr.mxu0 0.0
        %3663 = vmatpush1.msra.mxu0 0.0
        %3664 = vmatprep.subr.mxu0 0.0
        %3665 = vmatpush1.msra.mxu0 0.0
        %3666 = vmatprep.subr.mxu0 0.0
        %3667 = vmatpush1.msra.mxu0 0.0
        %3668 = vmatprep.subr.mxu0 0.0
        %3669 = vmatpush1.msra.mxu0 0.0
        %3670 = vmatprep.subr.mxu0 0.0
        %3671 = vmatpush1.msra.mxu0 0.0
        %3672 = vmatprep.subr.mxu0 0.0
        %3673 = vmatpush1.msra.mxu0 0.0
        %3674 = vmatprep.subr.mxu0 0.0
        %3675 = vmatpush1.msra.mxu0 0.0
        %3676 = vmatprep.subr.mxu0 0.0
        %3677 = vmatpush1.msra.mxu0 0.0
        %3678 = vmatprep.subr.mxu0 0.0
        %3679 = vmatpush1.msra.mxu0 0.0
        %3680 = vmatprep.subr.mxu0 0.0
        %3681 = vmatpush1.msra.mxu0 0.0
        %3682 = vmatprep.subr.mxu0 0.0
        %3683 = vmatpush1.msra.mxu0 0.0
        %3684 = vmatprep.subr.mxu0 0.0
        %3685 = vmatpush1.msra.mxu0 0.0
        %3686 = vmatprep.subr.mxu0 0.0
        %3687 = vmatpush1.msra.mxu0 0.0
        %3688 = vmatprep.subr.mxu0 0.0
        %3689 = vmatpush1.msra.mxu0 0.0
        %3690 = vmatprep.mubr.f32.mxu0 0.0
        %v3691 = vand.u32 %v3608, 4294901760
        %v3692 = vsub.f32 %v3608, %v3691
        %v3693 = vand.u32 %v3692, 4294901760
        %v3694 = vsub.f32 %v3692, %v3693
        %v3695 = vand.u32 %v3694, 4294901760
        %3696 = vmatmul.mubr.f32.gmra.mrb[0].mxu0 %v3695
        %v3697 = vpop.f32.mrb[0].mxu0
        %v3698 = vadd.f32 0.0, %v3697
        %v3699 = vpop.f32.mrb[0].mxu0
        %v3700 = vadd.f32 0.0, %v3699
        %3701 = vdwg.mxu0
        %v3702 = vand.u32 %v208, 4294901760
        %v3703 = vsub.f32 %v208, %v3702
        %v3704 = vand.u32 %v3703, 4294901760
        %v3705 = vsub.f32 %v3703, %v3704
        %v3706 = vand.u32 %v3705, 4294901760
        %3707 = vmatprep.subr.mxu0 %v3706
        %v3708 = vand.u32 %v207, 4294901760
        %v3709 = vsub.f32 %v207, %v3708
        %v3710 = vand.u32 %v3709, 4294901760
        %v3711 = vsub.f32 %v3709, %v3710
        %v3712 = vand.u32 %v3711, 4294901760
        %3713 = vmatpush1.msra.mxu0 %v3712
        %v3714 = vand.u32 %v210, 4294901760
        %v3715 = vsub.f32 %v210, %v3714
        %v3716 = vand.u32 %v3715, 4294901760
        %v3717 = vsub.f32 %v3715, %v3716
        %v3718 = vand.u32 %v3717, 4294901760
        %3719 = vmatprep.subr.mxu0 %v3718
        %v3720 = vand.u32 %v209, 4294901760
        %v3721 = vsub.f32 %v209, %v3720
        %v3722 = vand.u32 %v3721, 4294901760
        %v3723 = vsub.f32 %v3721, %v3722
        %v3724 = vand.u32 %v3723, 4294901760
        %3725 = vmatpush1.msra.mxu0 %v3724
        %v3726 = vand.u32 %v212, 4294901760
        %v3727 = vsub.f32 %v212, %v3726
        %v3728 = vand.u32 %v3727, 4294901760
        %v3729 = vsub.f32 %v3727, %v3728
        %v3730 = vand.u32 %v3729, 4294901760
        %3731 = vmatprep.subr.mxu0 %v3730
        %v3732 = vand.u32 %v211, 4294901760
        %v3733 = vsub.f32 %v211, %v3732
        %v3734 = vand.u32 %v3733, 4294901760
        %v3735 = vsub.f32 %v3733, %v3734
        %v3736 = vand.u32 %v3735, 4294901760
        %3737 = vmatpush1.msra.mxu0 %v3736
        %v3738 = vand.u32 %v214, 4294901760
        %v3739 = vsub.f32 %v214, %v3738
        %v3740 = vand.u32 %v3739, 4294901760
        %v3741 = vsub.f32 %v3739, %v3740
        %v3742 = vand.u32 %v3741, 4294901760
        %3743 = vmatprep.subr.mxu0 %v3742
        %v3744 = vand.u32 %v213, 4294901760
        %v3745 = vsub.f32 %v213, %v3744
        %v3746 = vand.u32 %v3745, 4294901760
        %v3747 = vsub.f32 %v3745, %v3746
        %v3748 = vand.u32 %v3747, 4294901760
        %3749 = vmatpush1.msra.mxu0 %v3748
        %v3750 = vand.u32 %v216, 4294901760
        %v3751 = vsub.f32 %v216, %v3750
        %v3752 = vand.u32 %v3751, 4294901760
        %v3753 = vsub.f32 %v3751, %v3752
        %v3754 = vand.u32 %v3753, 4294901760
        %3755 = vmatprep.subr.mxu0 %v3754
        %v3756 = vand.u32 %v215, 4294901760
        %v3757 = vsub.f32 %v215, %v3756
        %v3758 = vand.u32 %v3757, 4294901760
        %v3759 = vsub.f32 %v3757, %v3758
        %v3760 = vand.u32 %v3759, 4294901760
        %3761 = vmatpush1.msra.mxu0 %v3760
        %v3762 = vand.u32 %v218, 4294901760
        %v3763 = vsub.f32 %v218, %v3762
        %v3764 = vand.u32 %v3763, 4294901760
        %v3765 = vsub.f32 %v3763, %v3764
        %v3766 = vand.u32 %v3765, 4294901760
        %3767 = vmatprep.subr.mxu0 %v3766
        %v3768 = vand.u32 %v217, 4294901760
        %v3769 = vsub.f32 %v217, %v3768
        %v3770 = vand.u32 %v3769, 4294901760
        %v3771 = vsub.f32 %v3769, %v3770
        %v3772 = vand.u32 %v3771, 4294901760
        %3773 = vmatpush1.msra.mxu0 %v3772
        %v3774 = vand.u32 %v220, 4294901760
        %v3775 = vsub.f32 %v220, %v3774
        %v3776 = vand.u32 %v3775, 4294901760
        %v3777 = vsub.f32 %v3775, %v3776
        %v3778 = vand.u32 %v3777, 4294901760
        %3779 = vmatprep.subr.mxu0 %v3778
        %v3780 = vand.u32 %v219, 4294901760
        %v3781 = vsub.f32 %v219, %v3780
        %v3782 = vand.u32 %v3781, 4294901760
        %v3783 = vsub.f32 %v3781, %v3782
        %v3784 = vand.u32 %v3783, 4294901760
        %3785 = vmatpush1.msra.mxu0 %v3784
        %v3786 = vand.u32 %v222, 4294901760
        %v3787 = vsub.f32 %v222, %v3786
        %v3788 = vand.u32 %v3787, 4294901760
        %v3789 = vsub.f32 %v3787, %v3788
        %v3790 = vand.u32 %v3789, 4294901760
        %3791 = vmatprep.subr.mxu0 %v3790
        %v3792 = vand.u32 %v221, 4294901760
        %v3793 = vsub.f32 %v221, %v3792
        %v3794 = vand.u32 %v3793, 4294901760
        %v3795 = vsub.f32 %v3793, %v3794
        %v3796 = vand.u32 %v3795, 4294901760
        %3797 = vmatpush1.msra.mxu0 %v3796
        %3798 = vmatprep.subr.mxu0 0.0
        %3799 = vmatpush1.msra.mxu0 0.0
        %3800 = vmatprep.subr.mxu0 0.0
        %3801 = vmatpush1.msra.mxu0 0.0
        %3802 = vmatprep.subr.mxu0 0.0
        %3803 = vmatpush1.msra.mxu0 0.0
        %3804 = vmatprep.subr.mxu0 0.0
        %3805 = vmatpush1.msra.mxu0 0.0
        %3806 = vmatprep.subr.mxu0 0.0
        %3807 = vmatpush1.msra.mxu0 0.0
        %3808 = vmatprep.subr.mxu0 0.0
        %3809 = vmatpush1.msra.mxu0 0.0
        %3810 = vmatprep.subr.mxu0 0.0
        %3811 = vmatpush1.msra.mxu0 0.0
        %3812 = vmatprep.subr.mxu0 0.0
        %3813 = vmatpush1.msra.mxu0 0.0
        %3814 = vmatprep.subr.mxu0 0.0
        %3815 = vmatpush1.msra.mxu0 0.0
        %3816 = vmatprep.subr.mxu0 0.0
        %3817 = vmatpush1.msra.mxu0 0.0
        %3818 = vmatprep.subr.mxu0 0.0
        %3819 = vmatpush1.msra.mxu0 0.0
        %3820 = vmatprep.subr.mxu0 0.0
        %3821 = vmatpush1.msra.mxu0 0.0
        %3822 = vmatprep.subr.mxu0 0.0
        %3823 = vmatpush1.msra.mxu0 0.0
        %3824 = vmatprep.subr.mxu0 0.0
        %3825 = vmatpush1.msra.mxu0 0.0
        %3826 = vmatprep.subr.mxu0 0.0
        %3827 = vmatpush1.msra.mxu0 0.0
        %3828 = vmatprep.subr.mxu0 0.0
        %3829 = vmatpush1.msra.mxu0 0.0
        %3830 = vmatprep.subr.mxu0 0.0
        %3831 = vmatpush1.msra.mxu0 0.0
        %3832 = vmatprep.subr.mxu0 0.0
        %3833 = vmatpush1.msra.mxu0 0.0
        %3834 = vmatprep.subr.mxu0 0.0
        %3835 = vmatpush1.msra.mxu0 0.0
        %3836 = vmatprep.subr.mxu0 0.0
        %3837 = vmatpush1.msra.mxu0 0.0
        %3838 = vmatprep.subr.mxu0 0.0
        %3839 = vmatpush1.msra.mxu0 0.0
        %3840 = vmatprep.subr.mxu0 0.0
        %3841 = vmatpush1.msra.mxu0 0.0
        %3842 = vmatprep.subr.mxu0 0.0
        %3843 = vmatpush1.msra.mxu0 0.0
        %3844 = vmatprep.subr.mxu0 0.0
        %3845 = vmatpush1.msra.mxu0 0.0
        %3846 = vmatprep.mubr.f32.mxu0 0.0
        %v3847 = vand.u32 %v3608, 4294901760
        %3848 = vmatmul.mubr.f32.gmra.mrb[0].mxu0 %v3847
        %v3849 = vpop.f32.mrb[0].mxu0
        %v3850 = vadd.f32 %v3698, %v3849
        %v3851 = vpop.f32.mrb[0].mxu0
        %v3852 = vadd.f32 %v3700, %v3851
        %3853 = vdwg.mxu0
        %v3854 = vand.u32 %v208, 4294901760
        %v3855 = vsub.f32 %v208, %v3854
        %3856 = vmatprep.subr.mxu0 %v3855
        %v3857 = vand.u32 %v207, 4294901760
        %v3858 = vsub.f32 %v207, %v3857
        %3859 = vmatpush1.msra.mxu0 %v3858
        %v3860 = vand.u32 %v210, 4294901760
        %v3861 = vsub.f32 %v210, %v3860
        %3862 = vmatprep.subr.mxu0 %v3861
        %v3863 = vand.u32 %v209, 4294901760
        %v3864 = vsub.f32 %v209, %v3863
        %3865 = vmatpush1.msra.mxu0 %v3864
        %v3866 = vand.u32 %v212, 4294901760
        %v3867 = vsub.f32 %v212, %v3866
        %3868 = vmatprep.subr.mxu0 %v3867
        %v3869 = vand.u32 %v211, 4294901760
        %v3870 = vsub.f32 %v211, %v3869
        %3871 = vmatpush1.msra.mxu0 %v3870
        %v3872 = vand.u32 %v214, 4294901760
        %v3873 = vsub.f32 %v214, %v3872
        %3874 = vmatprep.subr.mxu0 %v3873
        %v3875 = vand.u32 %v213, 4294901760
        %v3876 = vsub.f32 %v213, %v3875
        %3877 = vmatpush1.msra.mxu0 %v3876
        %v3878 = vand.u32 %v216, 4294901760
        %v3879 = vsub.f32 %v216, %v3878
        %3880 = vmatprep.subr.mxu0 %v3879
        %v3881 = vand.u32 %v215, 4294901760
        %v3882 = vsub.f32 %v215, %v3881
        %3883 = vmatpush1.msra.mxu0 %v3882
        %v3884 = vand.u32 %v218, 4294901760
        %v3885 = vsub.f32 %v218, %v3884
        %3886 = vmatprep.subr.mxu0 %v3885
        %v3887 = vand.u32 %v217, 4294901760
        %v3888 = vsub.f32 %v217, %v3887
        %3889 = vmatpush1.msra.mxu0 %v3888
        %v3890 = vand.u32 %v220, 4294901760
        %v3891 = vsub.f32 %v220, %v3890
        %3892 = vmatprep.subr.mxu0 %v3891
        %v3893 = vand.u32 %v219, 4294901760
        %v3894 = vsub.f32 %v219, %v3893
        %3895 = vmatpush1.msra.mxu0 %v3894
        %v3896 = vand.u32 %v222, 4294901760
        %v3897 = vsub.f32 %v222, %v3896
        %3898 = vmatprep.subr.mxu0 %v3897
        %v3899 = vand.u32 %v221, 4294901760
        %v3900 = vsub.f32 %v221, %v3899
        %3901 = vmatpush1.msra.mxu0 %v3900
        %3902 = vmatprep.subr.mxu0 0.0
        %3903 = vmatpush1.msra.mxu0 0.0
        %3904 = vmatprep.subr.mxu0 0.0
        %3905 = vmatpush1.msra.mxu0 0.0
        %3906 = vmatprep.subr.mxu0 0.0
        %3907 = vmatpush1.msra.mxu0 0.0
        %3908 = vmatprep.subr.mxu0 0.0
        %3909 = vmatpush1.msra.mxu0 0.0
        %3910 = vmatprep.subr.mxu0 0.0
        %3911 = vmatpush1.msra.mxu0 0.0
        %3912 = vmatprep.subr.mxu0 0.0
        %3913 = vmatpush1.msra.mxu0 0.0
        %3914 = vmatprep.subr.mxu0 0.0
        %3915 = vmatpush1.msra.mxu0 0.0
        %3916 = vmatprep.subr.mxu0 0.0
        %3917 = vmatpush1.msra.mxu0 0.0
        %3918 = vmatprep.subr.mxu0 0.0
        %3919 = vmatpush1.msra.mxu0 0.0
        %3920 = vmatprep.subr.mxu0 0.0
        %3921 = vmatpush1.msra.mxu0 0.0
        %3922 = vmatprep.subr.mxu0 0.0
        %3923 = vmatpush1.msra.mxu0 0.0
        %3924 = vmatprep.subr.mxu0 0.0
        %3925 = vmatpush1.msra.mxu0 0.0
        %3926 = vmatprep.subr.mxu0 0.0
        %3927 = vmatpush1.msra.mxu0 0.0
        %3928 = vmatprep.subr.mxu0 0.0
        %3929 = vmatpush1.msra.mxu0 0.0
        %3930 = vmatprep.subr.mxu0 0.0
        %3931 = vmatpush1.msra.mxu0 0.0
        %3932 = vmatprep.subr.mxu0 0.0
        %3933 = vmatpush1.msra.mxu0 0.0
        %3934 = vmatprep.subr.mxu0 0.0
        %3935 = vmatpush1.msra.mxu0 0.0
        %3936 = vmatprep.subr.mxu0 0.0
        %3937 = vmatpush1.msra.mxu0 0.0
        %3938 = vmatprep.subr.mxu0 0.0
        %3939 = vmatpush1.msra.mxu0 0.0
        %3940 = vmatprep.subr.mxu0 0.0
        %3941 = vmatpush1.msra.mxu0 0.0
        %3942 = vmatprep.subr.mxu0 0.0
        %3943 = vmatpush1.msra.mxu0 0.0
        %3944 = vmatprep.subr.mxu0 0.0
        %3945 = vmatpush1.msra.mxu0 0.0
        %3946 = vmatprep.subr.mxu0 0.0
        %3947 = vmatpush1.msra.mxu0 0.0
        %3948 = vmatprep.subr.mxu0 0.0
        %3949 = vmatpush1.msra.mxu0 0.0
        %3950 = vmatprep.mubr.f32.mxu0 0.0
        %v3951 = vand.u32 %v3608, 4294901760
        %v3952 = vsub.f32 %v3608, %v3951
        %3953 = vmatmul.mubr.f32.gmra.mrb[0].mxu0 %v3952
        %v3954 = vpop.f32.mrb[0].mxu0
        %v3955 = vadd.f32 %v3850, %v3954
        %v3956 = vpop.f32.mrb[0].mxu0
        %v3957 = vadd.f32 %v3852, %v3956
        %3958 = vdwg.mxu0
        %v3959 = vand.u32 %v208, 4294901760
        %3960 = vmatprep.subr.mxu0 %v3959
        %v3961 = vand.u32 %v207, 4294901760
        %3962 = vmatpush1.msra.mxu0 %v3961
        %v3963 = vand.u32 %v210, 4294901760
        %3964 = vmatprep.subr.mxu0 %v3963
        %v3965 = vand.u32 %v209, 4294901760
        %3966 = vmatpush1.msra.mxu0 %v3965
        %v3967 = vand.u32 %v212, 4294901760
        %3968 = vmatprep.subr.mxu0 %v3967
        %v3969 = vand.u32 %v211, 4294901760
        %3970 = vmatpush1.msra.mxu0 %v3969
        %v3971 = vand.u32 %v214, 4294901760
        %3972 = vmatprep.subr.mxu0 %v3971
        %v3973 = vand.u32 %v213, 4294901760
        %3974 = vmatpush1.msra.mxu0 %v3973
        %v3975 = vand.u32 %v216, 4294901760
        %3976 = vmatprep.subr.mxu0 %v3975
        %v3977 = vand.u32 %v215, 4294901760
        %3978 = vmatpush1.msra.mxu0 %v3977
        %v3979 = vand.u32 %v218, 4294901760
        %3980 = vmatprep.subr.mxu0 %v3979
        %v3981 = vand.u32 %v217, 4294901760
        %3982 = vmatpush1.msra.mxu0 %v3981
        %v3983 = vand.u32 %v220, 4294901760
        %3984 = vmatprep.subr.mxu0 %v3983
        %v3985 = vand.u32 %v219, 4294901760
        %3986 = vmatpush1.msra.mxu0 %v3985
        %v3987 = vand.u32 %v222, 4294901760
        %3988 = vmatprep.subr.mxu0 %v3987
        %v3989 = vand.u32 %v221, 4294901760
        %3990 = vmatpush1.msra.mxu0 %v3989
        %3991 = vmatprep.subr.mxu0 0.0
        %3992 = vmatpush1.msra.mxu0 0.0
        %3993 = vmatprep.subr.mxu0 0.0
        %3994 = vmatpush1.msra.mxu0 0.0
        %3995 = vmatprep.subr.mxu0 0.0
        %3996 = vmatpush1.msra.mxu0 0.0
        %3997 = vmatprep.subr.mxu0 0.0
        %3998 = vmatpush1.msra.mxu0 0.0
        %3999 = vmatprep.subr.mxu0 0.0
        %4000 = vmatpush1.msra.mxu0 0.0
        %4001 = vmatprep.subr.mxu0 0.0
        %4002 = vmatpush1.msra.mxu0 0.0
        %4003 = vmatprep.subr.mxu0 0.0
        %4004 = vmatpush1.msra.mxu0 0.0
        %4005 = vmatprep.subr.mxu0 0.0
        %4006 = vmatpush1.msra.mxu0 0.0
        %4007 = vmatprep.subr.mxu0 0.0
        %4008 = vmatpush1.msra.mxu0 0.0
        %4009 = vmatprep.subr.mxu0 0.0
        %4010 = vmatpush1.msra.mxu0 0.0
        %4011 = vmatprep.subr.mxu0 0.0
        %4012 = vmatpush1.msra.mxu0 0.0
        %4013 = vmatprep.subr.mxu0 0.0
        %4014 = vmatpush1.msra.mxu0 0.0
        %4015 = vmatprep.subr.mxu0 0.0
        %4016 = vmatpush1.msra.mxu0 0.0
        %4017 = vmatprep.subr.mxu0 0.0
        %4018 = vmatpush1.msra.mxu0 0.0
        %4019 = vmatprep.subr.mxu0 0.0
        %4020 = vmatpush1.msra.mxu0 0.0
        %4021 = vmatprep.subr.mxu0 0.0
        %4022 = vmatpush1.msra.mxu0 0.0
        %4023 = vmatprep.subr.mxu0 0.0
        %4024 = vmatpush1.msra.mxu0 0.0
        %4025 = vmatprep.subr.mxu0 0.0
        %4026 = vmatpush1.msra.mxu0 0.0
        %4027 = vmatprep.subr.mxu0 0.0
        %4028 = vmatpush1.msra.mxu0 0.0
        %4029 = vmatprep.subr.mxu0 0.0
        %4030 = vmatpush1.msra.mxu0 0.0
        %4031 = vmatprep.subr.mxu0 0.0
        %4032 = vmatpush1.msra.mxu0 0.0
        %4033 = vmatprep.subr.mxu0 0.0
        %4034 = vmatpush1.msra.mxu0 0.0
        %4035 = vmatprep.subr.mxu0 0.0
        %4036 = vmatpush1.msra.mxu0 0.0
        %4037 = vmatprep.subr.mxu0 0.0
        %4038 = vmatpush1.msra.mxu0 0.0
        %4039 = vmatprep.mubr.f32.mxu0 0.0
        %v4040 = vand.u32 %v3608, 4294901760
        %v4041 = vsub.f32 %v3608, %v4040
        %v4042 = vand.u32 %v4041, 4294901760
        %4043 = vmatmul.mubr.f32.gmra.mrb[0].mxu0 %v4042
        %v4044 = vpop.f32.mrb[0].mxu0
        %v4045 = vadd.f32 %v3955, %v4044
        %v4046 = vpop.f32.mrb[0].mxu0
        %v4047 = vadd.f32 %v3957, %v4046
        %4048 = vdwg.mxu0
        %v4049 = vand.u32 %v208, 4294901760
        %v4050 = vsub.f32 %v208, %v4049
        %v4051 = vand.u32 %v4050, 4294901760
        %4052 = vmatprep.subr.mxu0 %v4051
        %v4053 = vand.u32 %v207, 4294901760
        %v4054 = vsub.f32 %v207, %v4053
        %v4055 = vand.u32 %v4054, 4294901760
        %4056 = vmatpush1.msra.mxu0 %v4055
        %v4057 = vand.u32 %v210, 4294901760
        %v4058 = vsub.f32 %v210, %v4057
        %v4059 = vand.u32 %v4058, 4294901760
        %4060 = vmatprep.subr.mxu0 %v4059
        %v4061 = vand.u32 %v209, 4294901760
        %v4062 = vsub.f32 %v209, %v4061
        %v4063 = vand.u32 %v4062, 4294901760
        %4064 = vmatpush1.msra.mxu0 %v4063
        %v4065 = vand.u32 %v212, 4294901760
        %v4066 = vsub.f32 %v212, %v4065
        %v4067 = vand.u32 %v4066, 4294901760
        %4068 = vmatprep.subr.mxu0 %v4067
        %v4069 = vand.u32 %v211, 4294901760
        %v4070 = vsub.f32 %v211, %v4069
        %v4071 = vand.u32 %v4070, 4294901760
        %4072 = vmatpush1.msra.mxu0 %v4071
        %v4073 = vand.u32 %v214, 4294901760
        %v4074 = vsub.f32 %v214, %v4073
        %v4075 = vand.u32 %v4074, 4294901760
        %4076 = vmatprep.subr.mxu0 %v4075
        %v4077 = vand.u32 %v213, 4294901760
        %v4078 = vsub.f32 %v213, %v4077
        %v4079 = vand.u32 %v4078, 4294901760
        %4080 = vmatpush1.msra.mxu0 %v4079
        %v4081 = vand.u32 %v216, 4294901760
        %v4082 = vsub.f32 %v216, %v4081
        %v4083 = vand.u32 %v4082, 4294901760
        %4084 = vmatprep.subr.mxu0 %v4083
        %v4085 = vand.u32 %v215, 4294901760
        %v4086 = vsub.f32 %v215, %v4085
        %v4087 = vand.u32 %v4086, 4294901760
        %4088 = vmatpush1.msra.mxu0 %v4087
        %v4089 = vand.u32 %v218, 4294901760
        %v4090 = vsub.f32 %v218, %v4089
        %v4091 = vand.u32 %v4090, 4294901760
        %4092 = vmatprep.subr.mxu0 %v4091
        %v4093 = vand.u32 %v217, 4294901760
        %v4094 = vsub.f32 %v217, %v4093
        %v4095 = vand.u32 %v4094, 4294901760
        %4096 = vmatpush1.msra.mxu0 %v4095
        %v4097 = vand.u32 %v220, 4294901760
        %v4098 = vsub.f32 %v220, %v4097
        %v4099 = vand.u32 %v4098, 4294901760
        %4100 = vmatprep.subr.mxu0 %v4099
        %v4101 = vand.u32 %v219, 4294901760
        %v4102 = vsub.f32 %v219, %v4101
        %v4103 = vand.u32 %v4102, 4294901760
        %4104 = vmatpush1.msra.mxu0 %v4103
        %v4105 = vand.u32 %v222, 4294901760
        %v4106 = vsub.f32 %v222, %v4105
        %v4107 = vand.u32 %v4106, 4294901760
        %4108 = vmatprep.subr.mxu0 %v4107
        %v4109 = vand.u32 %v221, 4294901760
        %v4110 = vsub.f32 %v221, %v4109
        %v4111 = vand.u32 %v4110, 4294901760
        %4112 = vmatpush1.msra.mxu0 %v4111
        %4113 = vmatprep.subr.mxu0 0.0
        %4114 = vmatpush1.msra.mxu0 0.0
        %4115 = vmatprep.subr.mxu0 0.0
        %4116 = vmatpush1.msra.mxu0 0.0
        %4117 = vmatprep.subr.mxu0 0.0
        %4118 = vmatpush1.msra.mxu0 0.0
        %4119 = vmatprep.subr.mxu0 0.0
        %4120 = vmatpush1.msra.mxu0 0.0
        %4121 = vmatprep.subr.mxu0 0.0
        %4122 = vmatpush1.msra.mxu0 0.0
        %4123 = vmatprep.subr.mxu0 0.0
        %4124 = vmatpush1.msra.mxu0 0.0
        %4125 = vmatprep.subr.mxu0 0.0
        %4126 = vmatpush1.msra.mxu0 0.0
        %4127 = vmatprep.subr.mxu0 0.0
        %4128 = vmatpush1.msra.mxu0 0.0
        %4129 = vmatprep.subr.mxu0 0.0
        %4130 = vmatpush1.msra.mxu0 0.0
        %4131 = vmatprep.subr.mxu0 0.0
        %4132 = vmatpush1.msra.mxu0 0.0
        %4133 = vmatprep.subr.mxu0 0.0
        %4134 = vmatpush1.msra.mxu0 0.0
        %4135 = vmatprep.subr.mxu0 0.0
        %4136 = vmatpush1.msra.mxu0 0.0
        %4137 = vmatprep.subr.mxu0 0.0
        %4138 = vmatpush1.msra.mxu0 0.0
        %4139 = vmatprep.subr.mxu0 0.0
        %4140 = vmatpush1.msra.mxu0 0.0
        %4141 = vmatprep.subr.mxu0 0.0
        %4142 = vmatpush1.msra.mxu0 0.0
        %4143 = vmatprep.subr.mxu0 0.0
        %4144 = vmatpush1.msra.mxu0 0.0
        %4145 = vmatprep.subr.mxu0 0.0
        %4146 = vmatpush1.msra.mxu0 0.0
        %4147 = vmatprep.subr.mxu0 0.0
        %4148 = vmatpush1.msra.mxu0 0.0
        %4149 = vmatprep.subr.mxu0 0.0
        %4150 = vmatpush1.msra.mxu0 0.0
        %4151 = vmatprep.subr.mxu0 0.0
        %4152 = vmatpush1.msra.mxu0 0.0
        %4153 = vmatprep.subr.mxu0 0.0
        %4154 = vmatpush1.msra.mxu0 0.0
        %4155 = vmatprep.subr.mxu0 0.0
        %4156 = vmatpush1.msra.mxu0 0.0
        %4157 = vmatprep.subr.mxu0 0.0
        %4158 = vmatpush1.msra.mxu0 0.0
        %4159 = vmatprep.subr.mxu0 0.0
        %4160 = vmatpush1.msra.mxu0 0.0
        %4161 = vmatprep.mubr.f32.mxu0 0.0
        %v4162 = vand.u32 %v3608, 4294901760
        %4163 = vmatmul.mubr.f32.gmra.mrb[0].mxu0 %v4162
        %v4164 = vpop.f32.mrb[0].mxu0
        %v4165 = vadd.f32 %v4045, %v4164
        %v4166 = vpop.f32.mrb[0].mxu0
        %v4167 = vadd.f32 %v4047, %v4166
        %4168 = vdwg.mxu0
        %v4169 = vand.u32 %v208, 4294901760
        %4170 = vmatprep.subr.mxu0 %v4169
        %v4171 = vand.u32 %v207, 4294901760
        %4172 = vmatpush1.msra.mxu0 %v4171
        %v4173 = vand.u32 %v210, 4294901760
        %4174 = vmatprep.subr.mxu0 %v4173
        %v4175 = vand.u32 %v209, 4294901760
        %4176 = vmatpush1.msra.mxu0 %v4175
        %v4177 = vand.u32 %v212, 4294901760
        %4178 = vmatprep.subr.mxu0 %v4177
        %v4179 = vand.u32 %v211, 4294901760
        %4180 = vmatpush1.msra.mxu0 %v4179
        %v4181 = vand.u32 %v214, 4294901760
        %4182 = vmatprep.subr.mxu0 %v4181
        %v4183 = vand.u32 %v213, 4294901760
        %4184 = vmatpush1.msra.mxu0 %v4183
        %v4185 = vand.u32 %v216, 4294901760
        %4186 = vmatprep.subr.mxu0 %v4185
        %v4187 = vand.u32 %v215, 4294901760
        %4188 = vmatpush1.msra.mxu0 %v4187
        %v4189 = vand.u32 %v218, 4294901760
        %4190 = vmatprep.subr.mxu0 %v4189
        %v4191 = vand.u32 %v217, 4294901760
        %4192 = vmatpush1.msra.mxu0 %v4191
        %v4193 = vand.u32 %v220, 4294901760
        %4194 = vmatprep.subr.mxu0 %v4193
        %v4195 = vand.u32 %v219, 4294901760
        %4196 = vmatpush1.msra.mxu0 %v4195
        %v4197 = vand.u32 %v222, 4294901760
        %4198 = vmatprep.subr.mxu0 %v4197
        %v4199 = vand.u32 %v221, 4294901760
        %4200 = vmatpush1.msra.mxu0 %v4199
        %4201 = vmatprep.subr.mxu0 0.0
        %4202 = vmatpush1.msra.mxu0 0.0
        %4203 = vmatprep.subr.mxu0 0.0
        %4204 = vmatpush1.msra.mxu0 0.0
        %4205 = vmatprep.subr.mxu0 0.0
        %4206 = vmatpush1.msra.mxu0 0.0
        %4207 = vmatprep.subr.mxu0 0.0
        %4208 = vmatpush1.msra.mxu0 0.0
        %4209 = vmatprep.subr.mxu0 0.0
        %4210 = vmatpush1.msra.mxu0 0.0
        %4211 = vmatprep.subr.mxu0 0.0
        %4212 = vmatpush1.msra.mxu0 0.0
        %4213 = vmatprep.subr.mxu0 0.0
        %4214 = vmatpush1.msra.mxu0 0.0
        %4215 = vmatprep.subr.mxu0 0.0
        %4216 = vmatpush1.msra.mxu0 0.0
        %4217 = vmatprep.subr.mxu0 0.0
        %4218 = vmatpush1.msra.mxu0 0.0
        %4219 = vmatprep.subr.mxu0 0.0
        %4220 = vmatpush1.msra.mxu0 0.0
        %4221 = vmatprep.subr.mxu0 0.0
        %4222 = vmatpush1.msra.mxu0 0.0
        %4223 = vmatprep.subr.mxu0 0.0
        %4224 = vmatpush1.msra.mxu0 0.0
        %4225 = vmatprep.subr.mxu0 0.0
        %4226 = vmatpush1.msra.mxu0 0.0
        %4227 = vmatprep.subr.mxu0 0.0
        %4228 = vmatpush1.msra.mxu0 0.0
        %4229 = vmatprep.subr.mxu0 0.0
        %4230 = vmatpush1.msra.mxu0 0.0
        %4231 = vmatprep.subr.mxu0 0.0
        %4232 = vmatpush1.msra.mxu0 0.0
        %4233 = vmatprep.subr.mxu0 0.0
        %4234 = vmatpush1.msra.mxu0 0.0
        %4235 = vmatprep.subr.mxu0 0.0
        %4236 = vmatpush1.msra.mxu0 0.0
        %4237 = vmatprep.subr.mxu0 0.0
        %4238 = vmatpush1.msra.mxu0 0.0
        %4239 = vmatprep.subr.mxu0 0.0
        %4240 = vmatpush1.msra.mxu0 0.0
        %4241 = vmatprep.subr.mxu0 0.0
        %4242 = vmatpush1.msra.mxu0 0.0
        %4243 = vmatprep.subr.mxu0 0.0
        %4244 = vmatpush1.msra.mxu0 0.0
        %4245 = vmatprep.subr.mxu0 0.0
        %4246 = vmatpush1.msra.mxu0 0.0
        %4247 = vmatprep.subr.mxu0 0.0
        %4248 = vmatpush1.msra.mxu0 0.0
        %4249 = vmatprep.mubr.f32.mxu0 0.0
        %v4250 = vand.u32 %v3608, 4294901760
        %4251 = vmatmul.mubr.f32.gmra.mrb[0].mxu0 %v4250
        %v4252 = vpop.f32.mrb[0].mxu0
        %v4253 = vadd.f32 %v4165, %v4252
        %v4254 = vpop.f32.mrb[0].mxu0
        %v4255 = vadd.f32 %v4167, %v4254
        %4256 = vdwg.mxu0
        %v4258 = vsel %vm879, %v4253, 0
        %v4261 = vsel %vm879, %v4255, 0
        %v4263 = vand.u32 %v4261, 4294901760
        %4264 = vmatprep.subr.mxu0 %v4263
        %v4265 = vand.u32 %v4258, 4294901760
        %4266 = vmatpush1.msra.mxu0 %v4265
        %4267 = vmatprep.subr.mxu0 0.0
        %4268 = vmatpush1.msra.mxu0 0.0
        %4269 = vmatprep.subr.mxu0 0.0
        %4270 = vmatpush1.msra.mxu0 0.0
        %4271 = vmatprep.subr.mxu0 0.0
        %4272 = vmatpush1.msra.mxu0 0.0
        %4273 = vmatprep.subr.mxu0 0.0
        %4274 = vmatpush1.msra.mxu0 0.0
        %4275 = vmatprep.subr.mxu0 0.0
        %4276 = vmatpush1.msra.mxu0 0.0
        %4277 = vmatprep.subr.mxu0 0.0
        %4278 = vmatpush1.msra.mxu0 0.0
        %4279 = vmatprep.subr.mxu0 0.0
        %4280 = vmatpush1.msra.mxu0 0.0
        %4281 = vmatprep.subr.mxu0 0.0
        %4282 = vmatpush1.msra.mxu0 0.0
        %4283 = vmatprep.subr.mxu0 0.0
        %4284 = vmatpush1.msra.mxu0 0.0
        %4285 = vmatprep.subr.mxu0 0.0
        %4286 = vmatpush1.msra.mxu0 0.0
        %4287 = vmatprep.subr.mxu0 0.0
        %4288 = vmatpush1.msra.mxu0 0.0
        %4289 = vmatprep.subr.mxu0 0.0
        %4290 = vmatpush1.msra.mxu0 0.0
        %4291 = vmatprep.subr.mxu0 0.0
        %4292 = vmatpush1.msra.mxu0 0.0
        %4293 = vmatprep.subr.mxu0 0.0
        %4294 = vmatpush1.msra.mxu0 0.0
        %4295 = vmatprep.subr.mxu0 0.0
        %4296 = vmatpush1.msra.mxu0 0.0
        %4297 = vmatprep.subr.mxu0 0.0
        %4298 = vmatpush1.msra.mxu0 0.0
        %4299 = vmatprep.subr.mxu0 0.0
        %4300 = vmatpush1.msra.mxu0 0.0
        %4301 = vmatprep.subr.mxu0 0.0
        %4302 = vmatpush1.msra.mxu0 0.0
        %4303 = vmatprep.subr.mxu0 0.0
        %4304 = vmatpush1.msra.mxu0 0.0
        %4305 = vmatprep.subr.mxu0 0.0
        %4306 = vmatpush1.msra.mxu0 0.0
        %4307 = vmatprep.subr.mxu0 0.0
        %4308 = vmatpush1.msra.mxu0 0.0
        %4309 = vmatprep.subr.mxu0 0.0
        %4310 = vmatpush1.msra.mxu0 0.0
        %4311 = vmatprep.subr.mxu0 0.0
        %4312 = vmatpush1.msra.mxu0 0.0
        %4313 = vmatprep.subr.mxu0 0.0
        %4314 = vmatpush1.msra.mxu0 0.0
        %4315 = vmatprep.subr.mxu0 0.0
        %4316 = vmatpush1.msra.mxu0 0.0
        %4317 = vmatprep.subr.mxu0 0.0
        %4318 = vmatpush1.msra.mxu0 0.0
        %4319 = vmatprep.subr.mxu0 0.0
        %4320 = vmatpush1.msra.mxu0 0.0
        %4321 = vmatprep.subr.mxu0 0.0
        %4322 = vmatpush1.msra.mxu0 0.0
        %4323 = vmatprep.subr.mxu0 0.0
        %4324 = vmatpush1.msra.mxu0 0.0
        %4325 = vmatprep.subr.mxu0 0.0
        %4326 = vmatpush1.msra.mxu0 0.0
        %4327 = vmatprep.subr.mxu0 0.0
        %4328 = vmatpush1.msra.mxu0 0.0
        %4329 = vmatprep.mubr.f32.mxu0 0.0
        %v4330 = vand.u32 %v877, 4294901760
        %v4331 = vsub.f32 %v877, %v4330
        %v4332 = vand.u32 %v4331, 4294901760
        %v4333 = vsub.f32 %v4331, %v4332
        %v4334 = vand.u32 %v4333, 4294901760
        %4335 = vmatmul.mubr.f32.gmra.mrb[0].mxu0 %v4334
        %v4336 = vpop.f32.mrb[0].mxu0
        %v4337 = vadd.f32 0.0, %v4336
        %v4338 = vpop.f32.mrb[0].mxu0
        %v4339 = vadd.f32 0.0, %v4338
        %4340 = vdwg.mxu0
        %v4341 = vand.u32 %v4261, 4294901760
        %v4342 = vsub.f32 %v4261, %v4341
        %v4343 = vand.u32 %v4342, 4294901760
        %v4344 = vsub.f32 %v4342, %v4343
        %v4345 = vand.u32 %v4344, 4294901760
        %4346 = vmatprep.subr.mxu0 %v4345
        %v4347 = vand.u32 %v4258, 4294901760
        %v4348 = vsub.f32 %v4258, %v4347
        %v4349 = vand.u32 %v4348, 4294901760
        %v4350 = vsub.f32 %v4348, %v4349
        %v4351 = vand.u32 %v4350, 4294901760
        %4352 = vmatpush1.msra.mxu0 %v4351
        %4353 = vmatprep.subr.mxu0 0.0
        %4354 = vmatpush1.msra.mxu0 0.0
        %4355 = vmatprep.subr.mxu0 0.0
        %4356 = vmatpush1.msra.mxu0 0.0
        %4357 = vmatprep.subr.mxu0 0.0
        %4358 = vmatpush1.msra.mxu0 0.0
        %4359 = vmatprep.subr.mxu0 0.0
        %4360 = vmatpush1.msra.mxu0 0.0
        %4361 = vmatprep.subr.mxu0 0.0
        %4362 = vmatpush1.msra.mxu0 0.0
        %4363 = vmatprep.subr.mxu0 0.0
        %4364 = vmatpush1.msra.mxu0 0.0
        %4365 = vmatprep.subr.mxu0 0.0
        %4366 = vmatpush1.msra.mxu0 0.0
        %4367 = vmatprep.subr.mxu0 0.0
        %4368 = vmatpush1.msra.mxu0 0.0
        %4369 = vmatprep.subr.mxu0 0.0
        %4370 = vmatpush1.msra.mxu0 0.0
        %4371 = vmatprep.subr.mxu0 0.0
        %4372 = vmatpush1.msra.mxu0 0.0
        %4373 = vmatprep.subr.mxu0 0.0
        %4374 = vmatpush1.msra.mxu0 0.0
        %4375 = vmatprep.subr.mxu0 0.0
        %4376 = vmatpush1.msra.mxu0 0.0
        %4377 = vmatprep.subr.mxu0 0.0
        %4378 = vmatpush1.msra.mxu0 0.0
        %4379 = vmatprep.subr.mxu0 0.0
        %4380 = vmatpush1.msra.mxu0 0.0
        %4381 = vmatprep.subr.mxu0 0.0
        %4382 = vmatpush1.msra.mxu0 0.0
        %4383 = vmatprep.subr.mxu0 0.0
        %4384 = vmatpush1.msra.mxu0 0.0
        %4385 = vmatprep.subr.mxu0 0.0
        %4386 = vmatpush1.msra.mxu0 0.0
        %4387 = vmatprep.subr.mxu0 0.0
        %4388 = vmatpush1.msra.mxu0 0.0
        %4389 = vmatprep.subr.mxu0 0.0
        %4390 = vmatpush1.msra.mxu0 0.0
        %4391 = vmatprep.subr.mxu0 0.0
        %4392 = vmatpush1.msra.mxu0 0.0
        %4393 = vmatprep.subr.mxu0 0.0
        %4394 = vmatpush1.msra.mxu0 0.0
        %4395 = vmatprep.subr.mxu0 0.0
        %4396 = vmatpush1.msra.mxu0 0.0
        %4397 = vmatprep.subr.mxu0 0.0
        %4398 = vmatpush1.msra.mxu0 0.0
        %4399 = vmatprep.subr.mxu0 0.0
        %4400 = vmatpush1.msra.mxu0 0.0
        %4401 = vmatprep.subr.mxu0 0.0
        %4402 = vmatpush1.msra.mxu0 0.0
        %4403 = vmatprep.subr.mxu0 0.0
        %4404 = vmatpush1.msra.mxu0 0.0
        %4405 = vmatprep.subr.mxu0 0.0
        %4406 = vmatpush1.msra.mxu0 0.0
        %4407 = vmatprep.subr.mxu0 0.0
        %4408 = vmatpush1.msra.mxu0 0.0
        %4409 = vmatprep.subr.mxu0 0.0
        %4410 = vmatpush1.msra.mxu0 0.0
        %4411 = vmatprep.subr.mxu0 0.0
        %4412 = vmatpush1.msra.mxu0 0.0
        %4413 = vmatprep.subr.mxu0 0.0
        %4414 = vmatpush1.msra.mxu0 0.0
        %4415 = vmatprep.mubr.f32.mxu0 0.0
        %v4416 = vand.u32 %v877, 4294901760
        %4417 = vmatmul.mubr.f32.gmra.mrb[0].mxu0 %v4416
        %v4418 = vpop.f32.mrb[0].mxu0
        %v4419 = vadd.f32 %v4337, %v4418
        %v4420 = vpop.f32.mrb[0].mxu0
        %v4421 = vadd.f32 %v4339, %v4420
        %4422 = vdwg.mxu0
        %v4423 = vand.u32 %v4261, 4294901760
        %v4424 = vsub.f32 %v4261, %v4423
        %4425 = vmatprep.subr.mxu0 %v4424
        %v4426 = vand.u32 %v4258, 4294901760
        %v4427 = vsub.f32 %v4258, %v4426
        %4428 = vmatpush1.msra.mxu0 %v4427
        %4429 = vmatprep.subr.mxu0 0.0
        %4430 = vmatpush1.msra.mxu0 0.0
        %4431 = vmatprep.subr.mxu0 0.0
        %4432 = vmatpush1.msra.mxu0 0.0
        %4433 = vmatprep.subr.mxu0 0.0
        %4434 = vmatpush1.msra.mxu0 0.0
        %4435 = vmatprep.subr.mxu0 0.0
        %4436 = vmatpush1.msra.mxu0 0.0
        %4437 = vmatprep.subr.mxu0 0.0
        %4438 = vmatpush1.msra.mxu0 0.0
        %4439 = vmatprep.subr.mxu0 0.0
        %4440 = vmatpush1.msra.mxu0 0.0
        %4441 = vmatprep.subr.mxu0 0.0
        %4442 = vmatpush1.msra.mxu0 0.0
        %4443 = vmatprep.subr.mxu0 0.0
        %4444 = vmatpush1.msra.mxu0 0.0
        %4445 = vmatprep.subr.mxu0 0.0
        %4446 = vmatpush1.msra.mxu0 0.0
        %4447 = vmatprep.subr.mxu0 0.0
        %4448 = vmatpush1.msra.mxu0 0.0
        %4449 = vmatprep.subr.mxu0 0.0
        %4450 = vmatpush1.msra.mxu0 0.0
        %4451 = vmatprep.subr.mxu0 0.0
        %4452 = vmatpush1.msra.mxu0 0.0
        %4453 = vmatprep.subr.mxu0 0.0
        %4454 = vmatpush1.msra.mxu0 0.0
        %4455 = vmatprep.subr.mxu0 0.0
        %4456 = vmatpush1.msra.mxu0 0.0
        %4457 = vmatprep.subr.mxu0 0.0
        %4458 = vmatpush1.msra.mxu0 0.0
        %4459 = vmatprep.subr.mxu0 0.0
        %4460 = vmatpush1.msra.mxu0 0.0
        %4461 = vmatprep.subr.mxu0 0.0
        %4462 = vmatpush1.msra.mxu0 0.0
        %4463 = vmatprep.subr.mxu0 0.0
        %4464 = vmatpush1.msra.mxu0 0.0
        %4465 = vmatprep.subr.mxu0 0.0
        %4466 = vmatpush1.msra.mxu0 0.0
        %4467 = vmatprep.subr.mxu0 0.0
        %4468 = vmatpush1.msra.mxu0 0.0
        %4469 = vmatprep.subr.mxu0 0.0
        %4470 = vmatpush1.msra.mxu0 0.0
        %4471 = vmatprep.subr.mxu0 0.0
        %4472 = vmatpush1.msra.mxu0 0.0
        %4473 = vmatprep.subr.mxu0 0.0
        %4474 = vmatpush1.msra.mxu0 0.0
        %4475 = vmatprep.subr.mxu0 0.0
        %4476 = vmatpush1.msra.mxu0 0.0
        %4477 = vmatprep.subr.mxu0 0.0
        %4478 = vmatpush1.msra.mxu0 0.0
        %4479 = vmatprep.subr.mxu0 0.0
        %4480 = vmatpush1.msra.mxu0 0.0
        %4481 = vmatprep.subr.mxu0 0.0
        %4482 = vmatpush1.msra.mxu0 0.0
        %4483 = vmatprep.subr.mxu0 0.0
        %4484 = vmatpush1.msra.mxu0 0.0
        %4485 = vmatprep.subr.mxu0 0.0
        %4486 = vmatpush1.msra.mxu0 0.0
        %4487 = vmatprep.subr.mxu0 0.0
        %4488 = vmatpush1.msra.mxu0 0.0
        %4489 = vmatprep.subr.mxu0 0.0
        %4490 = vmatpush1.msra.mxu0 0.0
        %4491 = vmatprep.mubr.f32.mxu0 0.0
        %v4492 = vand.u32 %v877, 4294901760
        %v4493 = vsub.f32 %v877, %v4492
        %4494 = vmatmul.mubr.f32.gmra.mrb[0].mxu0 %v4493
        %v4495 = vpop.f32.mrb[0].mxu0
        %v4496 = vadd.f32 %v4419, %v4495
        %v4497 = vpop.f32.mrb[0].mxu0
        %v4498 = vadd.f32 %v4421, %v4497
        %4499 = vdwg.mxu0
        %v4500 = vand.u32 %v4261, 4294901760
        %4501 = vmatprep.subr.mxu0 %v4500
        %v4502 = vand.u32 %v4258, 4294901760
        %4503 = vmatpush1.msra.mxu0 %v4502
        %4504 = vmatprep.subr.mxu0 0.0
        %4505 = vmatpush1.msra.mxu0 0.0
        %4506 = vmatprep.subr.mxu0 0.0
        %4507 = vmatpush1.msra.mxu0 0.0
        %4508 = vmatprep.subr.mxu0 0.0
        %4509 = vmatpush1.msra.mxu0 0.0
        %4510 = vmatprep.subr.mxu0 0.0
        %4511 = vmatpush1.msra.mxu0 0.0
        %4512 = vmatprep.subr.mxu0 0.0
        %4513 = vmatpush1.msra.mxu0 0.0
        %4514 = vmatprep.subr.mxu0 0.0
        %4515 = vmatpush1.msra.mxu0 0.0
        %4516 = vmatprep.subr.mxu0 0.0
        %4517 = vmatpush1.msra.mxu0 0.0
        %4518 = vmatprep.subr.mxu0 0.0
        %4519 = vmatpush1.msra.mxu0 0.0
        %4520 = vmatprep.subr.mxu0 0.0
        %4521 = vmatpush1.msra.mxu0 0.0
        %4522 = vmatprep.subr.mxu0 0.0
        %4523 = vmatpush1.msra.mxu0 0.0
        %4524 = vmatprep.subr.mxu0 0.0
        %4525 = vmatpush1.msra.mxu0 0.0
        %4526 = vmatprep.subr.mxu0 0.0
        %4527 = vmatpush1.msra.mxu0 0.0
        %4528 = vmatprep.subr.mxu0 0.0
        %4529 = vmatpush1.msra.mxu0 0.0
        %4530 = vmatprep.subr.mxu0 0.0
        %4531 = vmatpush1.msra.mxu0 0.0
        %4532 = vmatprep.subr.mxu0 0.0
        %4533 = vmatpush1.msra.mxu0 0.0
        %4534 = vmatprep.subr.mxu0 0.0
        %4535 = vmatpush1.msra.mxu0 0.0
        %4536 = vmatprep.subr.mxu0 0.0
        %4537 = vmatpush1.msra.mxu0 0.0
        %4538 = vmatprep.subr.mxu0 0.0
        %4539 = vmatpush1.msra.mxu0 0.0
        %4540 = vmatprep.subr.mxu0 0.0
        %4541 = vmatpush1.msra.mxu0 0.0
        %4542 = vmatprep.subr.mxu0 0.0
        %4543 = vmatpush1.msra.mxu0 0.0
        %4544 = vmatprep.subr.mxu0 0.0
        %4545 = vmatpush1.msra.mxu0 0.0
        %4546 = vmatprep.subr.mxu0 0.0
        %4547 = vmatpush1.msra.mxu0 0.0
        %4548 = vmatprep.subr.mxu0 0.0
        %4549 = vmatpush1.msra.mxu0 0.0
        %4550 = vmatprep.subr.mxu0 0.0
        %4551 = vmatpush1.msra.mxu0 0.0
        %4552 = vmatprep.subr.mxu0 0.0
        %4553 = vmatpush1.msra.mxu0 0.0
        %4554 = vmatprep.subr.mxu0 0.0
        %4555 = vmatpush1.msra.mxu0 0.0
        %4556 = vmatprep.subr.mxu0 0.0
        %4557 = vmatpush1.msra.mxu0 0.0
        %4558 = vmatprep.subr.mxu0 0.0
        %4559 = vmatpush1.msra.mxu0 0.0
        %4560 = vmatprep.subr.mxu0 0.0
        %4561 = vmatpush1.msra.mxu0 0.0
        %4562 = vmatprep.subr.mxu0 0.0
        %4563 = vmatpush1.msra.mxu0 0.0
        %4564 = vmatprep.subr.mxu0 0.0
        %4565 = vmatpush1.msra.mxu0 0.0
        %4566 = vmatprep.mubr.f32.mxu0 0.0
        %v4567 = vand.u32 %v877, 4294901760
        %v4568 = vsub.f32 %v877, %v4567
        %v4569 = vand.u32 %v4568, 4294901760
        %4570 = vmatmul.mubr.f32.gmra.mrb[0].mxu0 %v4569
        %v4571 = vpop.f32.mrb[0].mxu0
        %v4572 = vadd.f32 %v4496, %v4571
        %v4573 = vpop.f32.mrb[0].mxu0
        %v4574 = vadd.f32 %v4498, %v4573
        %4575 = vdwg.mxu0
        %v4576 = vand.u32 %v4261, 4294901760
        %v4577 = vsub.f32 %v4261, %v4576
        %v4578 = vand.u32 %v4577, 4294901760
        %4579 = vmatprep.subr.mxu0 %v4578
        %v4580 = vand.u32 %v4258, 4294901760
        %v4581 = vsub.f32 %v4258, %v4580
        %v4582 = vand.u32 %v4581, 4294901760
        %4583 = vmatpush1.msra.mxu0 %v4582
        %4584 = vmatprep.subr.mxu0 0.0
        %4585 = vmatpush1.msra.mxu0 0.0
        %4586 = vmatprep.subr.mxu0 0.0
        %4587 = vmatpush1.msra.mxu0 0.0
        %4588 = vmatprep.subr.mxu0 0.0
        %4589 = vmatpush1.msra.mxu0 0.0
        %4590 = vmatprep.subr.mxu0 0.0
        %4591 = vmatpush1.msra.mxu0 0.0
        %4592 = vmatprep.subr.mxu0 0.0
        %4593 = vmatpush1.msra.mxu0 0.0
        %4594 = vmatprep.subr.mxu0 0.0
        %4595 = vmatpush1.msra.mxu0 0.0
        %4596 = vmatprep.subr.mxu0 0.0
        %4597 = vmatpush1.msra.mxu0 0.0
        %4598 = vmatprep.subr.mxu0 0.0
        %4599 = vmatpush1.msra.mxu0 0.0
        %4600 = vmatprep.subr.mxu0 0.0
        %4601 = vmatpush1.msra.mxu0 0.0
        %4602 = vmatprep.subr.mxu0 0.0
        %4603 = vmatpush1.msra.mxu0 0.0
        %4604 = vmatprep.subr.mxu0 0.0
        %4605 = vmatpush1.msra.mxu0 0.0
        %4606 = vmatprep.subr.mxu0 0.0
        %4607 = vmatpush1.msra.mxu0 0.0
        %4608 = vmatprep.subr.mxu0 0.0
        %4609 = vmatpush1.msra.mxu0 0.0
        %4610 = vmatprep.subr.mxu0 0.0
        %4611 = vmatpush1.msra.mxu0 0.0
        %4612 = vmatprep.subr.mxu0 0.0
        %4613 = vmatpush1.msra.mxu0 0.0
        %4614 = vmatprep.subr.mxu0 0.0
        %4615 = vmatpush1.msra.mxu0 0.0
        %4616 = vmatprep.subr.mxu0 0.0
        %4617 = vmatpush1.msra.mxu0 0.0
        %4618 = vmatprep.subr.mxu0 0.0
        %4619 = vmatpush1.msra.mxu0 0.0
        %4620 = vmatprep.subr.mxu0 0.0
        %4621 = vmatpush1.msra.mxu0 0.0
        %4622 = vmatprep.subr.mxu0 0.0
        %4623 = vmatpush1.msra.mxu0 0.0
        %4624 = vmatprep.subr.mxu0 0.0
        %4625 = vmatpush1.msra.mxu0 0.0
        %4626 = vmatprep.subr.mxu0 0.0
        %4627 = vmatpush1.msra.mxu0 0.0
        %4628 = vmatprep.subr.mxu0 0.0
        %4629 = vmatpush1.msra.mxu0 0.0
        %4630 = vmatprep.subr.mxu0 0.0
        %4631 = vmatpush1.msra.mxu0 0.0
        %4632 = vmatprep.subr.mxu0 0.0
        %4633 = vmatpush1.msra.mxu0 0.0
        %4634 = vmatprep.subr.mxu0 0.0
        %4635 = vmatpush1.msra.mxu0 0.0
        %4636 = vmatprep.subr.mxu0 0.0
        %4637 = vmatpush1.msra.mxu0 0.0
        %4638 = vmatprep.subr.mxu0 0.0
        %4639 = vmatpush1.msra.mxu0 0.0
        %4640 = vmatprep.subr.mxu0 0.0
        %4641 = vmatpush1.msra.mxu0 0.0
        %4642 = vmatprep.subr.mxu0 0.0
        %4643 = vmatpush1.msra.mxu0 0.0
        %4644 = vmatprep.subr.mxu0 0.0
        %4645 = vmatpush1.msra.mxu0 0.0
        %4646 = vmatprep.mubr.f32.mxu0 0.0
        %v4647 = vand.u32 %v877, 4294901760
        %4648 = vmatmul.mubr.f32.gmra.mrb[0].mxu0 %v4647
        %v4649 = vpop.f32.mrb[0].mxu0
        %v4650 = vadd.f32 %v4572, %v4649
        %v4651 = vpop.f32.mrb[0].mxu0
        %v4652 = vadd.f32 %v4574, %v4651
        %4653 = vdwg.mxu0
        %v4654 = vand.u32 %v4261, 4294901760
        %4655 = vmatprep.subr.mxu0 %v4654
        %v4656 = vand.u32 %v4258, 4294901760
        %4657 = vmatpush1.msra.mxu0 %v4656
        %4658 = vmatprep.subr.mxu0 0.0
        %4659 = vmatpush1.msra.mxu0 0.0
        %4660 = vmatprep.subr.mxu0 0.0
        %4661 = vmatpush1.msra.mxu0 0.0
        %4662 = vmatprep.subr.mxu0 0.0
        %4663 = vmatpush1.msra.mxu0 0.0
        %4664 = vmatprep.subr.mxu0 0.0
        %4665 = vmatpush1.msra.mxu0 0.0
        %4666 = vmatprep.subr.mxu0 0.0
        %4667 = vmatpush1.msra.mxu0 0.0
        %4668 = vmatprep.subr.mxu0 0.0
        %4669 = vmatpush1.msra.mxu0 0.0
        %4670 = vmatprep.subr.mxu0 0.0
        %4671 = vmatpush1.msra.mxu0 0.0
        %4672 = vmatprep.subr.mxu0 0.0
        %4673 = vmatpush1.msra.mxu0 0.0
        %4674 = vmatprep.subr.mxu0 0.0
        %4675 = vmatpush1.msra.mxu0 0.0
        %4676 = vmatprep.subr.mxu0 0.0
        %4677 = vmatpush1.msra.mxu0 0.0
        %4678 = vmatprep.subr.mxu0 0.0
        %4679 = vmatpush1.msra.mxu0 0.0
        %4680 = vmatprep.subr.mxu0 0.0
        %4681 = vmatpush1.msra.mxu0 0.0
        %4682 = vmatprep.subr.mxu0 0.0
        %4683 = vmatpush1.msra.mxu0 0.0
        %4684 = vmatprep.subr.mxu0 0.0
        %4685 = vmatpush1.msra.mxu0 0.0
        %4686 = vmatprep.subr.mxu0 0.0
        %4687 = vmatpush1.msra.mxu0 0.0
        %4688 = vmatprep.subr.mxu0 0.0
        %4689 = vmatpush1.msra.mxu0 0.0
        %4690 = vmatprep.subr.mxu0 0.0
        %4691 = vmatpush1.msra.mxu0 0.0
        %4692 = vmatprep.subr.mxu0 0.0
        %4693 = vmatpush1.msra.mxu0 0.0
        %4694 = vmatprep.subr.mxu0 0.0
        %4695 = vmatpush1.msra.mxu0 0.0
        %4696 = vmatprep.subr.mxu0 0.0
        %4697 = vmatpush1.msra.mxu0 0.0
        %4698 = vmatprep.subr.mxu0 0.0
        %4699 = vmatpush1.msra.mxu0 0.0
        %4700 = vmatprep.subr.mxu0 0.0
        %4701 = vmatpush1.msra.mxu0 0.0
        %4702 = vmatprep.subr.mxu0 0.0
        %4703 = vmatpush1.msra.mxu0 0.0
        %4704 = vmatprep.subr.mxu0 0.0
        %4705 = vmatpush1.msra.mxu0 0.0
        %4706 = vmatprep.subr.mxu0 0.0
        %4707 = vmatpush1.msra.mxu0 0.0
        %4708 = vmatprep.subr.mxu0 0.0
        %4709 = vmatpush1.msra.mxu0 0.0
        %4710 = vmatprep.subr.mxu0 0.0
        %4711 = vmatpush1.msra.mxu0 0.0
        %4712 = vmatprep.subr.mxu0 0.0
        %4713 = vmatpush1.msra.mxu0 0.0
        %4714 = vmatprep.subr.mxu0 0.0
        %4715 = vmatpush1.msra.mxu0 0.0
        %4716 = vmatprep.subr.mxu0 0.0
        %4717 = vmatpush1.msra.mxu0 0.0
        %4718 = vmatprep.subr.mxu0 0.0
        %4719 = vmatpush1.msra.mxu0 0.0
        %4720 = vmatprep.mubr.f32.mxu0 0.0
        %v4721 = vand.u32 %v877, 4294901760
        %4722 = vmatmul.mubr.f32.gmra.mrb[0].mxu0 %v4721
        %v4723 = vpop.f32.mrb[0].mxu0
        %v4724 = vadd.f32 %v4650, %v4723
        %v4725 = vpop.f32.mrb[0].mxu0
        %v4726 = vadd.f32 %v4652, %v4725
        %4727 = vdwg.mxu0
        %s4728 = scalar_lea.vmem %s203, 48 [#allocation7]
        %4729 = vst [vmem:[%s4728] sm:$0xff] %v4724
        %4730 = vst [vmem:[%s4728 + $0x8] sm:$0xff] %v4726
        %s4731 = sand.u32 %s97, 1
        %s4732 = scalar_lea.sflag [#allocation4], %s4731
        %s4733 = sand.u32 %s97, 1
        %s4734 = smul.addr %s4733, 64
        %s4735 = scalar_lea.vmem [#allocation7], %s4734
        // Predicated region
        $region41: #{tpu_custom_call.1} parent=31 // pred_check
          %p4736 = pneg %p107
        $region42: #{tpu_custom_call.1} parent=31 // pred_check_branch
          %4738 = sbr.rel (%p4736) target = $region44
        $region43: #{tpu_custom_call.1} parent=31 // pred_region
          %s4739 = smul.u32 4, %s21
          %s4741 = ssub.s32 1024, 1024
          %4742 = vsyncadd %s4732, %s4741
          %s4743 = smul.addr %s4739, 2
          %s4744 = smul.addr %s4743, 128
          %s4745 = scalar_lea.hbm %s3, %s4744
          %s4746 = sshll.u32 %s4735, 4
          %s4747 = int_to_ptr.vmem [resolvable:$true] %s4746
          %4752 = dma.vmem_to_hbm [thread:$0]  %s4747, 1024, %s4745, %s4732, 256, 256, 16
        $region44: #{tpu_custom_call.1} parent=31 // pred_fallthru
          _
      $region32: #{tpu_custom_call.1} parent=5 // pred_fallthru
        _
      %p4753 = scmp.le.s32.totalorder 2, %s16
      // Predicated region
      $region45: #{tpu_custom_call.1} parent=5 // pred_check
        %p4754 = pneg %p4753
      $region46: #{tpu_custom_call.1} parent=5 // pred_check_branch
        %4756 = sbr.rel (%p4754) target = $region48
      $region47: #{tpu_custom_call.1} parent=5 // pred_region
        %s4757 = ssub.s32 %s16, 2
        // Predicated region
        $region49: #{tpu_custom_call.1} parent=47 // pred_check
          %p4758 = pneg %p113
        $region50: #{tpu_custom_call.1} parent=47 // pred_check_branch
          %4760 = sbr.rel (%p4758) target = $region52
        $region51: #{tpu_custom_call.1} parent=47 // pred_region
          %s4761 = sand.u32 %s98, 1
          %s4762 = scalar_lea.sflag [#allocation4], %s4761
          %s4763 = sand.u32 %s98, 1
          %s4764 = smul.addr %s4763, 64
          %s4765 = scalar_lea.vmem [#allocation7], %s4764
          %4766 = dma.done %s4762, 1024
        $region52: #{tpu_custom_call.1} parent=47 // pred_fallthru
          _
      $region48: #{tpu_custom_call.1} parent=5 // pred_fallthru
        _
    $region6: #{tpu_custom_call.1} parent=1 // loop_footer
      %s20 = sadd.s32 1, %s16
    $region7: #{tpu_custom_call.1} parent=1 // loop_footer_branch
      %15 = sbr.rel target = $region3
    $region8: #{tpu_custom_call.1} parent=1 // loop_exit
      _
    %4767 = vsyncpa [#allocation3], 1
    %s4768 = scalar_lea.sflag [#allocation3], 1
    %4769 = vsyncpa %s4768, 1
    %4770 = vsyncpa [#allocation6], 1
    %4771 = vsyncpa [#allocation4], 1
    %s4772 = scalar_lea.sflag [#allocation4], 1
    %4773 = vsyncpa %s4772, 1

</llo_original>
